<compile_context>
chip_gen: v7x
topology: tpu7x:2x2x1
jax: 0.10.0
libtpu: 0.0.40
codegen_flags: <defaults>
</compile_context>

<pallas_src>
import functools
import math

import jax
import jax.numpy as jnp
from jax.experimental import pallas as pl
from jax.experimental.pallas import tpu as pltpu


def _round_up(x, m):
    return (x + m - 1) // m * m


def _edge_attn_kernel(x_ref, wqkv_ref, bqkv_ref, wo_ref, bo_ref, o_ref,
                      *, heads, dk, dv):
    """One grid step == TB batch elements.

    x_ref    : (TB, S, D)
    wqkv_ref : (D, H*(2*dk+dv))   fused [wq*scale | wk | wv]
    bqkv_ref : (1, H*(2*dk+dv))   fused [bq*scale | bk | bv]
    wo_ref   : (H*dv, D)
    bo_ref   : (1, D)
    o_ref    : (TB, D)            per-batch, sequence-mean attention output
    """
    TB, S, D = x_ref.shape
    hk = heads * dk

    # Fold batch into the matmul M dimension.
    x2 = x_ref[...].reshape(TB * S, D)

    # Fused Q/K/V projection: one MXU matmul with N = 2*H*dk + H*dv lanes.
    qkv = jnp.dot(x2, wqkv_ref[...],
                  preferred_element_type=jnp.float32) + bqkv_ref[...]
    qkv = qkv.reshape(TB, S, 2 * hk + heads * dv)

    head_outs = []
    for h in range(heads):                       # heads is small & static
        qh = qkv[:, :, h * dk:(h + 1) * dk]                        # (TB,S,dk)
        kh = qkv[:, :, hk + h * dk:hk + (h + 1) * dk]              # (TB,S,dk)
        vh = qkv[:, :, 2 * hk + h * dv:2 * hk + (h + 1) * dv]      # (TB,S,dv)

        # Scores; 1/sqrt(dk) is already folded into the Q weights/bias.
        s = jnp.einsum('bqd,bkd->bqk', qh, kh,
                       preferred_element_type=jnp.float32)         # (TB,S,S)
        s = s - jnp.max(s, axis=-1, keepdims=True)
        e = jnp.exp(s)
        p = e * pl.reciprocal(jnp.sum(e, axis=-1, keepdims=True), approx=True)

        oh = jnp.einsum('bqk,bkd->bqd', p, vh,
                        preferred_element_type=jnp.float32)        # (TB,S,dv)
        # f.mean(1) commutes with the linear output projection: average the
        # per-head outputs over the sequence axis now, so the projection below
        # is S-times smaller.
        head_outs.append(jnp.mean(oh, axis=1))                     # (TB, dv)

    o_cat = jnp.concatenate(head_outs, axis=-1)                    # (TB,H*dv)
    out = jnp.dot(o_cat, wo_ref[...],
                  preferred_element_type=jnp.float32) + bo_ref[...]
    o_ref[...] = out.astype(o_ref.dtype)


def edge_level_attention(features, params, *, heads, sub_dim, block_b=256):
    """features: (B, S, att_dim) -> (B, att_dim)."""
    B, S, D = features.shape
    wq, wk, wv, wo, bq, bk, bv, bo = params
    dk = dv = sub_dim
    scale = 1.0 / math.sqrt(dk)

    # Wrapper-side (free) weight prep: fold the attention scale into the Q
    # projection and fuse the three input projections into one weight / bias.
    wqkv = jnp.concatenate([wq * scale, wk, wv], axis=1)   # (D, H*(2dk+dv))
    bqkv = jnp.concatenate([bq * scale, bk, bv], axis=1)   # (1, H*(2dk+dv))
    n_qkv = wqkv.shape[1]

    # Batch tile: many batch elements per grid step.  Multiple of 8 sublanes;
    # pad B up to a multiple of the tile (zero rows are sliced off afterwards).
    tb = _round_up(min(block_b, _round_up(B, 8)), 8)
    bp = _round_up(B, tb)
    if bp != B:
        features = jnp.pad(features, ((0, bp - B), (0, 0), (0, 0)))

    kernel = functools.partial(_edge_attn_kernel, heads=heads, dk=dk, dv=dv)

    out = pl.pallas_call(
        kernel,
        out_shape=jax.ShapeDtypeStruct((bp, D), features.dtype),
        grid=(bp // tb,),
        in_specs=[
            pl.BlockSpec((tb, S, D), lambda i: (i, 0, 0)),
            pl.BlockSpec((D, n_qkv), lambda i: (0, 0)),
            pl.BlockSpec((1, n_qkv), lambda i: (0, 0)),
            pl.BlockSpec((heads * dv, D), lambda i: (0, 0)),
            pl.BlockSpec((1, D), lambda i: (0, 0)),
        ],
        out_specs=pl.BlockSpec((tb, D), lambda i: (i, 0)),
        compiler_params=pltpu.CompilerParams(
            dimension_semantics=("parallel",)),
    )(features, wqkv, bqkv, wo, bo)
    return out[:B]


def _reference(features, params, *, heads, sub_dim):
    """Pure-JAX reference of the same multi-head attention + mean(1)."""
    wq, wk, wv, wo, bq, bk, bv, bo = params
    B, S, D = features.shape
    dk = dv = sub_dim
    x = features.astype(jnp.float32)
    q = (x @ wq + bq).reshape(B, S, heads, dk).transpose(0, 2, 1, 3)
    k = (x @ wk + bk).reshape(B, S, heads, dk).transpose(0, 2, 1, 3)
    v = (x @ wv + bv).reshape(B, S, heads, dv).transpose(0, 2, 1, 3)
    s = jnp.einsum("bhqd,bhkd->bhqk", q, k) / math.sqrt(dk)
    p = jax.nn.softmax(s, axis=-1)
    o = jnp.einsum("bhqk,bhkd->bhqd", p, v)             # (B, H, S, dv)
    o = o.transpose(0, 2, 1, 3).reshape(B, S, heads * dv)
    f = o @ wo + bo                                     # (B, S, D)
    return f.mean(axis=1)


def _init_params(key, att_dim, sub_dim, heads):
    dk = dv = sub_dim
    ks = jax.random.split(key, 8)
    scale_in = 1.0 / math.sqrt(att_dim)
    scale_out = 1.0 / math.sqrt(heads * dv)
    wq = jax.random.normal(ks[0], (att_dim, heads * dk), jnp.float32) * scale_in
    wk = jax.random.normal(ks[1], (att_dim, heads * dk), jnp.float32) * scale_in
    wv = jax.random.normal(ks[2], (att_dim, heads * dv), jnp.float32) * scale_in
    wo = jax.random.normal(ks[3], (heads * dv, att_dim), jnp.float32) * scale_out
    bq = jax.random.normal(ks[4], (1, heads * dk), jnp.float32) * 0.01
    bk = jax.random.normal(ks[5], (1, heads * dk), jnp.float32) * 0.01
    bv = jax.random.normal(ks[6], (1, heads * dv), jnp.float32) * 0.01
    bo = jax.random.normal(ks[7], (1, att_dim), jnp.float32) * 0.01
    return (wq, wk, wv, wo, bq, bk, bv, bo)


if __name__ == "__main__":
    # Small shapes consistent with the module's forward: features (B, S, att_dim).
    B, S = 2, 8
    att_dim, sub_dim, heads = 32, 16, 4

    key = jax.random.PRNGKey(0)
    k_feat, k_params, k_feat2 = jax.random.split(key, 3)
    features = jax.random.normal(k_feat, (B, S, att_dim), jnp.float32)
    params = _init_params(k_params, att_dim, sub_dim, heads)

    out = edge_level_attention(features, params, heads=heads, sub_dim=sub_dim)
    out = jax.block_until_ready(out)
    ref = _reference(features, params, heads=heads, sub_dim=sub_dim)
    assert out.shape == (B, att_dim), out.shape
    err = float(jnp.max(jnp.abs(out - ref)))
    # Tolerance accounts for the approx (EUP) reciprocal in the softmax.
    assert err < 2e-3, err

    # Second check: ragged batch + padding + multiple parallel grid steps.
    B2 = 19
    features2 = jax.random.normal(k_feat2, (B2, S, att_dim), jnp.float32)
    out2 = jax.block_until_ready(
        edge_level_attention(features2, params, heads=heads, sub_dim=sub_dim,
                             block_b=8))
    ref2 = _reference(features2, params, heads=heads, sub_dim=sub_dim)
    assert out2.shape == (B2, att_dim), out2.shape
    err2 = float(jnp.max(jnp.abs(out2 - ref2)))
    assert err2 < 2e-3, err2

    print("KERNEL_OK")
</pallas_src>

<mosaic_0001>
module attributes {stable_mosaic.version = 11 : i64} {
  func.func @_edge_attn_kernel(%arg0: i32, %arg1: memref<8x8x32xf32, #tpu.memory_space<vmem>>, %arg2: memref<32x192xf32, #tpu.memory_space<vmem>>, %arg3: memref<1x192xf32, #tpu.memory_space<vmem>>, %arg4: memref<64x32xf32, #tpu.memory_space<vmem>>, %arg5: memref<1x32xf32, #tpu.memory_space<vmem>>, %arg6: memref<8x32xf32, #tpu.memory_space<vmem>>) attributes {dimension_semantics = [#tpu.dimension_semantics<parallel>], iteration_bounds = array<i64: 1>, scalar_prefetch = 0 : i64, scratch_operands = 0 : i64, tpu.core_type = #tpu.core_type<tc>, window_params = [{transform_indices = @transform_0, window_bounds = array<i64: 8, 8, 32>}, {pipeline_mode = #tpu.pipeline_mode<synchronous>, transform_indices = @transform_1, window_bounds = array<i64: 32, 192>}, {pipeline_mode = #tpu.pipeline_mode<synchronous>, transform_indices = @transform_2, window_bounds = array<i64: 1, 192>}, {pipeline_mode = #tpu.pipeline_mode<synchronous>, transform_indices = @transform_3, window_bounds = array<i64: 64, 32>}, {pipeline_mode = #tpu.pipeline_mode<synchronous>, transform_indices = @transform_4, window_bounds = array<i64: 1, 32>}, {transform_indices = @transform_5, window_bounds = array<i64: 8, 32>}]} {
    %c0 = arith.constant 0 : index
    %c0_0 = arith.constant 0 : index
    %c0_1 = arith.constant 0 : index
    %0 = vector.load %arg1[%c0, %c0_0, %c0_1] : memref<8x8x32xf32, #tpu.memory_space<vmem>>, vector<8x8x32xf32>
    %1 = vector.shape_cast %0 : vector<8x8x32xf32> to vector<64x32xf32>
    %c0_2 = arith.constant 0 : index
    %c0_3 = arith.constant 0 : index
    %2 = vector.load %arg2[%c0_2, %c0_3] : memref<32x192xf32, #tpu.memory_space<vmem>>, vector<32x192xf32>
    %cst = arith.constant dense<0.000000e+00> : vector<64x192xf32>
    %3 = tpu.matmul %1, %2, %cst {dimension_numbers = #tpu.dot_dimension_numbers<[1], [0], [0], [1], [0, 0, 1, 1], [], []>} : vector<64x32xf32>, vector<32x192xf32>, vector<64x192xf32> -> vector<64x192xf32>
    %c0_4 = arith.constant 0 : index
    %c0_5 = arith.constant 0 : index
    %4 = vector.load %arg3[%c0_4, %c0_5] : memref<1x192xf32, #tpu.memory_space<vmem>>, vector<1x192xf32>
    %5 = vector.broadcast %4 : vector<1x192xf32> to vector<64x192xf32>
    %6 = arith.addf %3, %5 : vector<64x192xf32>
    %7 = vector.shape_cast %6 : vector<64x192xf32> to vector<8x8x192xf32>
    %8 = vector.extract_strided_slice %7 {offsets = [0, 0, 0], sizes = [8, 8, 16], strides = [1, 1, 1]} : vector<8x8x192xf32> to vector<8x8x16xf32>
    %9 = vector.extract_strided_slice %7 {offsets = [0, 0, 64], sizes = [8, 8, 16], strides = [1, 1, 1]} : vector<8x8x192xf32> to vector<8x8x16xf32>
    %10 = vector.extract_strided_slice %7 {offsets = [0, 0, 128], sizes = [8, 8, 16], strides = [1, 1, 1]} : vector<8x8x192xf32> to vector<8x8x16xf32>
    "tpu.trace_start"() <{level = 10 : i32, message = "bqd,bkd->bqk"}> : () -> ()
    %cst_6 = arith.constant dense<0.000000e+00> : vector<8x8x8xf32>
    %11 = tpu.matmul %8, %9, %cst_6 {dimension_numbers = #tpu.dot_dimension_numbers<[2], [2], [1], [1], [0, 0, 0, 1, 1, 1], [0], [0]>} : vector<8x8x16xf32>, vector<8x8x16xf32>, vector<8x8x8xf32> -> vector<8x8x8xf32>
    "tpu.trace_stop"() : () -> ()
    %cst_7 = arith.constant dense<0xFF800000> : vector<8x8xf32>
    %12 = vector.multi_reduction <maximumf>, %11, %cst_7 [2] : vector<8x8x8xf32> to vector<8x8xf32>
    %13 = vector.shape_cast %12 : vector<8x8xf32> to vector<8x8x1xf32>
    %14 = vector.broadcast %13 : vector<8x8x1xf32> to vector<8x8x8xf32>
    %15 = arith.subf %11, %14 : vector<8x8x8xf32>
    %16 = math.exp %15 : vector<8x8x8xf32>
    %cst_8 = arith.constant dense<0.000000e+00> : vector<8x8xf32>
    %17 = vector.multi_reduction <add>, %16, %cst_8 [2] : vector<8x8x8xf32> to vector<8x8xf32>
    %18 = vector.shape_cast %17 : vector<8x8xf32> to vector<8x8x1xf32>
    %19 = tpu.reciprocal %18 {approx = true} : vector<8x8x1xf32> -> vector<8x8x1xf32>
    %20 = vector.broadcast %19 : vector<8x8x1xf32> to vector<8x8x8xf32>
    %21 = arith.mulf %16, %20 : vector<8x8x8xf32>
    "tpu.trace_start"() <{level = 10 : i32, message = "bqk,bkd->bqd"}> : () -> ()
    %cst_9 = arith.constant dense<0.000000e+00> : vector<8x8x16xf32>
    %22 = tpu.matmul %21, %10, %cst_9 {dimension_numbers = #tpu.dot_dimension_numbers<[2], [1], [1], [2], [0, 0, 0, 1, 1, 2], [0], [0]>} : vector<8x8x8xf32>, vector<8x8x16xf32>, vector<8x8x16xf32> -> vector<8x8x16xf32>
    "tpu.trace_stop"() : () -> ()
    %cst_10 = arith.constant dense<0.000000e+00> : vector<8x16xf32>
    %23 = vector.multi_reduction <add>, %22, %cst_10 [1] : vector<8x8x16xf32> to vector<8x16xf32>
    %cst_11 = arith.constant 8.000000e+00 : f32
    %24 = vector.broadcast %cst_11 : f32 to vector<8x16xf32>
    %25 = arith.divf %23, %24 : vector<8x16xf32>
    %26 = vector.extract_strided_slice %7 {offsets = [0, 0, 16], sizes = [8, 8, 16], strides = [1, 1, 1]} : vector<8x8x192xf32> to vector<8x8x16xf32>
    %27 = vector.extract_strided_slice %7 {offsets = [0, 0, 80], sizes = [8, 8, 16], strides = [1, 1, 1]} : vector<8x8x192xf32> to vector<8x8x16xf32>
    %28 = vector.extract_strided_slice %7 {offsets = [0, 0, 144], sizes = [8, 8, 16], strides = [1, 1, 1]} : vector<8x8x192xf32> to vector<8x8x16xf32>
    "tpu.trace_start"() <{level = 10 : i32, message = "bqd,bkd->bqk"}> : () -> ()
    %cst_12 = arith.constant dense<0.000000e+00> : vector<8x8x8xf32>
    %29 = tpu.matmul %26, %27, %cst_12 {dimension_numbers = #tpu.dot_dimension_numbers<[2], [2], [1], [1], [0, 0, 0, 1, 1, 1], [0], [0]>} : vector<8x8x16xf32>, vector<8x8x16xf32>, vector<8x8x8xf32> -> vector<8x8x8xf32>
    "tpu.trace_stop"() : () -> ()
    %cst_13 = arith.constant dense<0xFF800000> : vector<8x8xf32>
    %30 = vector.multi_reduction <maximumf>, %29, %cst_13 [2] : vector<8x8x8xf32> to vector<8x8xf32>
    %31 = vector.shape_cast %30 : vector<8x8xf32> to vector<8x8x1xf32>
    %32 = vector.broadcast %31 : vector<8x8x1xf32> to vector<8x8x8xf32>
    %33 = arith.subf %29, %32 : vector<8x8x8xf32>
    %34 = math.exp %33 : vector<8x8x8xf32>
    %cst_14 = arith.constant dense<0.000000e+00> : vector<8x8xf32>
    %35 = vector.multi_reduction <add>, %34, %cst_14 [2] : vector<8x8x8xf32> to vector<8x8xf32>
    %36 = vector.shape_cast %35 : vector<8x8xf32> to vector<8x8x1xf32>
    %37 = tpu.reciprocal %36 {approx = true} : vector<8x8x1xf32> -> vector<8x8x1xf32>
    %38 = vector.broadcast %37 : vector<8x8x1xf32> to vector<8x8x8xf32>
    %39 = arith.mulf %34, %38 : vector<8x8x8xf32>
    "tpu.trace_start"() <{level = 10 : i32, message = "bqk,bkd->bqd"}> : () -> ()
    %cst_15 = arith.constant dense<0.000000e+00> : vector<8x8x16xf32>
    %40 = tpu.matmul %39, %28, %cst_15 {dimension_numbers = #tpu.dot_dimension_numbers<[2], [1], [1], [2], [0, 0, 0, 1, 1, 2], [0], [0]>} : vector<8x8x8xf32>, vector<8x8x16xf32>, vector<8x8x16xf32> -> vector<8x8x16xf32>
    "tpu.trace_stop"() : () -> ()
    %cst_16 = arith.constant dense<0.000000e+00> : vector<8x16xf32>
    %41 = vector.multi_reduction <add>, %40, %cst_16 [1] : vector<8x8x16xf32> to vector<8x16xf32>
    %cst_17 = arith.constant 8.000000e+00 : f32
    %42 = vector.broadcast %cst_17 : f32 to vector<8x16xf32>
    %43 = arith.divf %41, %42 : vector<8x16xf32>
    %44 = vector.extract_strided_slice %7 {offsets = [0, 0, 32], sizes = [8, 8, 16], strides = [1, 1, 1]} : vector<8x8x192xf32> to vector<8x8x16xf32>
    %45 = vector.extract_strided_slice %7 {offsets = [0, 0, 96], sizes = [8, 8, 16], strides = [1, 1, 1]} : vector<8x8x192xf32> to vector<8x8x16xf32>
    %46 = vector.extract_strided_slice %7 {offsets = [0, 0, 160], sizes = [8, 8, 16], strides = [1, 1, 1]} : vector<8x8x192xf32> to vector<8x8x16xf32>
    "tpu.trace_start"() <{level = 10 : i32, message = "bqd,bkd->bqk"}> : () -> ()
    %cst_18 = arith.constant dense<0.000000e+00> : vector<8x8x8xf32>
    %47 = tpu.matmul %44, %45, %cst_18 {dimension_numbers = #tpu.dot_dimension_numbers<[2], [2], [1], [1], [0, 0, 0, 1, 1, 1], [0], [0]>} : vector<8x8x16xf32>, vector<8x8x16xf32>, vector<8x8x8xf32> -> vector<8x8x8xf32>
    "tpu.trace_stop"() : () -> ()
    %cst_19 = arith.constant dense<0xFF800000> : vector<8x8xf32>
    %48 = vector.multi_reduction <maximumf>, %47, %cst_19 [2] : vector<8x8x8xf32> to vector<8x8xf32>
    %49 = vector.shape_cast %48 : vector<8x8xf32> to vector<8x8x1xf32>
    %50 = vector.broadcast %49 : vector<8x8x1xf32> to vector<8x8x8xf32>
    %51 = arith.subf %47, %50 : vector<8x8x8xf32>
    %52 = math.exp %51 : vector<8x8x8xf32>
    %cst_20 = arith.constant dense<0.000000e+00> : vector<8x8xf32>
    %53 = vector.multi_reduction <add>, %52, %cst_20 [2] : vector<8x8x8xf32> to vector<8x8xf32>
    %54 = vector.shape_cast %53 : vector<8x8xf32> to vector<8x8x1xf32>
    %55 = tpu.reciprocal %54 {approx = true} : vector<8x8x1xf32> -> vector<8x8x1xf32>
    %56 = vector.broadcast %55 : vector<8x8x1xf32> to vector<8x8x8xf32>
    %57 = arith.mulf %52, %56 : vector<8x8x8xf32>
    "tpu.trace_start"() <{level = 10 : i32, message = "bqk,bkd->bqd"}> : () -> ()
    %cst_21 = arith.constant dense<0.000000e+00> : vector<8x8x16xf32>
    %58 = tpu.matmul %57, %46, %cst_21 {dimension_numbers = #tpu.dot_dimension_numbers<[2], [1], [1], [2], [0, 0, 0, 1, 1, 2], [0], [0]>} : vector<8x8x8xf32>, vector<8x8x16xf32>, vector<8x8x16xf32> -> vector<8x8x16xf32>
    "tpu.trace_stop"() : () -> ()
    %cst_22 = arith.constant dense<0.000000e+00> : vector<8x16xf32>
    %59 = vector.multi_reduction <add>, %58, %cst_22 [1] : vector<8x8x16xf32> to vector<8x16xf32>
    %cst_23 = arith.constant 8.000000e+00 : f32
    %60 = vector.broadcast %cst_23 : f32 to vector<8x16xf32>
    %61 = arith.divf %59, %60 : vector<8x16xf32>
    %62 = vector.extract_strided_slice %7 {offsets = [0, 0, 48], sizes = [8, 8, 16], strides = [1, 1, 1]} : vector<8x8x192xf32> to vector<8x8x16xf32>
    %63 = vector.extract_strided_slice %7 {offsets = [0, 0, 112], sizes = [8, 8, 16], strides = [1, 1, 1]} : vector<8x8x192xf32> to vector<8x8x16xf32>
    %64 = vector.extract_strided_slice %7 {offsets = [0, 0, 176], sizes = [8, 8, 16], strides = [1, 1, 1]} : vector<8x8x192xf32> to vector<8x8x16xf32>
    "tpu.trace_start"() <{level = 10 : i32, message = "bqd,bkd->bqk"}> : () -> ()
    %cst_24 = arith.constant dense<0.000000e+00> : vector<8x8x8xf32>
    %65 = tpu.matmul %62, %63, %cst_24 {dimension_numbers = #tpu.dot_dimension_numbers<[2], [2], [1], [1], [0, 0, 0, 1, 1, 1], [0], [0]>} : vector<8x8x16xf32>, vector<8x8x16xf32>, vector<8x8x8xf32> -> vector<8x8x8xf32>
    "tpu.trace_stop"() : () -> ()
    %cst_25 = arith.constant dense<0xFF800000> : vector<8x8xf32>
    %66 = vector.multi_reduction <maximumf>, %65, %cst_25 [2] : vector<8x8x8xf32> to vector<8x8xf32>
    %67 = vector.shape_cast %66 : vector<8x8xf32> to vector<8x8x1xf32>
    %68 = vector.broadcast %67 : vector<8x8x1xf32> to vector<8x8x8xf32>
    %69 = arith.subf %65, %68 : vector<8x8x8xf32>
    %70 = math.exp %69 : vector<8x8x8xf32>
    %cst_26 = arith.constant dense<0.000000e+00> : vector<8x8xf32>
    %71 = vector.multi_reduction <add>, %70, %cst_26 [2] : vector<8x8x8xf32> to vector<8x8xf32>
    %72 = vector.shape_cast %71 : vector<8x8xf32> to vector<8x8x1xf32>
    %73 = tpu.reciprocal %72 {approx = true} : vector<8x8x1xf32> -> vector<8x8x1xf32>
    %74 = vector.broadcast %73 : vector<8x8x1xf32> to vector<8x8x8xf32>
    %75 = arith.mulf %70, %74 : vector<8x8x8xf32>
    "tpu.trace_start"() <{level = 10 : i32, message = "bqk,bkd->bqd"}> : () -> ()
    %cst_27 = arith.constant dense<0.000000e+00> : vector<8x8x16xf32>
    %76 = tpu.matmul %75, %64, %cst_27 {dimension_numbers = #tpu.dot_dimension_numbers<[2], [1], [1], [2], [0, 0, 0, 1, 1, 2], [0], [0]>} : vector<8x8x8xf32>, vector<8x8x16xf32>, vector<8x8x16xf32> -> vector<8x8x16xf32>
    "tpu.trace_stop"() : () -> ()
    %cst_28 = arith.constant dense<0.000000e+00> : vector<8x16xf32>
    %77 = vector.multi_reduction <add>, %76, %cst_28 [1] : vector<8x8x16xf32> to vector<8x16xf32>
    %cst_29 = arith.constant 8.000000e+00 : f32
    %78 = vector.broadcast %cst_29 : f32 to vector<8x16xf32>
    %79 = arith.divf %77, %78 : vector<8x16xf32>
    %80 = tpu.concatenate %25, %43, %61, %79 in 1 : vector<8x16xf32>, vector<8x16xf32>, vector<8x16xf32>, vector<8x16xf32> -> vector<8x64xf32>
    %c0_30 = arith.constant 0 : index
    %c0_31 = arith.constant 0 : index
    %81 = vector.load %arg4[%c0_30, %c0_31] : memref<64x32xf32, #tpu.memory_space<vmem>>, vector<64x32xf32>
    %cst_32 = arith.constant dense<0.000000e+00> : vector<8x32xf32>
    %82 = tpu.matmul %80, %81, %cst_32 {dimension_numbers = #tpu.dot_dimension_numbers<[1], [0], [0], [1], [0, 0, 1, 1], [], []>} : vector<8x64xf32>, vector<64x32xf32>, vector<8x32xf32> -> vector<8x32xf32>
    %c0_33 = arith.constant 0 : index
    %c0_34 = arith.constant 0 : index
    %83 = vector.load %arg5[%c0_33, %c0_34] : memref<1x32xf32, #tpu.memory_space<vmem>>, vector<1x32xf32>
    %84 = vector.broadcast %83 : vector<1x32xf32> to vector<8x32xf32>
    %85 = arith.addf %82, %84 : vector<8x32xf32>
    %c0_35 = arith.constant 0 : index
    %c0_36 = arith.constant 0 : index
    %86 = vector.load %arg6[%c0_35, %c0_36] : memref<8x32xf32, #tpu.memory_space<vmem>>, vector<8x32xf32>
    tpu.vector_store %arg6[%c0_35, %c0_36], %85 {strides = array<i32>} : memref<8x32xf32, #tpu.memory_space<vmem>>, vector<8x32xf32>,
    return
  }
  func.func @transform_0(%arg0: i32) -> (i32, i32, i32) {
    %c0_i32 = arith.constant 0 : i32
    %c0_i32_0 = arith.constant 0 : i32
    %c0_i32_1 = arith.constant 0 : i32
    return %arg0, %c0_i32, %c0_i32_0 : i32, i32, i32
  }
  func.func @transform_1(%arg0: i32) -> (i32, i32) {
    %c0_i32 = arith.constant 0 : i32
    %c0_i32_0 = arith.constant 0 : i32
    %c0_i32_1 = arith.constant 0 : i32
    return %c0_i32, %c0_i32_0 : i32, i32
  }
  func.func @transform_2(%arg0: i32) -> (i32, i32) {
    %c0_i32 = arith.constant 0 : i32
    %c0_i32_0 = arith.constant 0 : i32
    %c0_i32_1 = arith.constant 0 : i32
    return %c0_i32, %c0_i32_0 : i32, i32
  }
  func.func @transform_3(%arg0: i32) -> (i32, i32) {
    %c0_i32 = arith.constant 0 : i32
    %c0_i32_0 = arith.constant 0 : i32
    %c0_i32_1 = arith.constant 0 : i32
    return %c0_i32, %c0_i32_0 : i32, i32
  }
  func.func @transform_4(%arg0: i32) -> (i32, i32) {
    %c0_i32 = arith.constant 0 : i32
    %c0_i32_0 = arith.constant 0 : i32
    %c0_i32_1 = arith.constant 0 : i32
    return %c0_i32, %c0_i32_0 : i32, i32
  }
  func.func @transform_5(%arg0: i32) -> (i32, i32) {
    %c0_i32 = arith.constant 0 : i32
    %c0_i32_0 = arith.constant 0 : i32
    return %arg0, %c0_i32 : i32, i32
  }
}

</mosaic_0001>

<llo_original>
// kernel: tpu_custom_call.1
$region0: #{tpu_custom_call.1}
  #allocation0 [shape = 'u32[]', space=smem, size = 0x4, offset = 0x4, fixed_abs, tag = 'smem constant byte address 0x4 - core index']
  #allocation1 [shape = 'u32[144,128]{1,0:T(1,128)}', space=vmem, size = 0x12000, scoped, tag = 'internal scratch']
  %s0 = inlined_call_operand.vmem [shape: f32[8,8,32], index: 0, kind: input, shape index: {}]
  %s1 = inlined_call_operand.hbm [shape: f32[32,192], index: 1, kind: input, shape index: {}]
  %s2 = inlined_call_operand.vmem [shape: f32[1,192], index: 2, kind: input, shape index: {}]
  %s3 = inlined_call_operand.vmem [shape: f32[64,32], index: 3, kind: input, shape index: {}]
  %s4 = inlined_call_operand.vmem [shape: f32[1,32], index: 4, kind: input, shape index: {}]
  %s5 = inlined_call_operand.hbm [shape: f32[8,32], index: 5, kind: output, shape index: {}]
  %s6 = sld [smem:[#allocation0]]
  $region34: #{tpu_custom_call.1} parent=0
    _
  %s8 = ssub.s32 1, %s6
  %s9 = scalar_select 0, %s8, %s6
  $region1: #{tpu_custom_call.1} parent=0
    #allocation2 [shape = 'u8[32768]{0}', space=vmem, size = 0x8000, scoped, tag = 'input window, operand 1, single buffered']
    #allocation3 [shape = 's32[1]{0}', space=sflag, size = 0x4, scoped, tag = 'scoped memory for tpu_custom_call.1']
    #allocation4 [shape = 's32[1]{0}', space=sflag, size = 0x4, scoped, tag = 'scoped memory for tpu_custom_call.1']
    #allocation5 [shape = 'u8[4096]{0}', space=vmem, size = 0x1000, scoped, tag = 'output window, operand 0, single buffered']
    %10 = vsyncpa [#allocation3], 0
    %11 = vsyncpa [#allocation4], 0
    // Predicated region
    $region2: #{tpu_custom_call.1} parent=1 // pred_check
      _
    $region3: #{tpu_custom_call.1} parent=1 // pred_check_branch
      %13 = sbr.rel (0) target = $region5
    $region4: #{tpu_custom_call.1} parent=1 // pred_region
      _
    $region5: #{tpu_custom_call.1} parent=1 // pred_fallthru
      _
    // Predicated region
    $region6: #{tpu_custom_call.1} parent=1 // pred_check
      _
    $region7: #{tpu_custom_call.1} parent=1 // pred_check_branch
      %15 = sbr.rel (0) target = $region9
    $region8: #{tpu_custom_call.1} parent=1 // pred_region
      %s17 = ssub.s32 1024, 1024
      %18 = vsyncadd [#allocation3], %s17
      %s19 = sshll.u32 [#allocation2], 4
      %s20 = int_to_ptr.vmem [resolvable:$true] %s19
      %25 = dma.hbm_to_vmem [thread:$0]  %s1, 1024, %s20, [#allocation3], 256, 256, 16
    $region9: #{tpu_custom_call.1} parent=1 // pred_fallthru
      _
    // Predicated region
    $region10: #{tpu_custom_call.1} parent=1 // pred_check
      _
    $region11: #{tpu_custom_call.1} parent=1 // pred_check_branch
      %27 = sbr.rel (0) target = $region13
    $region12: #{tpu_custom_call.1} parent=1 // pred_region
      _
    $region13: #{tpu_custom_call.1} parent=1 // pred_fallthru
      _
    // Predicated region
    $region14: #{tpu_custom_call.1} parent=1 // pred_check
      _
    $region15: #{tpu_custom_call.1} parent=1 // pred_check_branch
      %29 = sbr.rel (0) target = $region17
    $region16: #{tpu_custom_call.1} parent=1 // pred_region
      _
    $region17: #{tpu_custom_call.1} parent=1 // pred_fallthru
      _
    // Predicated region
    $region18: #{tpu_custom_call.1} parent=1 // pred_check
      _
    $region19: #{tpu_custom_call.1} parent=1 // pred_check_branch
      %31 = sbr.rel (0) target = $region21
    $region20: #{tpu_custom_call.1} parent=1 // pred_region
      _
    $region21: #{tpu_custom_call.1} parent=1 // pred_fallthru
      _
    // Predicated region
    $region22: #{tpu_custom_call.1} parent=1 // pred_check
      _
    $region23: #{tpu_custom_call.1} parent=1 // pred_check_branch
      %33 = sbr.rel (0) target = $region25
    $region24: #{tpu_custom_call.1} parent=1 // pred_region
      %34 = dma.done [#allocation3], 1024
    $region25: #{tpu_custom_call.1} parent=1 // pred_fallthru
      _
    %v35 = vld [vmem:[%s0] sm:$0xff]
    %v36 = vld [vmem:[%s0 + $0x8] sm:$0xff]
    %v37 = vld [vmem:[%s0 + $0x10] sm:$0xff]
    %v38 = vld [vmem:[%s0 + $0x18] sm:$0xff]
    %v39 = vld [vmem:[%s0 + $0x20] sm:$0xff]
    %v40 = vld [vmem:[%s0 + $0x28] sm:$0xff]
    %v41 = vld [vmem:[%s0 + $0x30] sm:$0xff]
    %v42 = vld [vmem:[%s0 + $0x38] sm:$0xff]
    %v43 = vld [vmem:[#allocation2] sm:$0xff]
    %v44 = vld [vmem:[#allocation2 + $0x8] sm:$0xff]
    %v45 = vld [vmem:[#allocation2 + $0x10] sm:$0xff]
    %v46 = vld [vmem:[#allocation2 + $0x18] sm:$0xff]
    %v47 = vld [vmem:[#allocation2 + $0x20] sm:$0xff]
    %v48 = vld [vmem:[#allocation2 + $0x28] sm:$0xff]
    %v49 = vld [vmem:[#allocation2 + $0x30] sm:$0xff]
    %v50 = vld [vmem:[#allocation2 + $0x38] sm:$0xff]
    %v51 = vld [vmem:[%s2] sm:$0x3]
    %v53 = vlaneseq
    %v54 = vshrl.u32 %v53, 7
    %v55 = vsub.s32 0, %v54
    %v56 = vrot.slane %v51, %v55
    %v57 = vlaneseq
    %v58 = vshrl.u32 %v57, 7
    %v59 = vsub.s32 1, %v58
    %v60 = vrot.slane %v51, %v59
    %vm63 = vcmask 261120
    %v65 = vsel %vm63, %v35, 0
    %v68 = vsel %vm63, %v36, 0
    %v71 = vsel %vm63, %v37, 0
    %v74 = vsel %vm63, %v38, 0
    %v77 = vsel %vm63, %v39, 0
    %v80 = vsel %vm63, %v40, 0
    %v83 = vsel %vm63, %v41, 0
    %v86 = vsel %vm63, %v42, 0
    %88 = vmatprep.subr.mxu0 %v44
    %89 = vmatpush1.msra.mxu0 %v43
    %90 = vmatprep.subr.mxu0 %v46
    %91 = vmatpush1.msra.mxu0 %v45
    %92 = vmatprep.subr.mxu0 %v48
    %93 = vmatpush1.msra.mxu0 %v47
    %94 = vmatprep.subr.mxu0 %v50
    %95 = vmatpush1.msra.mxu0 %v49
    %96 = vmatprep.subr.mxu0 0.0
    %97 = vmatpush1.msra.mxu0 0.0
    %98 = vmatprep.subr.mxu0 0.0
    %99 = vmatpush1.msra.mxu0 0.0
    %100 = vmatprep.subr.mxu0 0.0
    %101 = vmatpush1.msra.mxu0 0.0
    %102 = vmatprep.subr.mxu0 0.0
    %103 = vmatpush1.msra.mxu0 0.0
    %104 = vmatprep.subr.mxu0 0.0
    %105 = vmatpush1.msra.mxu0 0.0
    %106 = vmatprep.subr.mxu0 0.0
    %107 = vmatpush1.msra.mxu0 0.0
    %108 = vmatprep.subr.mxu0 0.0
    %109 = vmatpush1.msra.mxu0 0.0
    %110 = vmatprep.subr.mxu0 0.0
    %111 = vmatpush1.msra.mxu0 0.0
    %112 = vmatprep.subr.mxu0 0.0
    %113 = vmatpush1.msra.mxu0 0.0
    %114 = vmatprep.subr.mxu0 0.0
    %115 = vmatpush1.msra.mxu0 0.0
    %116 = vmatprep.subr.mxu0 0.0
    %117 = vmatpush1.msra.mxu0 0.0
    %118 = vmatprep.subr.mxu0 0.0
    %119 = vmatpush1.msra.mxu0 0.0
    %120 = vmatprep.subr.mxu0 0.0
    %121 = vmatpush1.msra.mxu0 0.0
    %122 = vmatprep.subr.mxu0 0.0
    %123 = vmatpush1.msra.mxu0 0.0
    %124 = vmatprep.subr.mxu0 0.0
    %125 = vmatpush1.msra.mxu0 0.0
    %126 = vmatprep.subr.mxu0 0.0
    %127 = vmatpush1.msra.mxu0 0.0
    %128 = vmatprep.subr.mxu0 0.0
    %129 = vmatpush1.msra.mxu0 0.0
    %130 = vmatprep.subr.mxu0 0.0
    %131 = vmatpush1.msra.mxu0 0.0
    %132 = vmatprep.subr.mxu0 0.0
    %133 = vmatpush1.msra.mxu0 0.0
    %134 = vmatprep.subr.mxu0 0.0
    %135 = vmatpush1.msra.mxu0 0.0
    %136 = vmatprep.subr.mxu0 0.0
    %137 = vmatpush1.msra.mxu0 0.0
    %138 = vmatprep.subr.mxu0 0.0
    %139 = vmatpush1.msra.mxu0 0.0
    %140 = vmatprep.subr.mxu0 0.0
    %141 = vmatpush1.msra.mxu0 0.0
    %142 = vmatprep.subr.mxu0 0.0
    %143 = vmatpush1.msra.mxu0 0.0
    %144 = vmatprep.subr.mxu0 0.0
    %145 = vmatpush1.msra.mxu0 0.0
    %146 = vmatprep.subr.mxu0 0.0
    %147 = vmatpush1.msra.mxu0 0.0
    %148 = vmatprep.subr.mxu0 0.0
    %149 = vmatpush1.msra.mxu0 0.0
    %150 = vmatprep.subr.mxu0 0.0
    %151 = vmatpush1.msra.mxu0 0.0
    %152 = vmatprep.mubr.f32.mxu0 0.0
    %153 = vmatmul.mubr.f32.gmra.mrb[0].mxu0 %v65
    %v154 = vpop.f32.mrb[0].mxu0
    %v155 = vadd.f32 %v56, %v154
    %v156 = vpop.f32.mrb[0].mxu0
    %v157 = vadd.f32 %v60, %v156
    %158 = vmatprep.mubr.f32.mxu0 0.0
    %159 = vmatmul.mubr.f32.gmra.mrb[0].mxu0 %v68
    %v160 = vpop.f32.mrb[0].mxu0
    %v161 = vadd.f32 %v56, %v160
    %v162 = vpop.f32.mrb[0].mxu0
    %v163 = vadd.f32 %v60, %v162
    %164 = vmatprep.mubr.f32.mxu0 0.0
    %165 = vmatmul.mubr.f32.gmra.mrb[0].mxu0 %v71
    %v166 = vpop.f32.mrb[0].mxu0
    %v167 = vadd.f32 %v56, %v166
    %v168 = vpop.f32.mrb[0].mxu0
    %v169 = vadd.f32 %v60, %v168
    %170 = vmatprep.mubr.f32.mxu0 0.0
    %171 = vmatmul.mubr.f32.gmra.mrb[0].mxu0 %v74
    %v172 = vpop.f32.mrb[0].mxu0
    %v173 = vadd.f32 %v56, %v172
    %v174 = vpop.f32.mrb[0].mxu0
    %v175 = vadd.f32 %v60, %v174
    %176 = vmatprep.mubr.f32.mxu0 0.0
    %177 = vmatmul.mubr.f32.gmra.mrb[0].mxu0 %v77
    %v178 = vpop.f32.mrb[0].mxu0
    %v179 = vadd.f32 %v56, %v178
    %v180 = vpop.f32.mrb[0].mxu0
    %v181 = vadd.f32 %v60, %v180
    %182 = vmatprep.mubr.f32.mxu0 0.0
    %183 = vmatmul.mubr.f32.gmra.mrb[0].mxu0 %v80
    %v184 = vpop.f32.mrb[0].mxu0
    %v185 = vadd.f32 %v56, %v184
    %v186 = vpop.f32.mrb[0].mxu0
    %v187 = vadd.f32 %v60, %v186
    %188 = vmatprep.mubr.f32.mxu0 0.0
    %189 = vmatmul.mubr.f32.gmra.mrb[0].mxu0 %v83
    %v190 = vpop.f32.mrb[0].mxu0
    %v191 = vadd.f32 %v56, %v190
    %v192 = vpop.f32.mrb[0].mxu0
    %v193 = vadd.f32 %v60, %v192
    %194 = vmatprep.mubr.f32.mxu0 0.0
    %195 = vmatmul.mubr.f32.gmra.mrb[0].mxu0 %v86
    %v196 = vpop.f32.mrb[0].mxu0
    %v197 = vadd.f32 %v56, %v196
    %v198 = vpop.f32.mrb[0].mxu0
    %v199 = vadd.f32 %v60, %v198
    %200 = vdwg.mxu0
    %202 = vrot.lane.b32.xlu0 %v155, 64
    %v203 = vpop.permute.xlu0 %202
    %vm204 = vcmask 130048
    %v205 = vsel %vm204, %v155, 0
    %v207 = vsel %vm204, %v203, 0
    %209 = vmatprep.subr.mxu0 0.0
    %210 = vmatpush1.xpose.msra.mxu0 %v207
    %211 = vmatprep.subr.mxu0 0.0
    %212 = vmatpush1.xpose.msra.mxu0 0.0
    %213 = vmatprep.subr.mxu0 0.0
    %214 = vmatpush1.xpose.msra.mxu0 0.0
    %215 = vmatprep.subr.mxu0 0.0
    %216 = vmatpush1.xpose.msra.mxu0 0.0
    %217 = vmatprep.subr.mxu0 0.0
    %218 = vmatpush1.xpose.msra.mxu0 0.0
    %219 = vmatprep.subr.mxu0 0.0
    %220 = vmatpush1.xpose.msra.mxu0 0.0
    %221 = vmatprep.subr.mxu0 0.0
    %222 = vmatpush1.xpose.msra.mxu0 0.0
    %223 = vmatprep.subr.mxu0 0.0
    %224 = vmatpush1.xpose.msra.mxu0 0.0
    %225 = vmatprep.subr.mxu0 0.0
    %226 = vmatpush1.xpose.msra.mxu0 0.0
    %227 = vmatprep.subr.mxu0 0.0
    %228 = vmatpush1.xpose.msra.mxu0 0.0
    %229 = vmatprep.subr.mxu0 0.0
    %230 = vmatpush1.xpose.msra.mxu0 0.0
    %231 = vmatprep.subr.mxu0 0.0
    %232 = vmatpush1.xpose.msra.mxu0 0.0
    %233 = vmatprep.subr.mxu0 0.0
    %234 = vmatpush1.xpose.msra.mxu0 0.0
    %235 = vmatprep.subr.mxu0 0.0
    %236 = vmatpush1.xpose.msra.mxu0 0.0
    %237 = vmatprep.subr.mxu0 0.0
    %238 = vmatpush1.xpose.msra.mxu0 0.0
    %239 = vmatprep.subr.mxu0 0.0
    %240 = vmatpush1.xpose.msra.mxu0 0.0
    %241 = vmatprep.subr.mxu0 0.0
    %242 = vmatpush1.xpose.msra.mxu0 0.0
    %243 = vmatprep.subr.mxu0 0.0
    %244 = vmatpush1.xpose.msra.mxu0 0.0
    %245 = vmatprep.subr.mxu0 0.0
    %246 = vmatpush1.xpose.msra.mxu0 0.0
    %247 = vmatprep.subr.mxu0 0.0
    %248 = vmatpush1.xpose.msra.mxu0 0.0
    %249 = vmatprep.subr.mxu0 0.0
    %250 = vmatpush1.xpose.msra.mxu0 0.0
    %251 = vmatprep.subr.mxu0 0.0
    %252 = vmatpush1.xpose.msra.mxu0 0.0
    %253 = vmatprep.subr.mxu0 0.0
    %254 = vmatpush1.xpose.msra.mxu0 0.0
    %255 = vmatprep.subr.mxu0 0.0
    %256 = vmatpush1.xpose.msra.mxu0 0.0
    %257 = vmatprep.subr.mxu0 0.0
    %258 = vmatpush1.xpose.msra.mxu0 0.0
    %259 = vmatprep.subr.mxu0 0.0
    %260 = vmatpush1.xpose.msra.mxu0 0.0
    %261 = vmatprep.subr.mxu0 0.0
    %262 = vmatpush1.xpose.msra.mxu0 0.0
    %263 = vmatprep.subr.mxu0 0.0
    %264 = vmatpush1.xpose.msra.mxu0 0.0
    %265 = vmatprep.subr.mxu0 0.0
    %266 = vmatpush1.xpose.msra.mxu0 0.0
    %267 = vmatprep.subr.mxu0 0.0
    %268 = vmatpush1.xpose.msra.mxu0 0.0
    %269 = vmatprep.subr.mxu0 0.0
    %270 = vmatpush1.xpose.msra.mxu0 0.0
    %271 = vmatprep.subr.mxu0 0.0
    %272 = vmatpush1.xpose.msra.mxu0 0.0
    %273 = vmatprep.mubr.f32.mxu0 0.0
    %274 = vmatmul.mubr.f32.gmra.mrb[0].mxu0 %v205
    %v275 = vpop.f32.mrb[0].mxu0
    %v276 = vadd.f32 0.0, %v275
    %v277 = vpop.f32.mrb[0].mxu0
    %278 = vdwg.mxu0
    %280 = vrot.lane.b32.xlu0 %v161, 64
    %v281 = vpop.permute.xlu0 %280
    %v282 = vsel %vm204, %v161, 0
    %v284 = vsel %vm204, %v281, 0
    %286 = vmatprep.subr.mxu0 0.0
    %287 = vmatpush1.xpose.msra.mxu0 %v284
    %288 = vmatprep.subr.mxu0 0.0
    %289 = vmatpush1.xpose.msra.mxu0 0.0
    %290 = vmatprep.subr.mxu0 0.0
    %291 = vmatpush1.xpose.msra.mxu0 0.0
    %292 = vmatprep.subr.mxu0 0.0
    %293 = vmatpush1.xpose.msra.mxu0 0.0
    %294 = vmatprep.subr.mxu0 0.0
    %295 = vmatpush1.xpose.msra.mxu0 0.0
    %296 = vmatprep.subr.mxu0 0.0
    %297 = vmatpush1.xpose.msra.mxu0 0.0
    %298 = vmatprep.subr.mxu0 0.0
    %299 = vmatpush1.xpose.msra.mxu0 0.0
    %300 = vmatprep.subr.mxu0 0.0
    %301 = vmatpush1.xpose.msra.mxu0 0.0
    %302 = vmatprep.subr.mxu0 0.0
    %303 = vmatpush1.xpose.msra.mxu0 0.0
    %304 = vmatprep.subr.mxu0 0.0
    %305 = vmatpush1.xpose.msra.mxu0 0.0
    %306 = vmatprep.subr.mxu0 0.0
    %307 = vmatpush1.xpose.msra.mxu0 0.0
    %308 = vmatprep.subr.mxu0 0.0
    %309 = vmatpush1.xpose.msra.mxu0 0.0
    %310 = vmatprep.subr.mxu0 0.0
    %311 = vmatpush1.xpose.msra.mxu0 0.0
    %312 = vmatprep.subr.mxu0 0.0
    %313 = vmatpush1.xpose.msra.mxu0 0.0
    %314 = vmatprep.subr.mxu0 0.0
    %315 = vmatpush1.xpose.msra.mxu0 0.0
    %316 = vmatprep.subr.mxu0 0.0
    %317 = vmatpush1.xpose.msra.mxu0 0.0
    %318 = vmatprep.subr.mxu0 0.0
    %319 = vmatpush1.xpose.msra.mxu0 0.0
    %320 = vmatprep.subr.mxu0 0.0
    %321 = vmatpush1.xpose.msra.mxu0 0.0
    %322 = vmatprep.subr.mxu0 0.0
    %323 = vmatpush1.xpose.msra.mxu0 0.0
    %324 = vmatprep.subr.mxu0 0.0
    %325 = vmatpush1.xpose.msra.mxu0 0.0
    %326 = vmatprep.subr.mxu0 0.0
    %327 = vmatpush1.xpose.msra.mxu0 0.0
    %328 = vmatprep.subr.mxu0 0.0
    %329 = vmatpush1.xpose.msra.mxu0 0.0
    %330 = vmatprep.subr.mxu0 0.0
    %331 = vmatpush1.xpose.msra.mxu0 0.0
    %332 = vmatprep.subr.mxu0 0.0
    %333 = vmatpush1.xpose.msra.mxu0 0.0
    %334 = vmatprep.subr.mxu0 0.0
    %335 = vmatpush1.xpose.msra.mxu0 0.0
    %336 = vmatprep.subr.mxu0 0.0
    %337 = vmatpush1.xpose.msra.mxu0 0.0
    %338 = vmatprep.subr.mxu0 0.0
    %339 = vmatpush1.xpose.msra.mxu0 0.0
    %340 = vmatprep.subr.mxu0 0.0
    %341 = vmatpush1.xpose.msra.mxu0 0.0
    %342 = vmatprep.subr.mxu0 0.0
    %343 = vmatpush1.xpose.msra.mxu0 0.0
    %344 = vmatprep.subr.mxu0 0.0
    %345 = vmatpush1.xpose.msra.mxu0 0.0
    %346 = vmatprep.subr.mxu0 0.0
    %347 = vmatpush1.xpose.msra.mxu0 0.0
    %348 = vmatprep.subr.mxu0 0.0
    %349 = vmatpush1.xpose.msra.mxu0 0.0
    %350 = vmatprep.mubr.f32.mxu0 0.0
    %351 = vmatmul.mubr.f32.gmra.mrb[0].mxu0 %v282
    %v352 = vpop.f32.mrb[0].mxu0
    %v353 = vadd.f32 0.0, %v352
    %v354 = vpop.f32.mrb[0].mxu0
    %355 = vdwg.mxu0
    %357 = vrot.lane.b32.xlu0 %v167, 64
    %v358 = vpop.permute.xlu0 %357
    %v359 = vsel %vm204, %v167, 0
    %v361 = vsel %vm204, %v358, 0
    %363 = vmatprep.subr.mxu0 0.0
    %364 = vmatpush1.xpose.msra.mxu0 %v361
    %365 = vmatprep.subr.mxu0 0.0
    %366 = vmatpush1.xpose.msra.mxu0 0.0
    %367 = vmatprep.subr.mxu0 0.0
    %368 = vmatpush1.xpose.msra.mxu0 0.0
    %369 = vmatprep.subr.mxu0 0.0
    %370 = vmatpush1.xpose.msra.mxu0 0.0
    %371 = vmatprep.subr.mxu0 0.0
    %372 = vmatpush1.xpose.msra.mxu0 0.0
    %373 = vmatprep.subr.mxu0 0.0
    %374 = vmatpush1.xpose.msra.mxu0 0.0
    %375 = vmatprep.subr.mxu0 0.0
    %376 = vmatpush1.xpose.msra.mxu0 0.0
    %377 = vmatprep.subr.mxu0 0.0
    %378 = vmatpush1.xpose.msra.mxu0 0.0
    %379 = vmatprep.subr.mxu0 0.0
    %380 = vmatpush1.xpose.msra.mxu0 0.0
    %381 = vmatprep.subr.mxu0 0.0
    %382 = vmatpush1.xpose.msra.mxu0 0.0
    %383 = vmatprep.subr.mxu0 0.0
    %384 = vmatpush1.xpose.msra.mxu0 0.0
    %385 = vmatprep.subr.mxu0 0.0
    %386 = vmatpush1.xpose.msra.mxu0 0.0
    %387 = vmatprep.subr.mxu0 0.0
    %388 = vmatpush1.xpose.msra.mxu0 0.0
    %389 = vmatprep.subr.mxu0 0.0
    %390 = vmatpush1.xpose.msra.mxu0 0.0
    %391 = vmatprep.subr.mxu0 0.0
    %392 = vmatpush1.xpose.msra.mxu0 0.0
    %393 = vmatprep.subr.mxu0 0.0
    %394 = vmatpush1.xpose.msra.mxu0 0.0
    %395 = vmatprep.subr.mxu0 0.0
    %396 = vmatpush1.xpose.msra.mxu0 0.0
    %397 = vmatprep.subr.mxu0 0.0
    %398 = vmatpush1.xpose.msra.mxu0 0.0
    %399 = vmatprep.subr.mxu0 0.0
    %400 = vmatpush1.xpose.msra.mxu0 0.0
    %401 = vmatprep.subr.mxu0 0.0
    %402 = vmatpush1.xpose.msra.mxu0 0.0
    %403 = vmatprep.subr.mxu0 0.0
    %404 = vmatpush1.xpose.msra.mxu0 0.0
    %405 = vmatprep.subr.mxu0 0.0
    %406 = vmatpush1.xpose.msra.mxu0 0.0
    %407 = vmatprep.subr.mxu0 0.0
    %408 = vmatpush1.xpose.msra.mxu0 0.0
    %409 = vmatprep.subr.mxu0 0.0
    %410 = vmatpush1.xpose.msra.mxu0 0.0
    %411 = vmatprep.subr.mxu0 0.0
    %412 = vmatpush1.xpose.msra.mxu0 0.0
    %413 = vmatprep.subr.mxu0 0.0
    %414 = vmatpush1.xpose.msra.mxu0 0.0
    %415 = vmatprep.subr.mxu0 0.0
    %416 = vmatpush1.xpose.msra.mxu0 0.0
    %417 = vmatprep.subr.mxu0 0.0
    %418 = vmatpush1.xpose.msra.mxu0 0.0
    %419 = vmatprep.subr.mxu0 0.0
    %420 = vmatpush1.xpose.msra.mxu0 0.0
    %421 = vmatprep.subr.mxu0 0.0
    %422 = vmatpush1.xpose.msra.mxu0 0.0
    %423 = vmatprep.subr.mxu0 0.0
    %424 = vmatpush1.xpose.msra.mxu0 0.0
    %425 = vmatprep.subr.mxu0 0.0
    %426 = vmatpush1.xpose.msra.mxu0 0.0
    %427 = vmatprep.mubr.f32.mxu0 0.0
    %428 = vmatmul.mubr.f32.gmra.mrb[0].mxu0 %v359
    %v429 = vpop.f32.mrb[0].mxu0
    %v430 = vadd.f32 0.0, %v429
    %v431 = vpop.f32.mrb[0].mxu0
    %432 = vdwg.mxu0
    %434 = vrot.lane.b32.xlu0 %v173, 64
    %v435 = vpop.permute.xlu0 %434
    %v436 = vsel %vm204, %v173, 0
    %v438 = vsel %vm204, %v435, 0
    %440 = vmatprep.subr.mxu0 0.0
    %441 = vmatpush1.xpose.msra.mxu0 %v438
    %442 = vmatprep.subr.mxu0 0.0
    %443 = vmatpush1.xpose.msra.mxu0 0.0
    %444 = vmatprep.subr.mxu0 0.0
    %445 = vmatpush1.xpose.msra.mxu0 0.0
    %446 = vmatprep.subr.mxu0 0.0
    %447 = vmatpush1.xpose.msra.mxu0 0.0
    %448 = vmatprep.subr.mxu0 0.0
    %449 = vmatpush1.xpose.msra.mxu0 0.0
    %450 = vmatprep.subr.mxu0 0.0
    %451 = vmatpush1.xpose.msra.mxu0 0.0
    %452 = vmatprep.subr.mxu0 0.0
    %453 = vmatpush1.xpose.msra.mxu0 0.0
    %454 = vmatprep.subr.mxu0 0.0
    %455 = vmatpush1.xpose.msra.mxu0 0.0
    %456 = vmatprep.subr.mxu0 0.0
    %457 = vmatpush1.xpose.msra.mxu0 0.0
    %458 = vmatprep.subr.mxu0 0.0
    %459 = vmatpush1.xpose.msra.mxu0 0.0
    %460 = vmatprep.subr.mxu0 0.0
    %461 = vmatpush1.xpose.msra.mxu0 0.0
    %462 = vmatprep.subr.mxu0 0.0
    %463 = vmatpush1.xpose.msra.mxu0 0.0
    %464 = vmatprep.subr.mxu0 0.0
    %465 = vmatpush1.xpose.msra.mxu0 0.0
    %466 = vmatprep.subr.mxu0 0.0
    %467 = vmatpush1.xpose.msra.mxu0 0.0
    %468 = vmatprep.subr.mxu0 0.0
    %469 = vmatpush1.xpose.msra.mxu0 0.0
    %470 = vmatprep.subr.mxu0 0.0
    %471 = vmatpush1.xpose.msra.mxu0 0.0
    %472 = vmatprep.subr.mxu0 0.0
    %473 = vmatpush1.xpose.msra.mxu0 0.0
    %474 = vmatprep.subr.mxu0 0.0
    %475 = vmatpush1.xpose.msra.mxu0 0.0
    %476 = vmatprep.subr.mxu0 0.0
    %477 = vmatpush1.xpose.msra.mxu0 0.0
    %478 = vmatprep.subr.mxu0 0.0
    %479 = vmatpush1.xpose.msra.mxu0 0.0
    %480 = vmatprep.subr.mxu0 0.0
    %481 = vmatpush1.xpose.msra.mxu0 0.0
    %482 = vmatprep.subr.mxu0 0.0
    %483 = vmatpush1.xpose.msra.mxu0 0.0
    %484 = vmatprep.subr.mxu0 0.0
    %485 = vmatpush1.xpose.msra.mxu0 0.0
    %486 = vmatprep.subr.mxu0 0.0
    %487 = vmatpush1.xpose.msra.mxu0 0.0
    %488 = vmatprep.subr.mxu0 0.0
    %489 = vmatpush1.xpose.msra.mxu0 0.0
    %490 = vmatprep.subr.mxu0 0.0
    %491 = vmatpush1.xpose.msra.mxu0 0.0
    %492 = vmatprep.subr.mxu0 0.0
    %493 = vmatpush1.xpose.msra.mxu0 0.0
    %494 = vmatprep.subr.mxu0 0.0
    %495 = vmatpush1.xpose.msra.mxu0 0.0
    %496 = vmatprep.subr.mxu0 0.0
    %497 = vmatpush1.xpose.msra.mxu0 0.0
    %498 = vmatprep.subr.mxu0 0.0
    %499 = vmatpush1.xpose.msra.mxu0 0.0
    %500 = vmatprep.subr.mxu0 0.0
    %501 = vmatpush1.xpose.msra.mxu0 0.0
    %502 = vmatprep.subr.mxu0 0.0
    %503 = vmatpush1.xpose.msra.mxu0 0.0
    %504 = vmatprep.mubr.f32.mxu0 0.0
    %505 = vmatmul.mubr.f32.gmra.mrb[0].mxu0 %v436
    %v506 = vpop.f32.mrb[0].mxu0
    %v507 = vadd.f32 0.0, %v506
    %v508 = vpop.f32.mrb[0].mxu0
    %509 = vdwg.mxu0
    %511 = vrot.lane.b32.xlu0 %v179, 64
    %v512 = vpop.permute.xlu0 %511
    %v513 = vsel %vm204, %v179, 0
    %v515 = vsel %vm204, %v512, 0
    %517 = vmatprep.subr.mxu0 0.0
    %518 = vmatpush1.xpose.msra.mxu0 %v515
    %519 = vmatprep.subr.mxu0 0.0
    %520 = vmatpush1.xpose.msra.mxu0 0.0
    %521 = vmatprep.subr.mxu0 0.0
    %522 = vmatpush1.xpose.msra.mxu0 0.0
    %523 = vmatprep.subr.mxu0 0.0
    %524 = vmatpush1.xpose.msra.mxu0 0.0
    %525 = vmatprep.subr.mxu0 0.0
    %526 = vmatpush1.xpose.msra.mxu0 0.0
    %527 = vmatprep.subr.mxu0 0.0
    %528 = vmatpush1.xpose.msra.mxu0 0.0
    %529 = vmatprep.subr.mxu0 0.0
    %530 = vmatpush1.xpose.msra.mxu0 0.0
    %531 = vmatprep.subr.mxu0 0.0
    %532 = vmatpush1.xpose.msra.mxu0 0.0
    %533 = vmatprep.subr.mxu0 0.0
    %534 = vmatpush1.xpose.msra.mxu0 0.0
    %535 = vmatprep.subr.mxu0 0.0
    %536 = vmatpush1.xpose.msra.mxu0 0.0
    %537 = vmatprep.subr.mxu0 0.0
    %538 = vmatpush1.xpose.msra.mxu0 0.0
    %539 = vmatprep.subr.mxu0 0.0
    %540 = vmatpush1.xpose.msra.mxu0 0.0
    %541 = vmatprep.subr.mxu0 0.0
    %542 = vmatpush1.xpose.msra.mxu0 0.0
    %543 = vmatprep.subr.mxu0 0.0
    %544 = vmatpush1.xpose.msra.mxu0 0.0
    %545 = vmatprep.subr.mxu0 0.0
    %546 = vmatpush1.xpose.msra.mxu0 0.0
    %547 = vmatprep.subr.mxu0 0.0
    %548 = vmatpush1.xpose.msra.mxu0 0.0
    %549 = vmatprep.subr.mxu0 0.0
    %550 = vmatpush1.xpose.msra.mxu0 0.0
    %551 = vmatprep.subr.mxu0 0.0
    %552 = vmatpush1.xpose.msra.mxu0 0.0
    %553 = vmatprep.subr.mxu0 0.0
    %554 = vmatpush1.xpose.msra.mxu0 0.0
    %555 = vmatprep.subr.mxu0 0.0
    %556 = vmatpush1.xpose.msra.mxu0 0.0
    %557 = vmatprep.subr.mxu0 0.0
    %558 = vmatpush1.xpose.msra.mxu0 0.0
    %559 = vmatprep.subr.mxu0 0.0
    %560 = vmatpush1.xpose.msra.mxu0 0.0
    %561 = vmatprep.subr.mxu0 0.0
    %562 = vmatpush1.xpose.msra.mxu0 0.0
    %563 = vmatprep.subr.mxu0 0.0
    %564 = vmatpush1.xpose.msra.mxu0 0.0
    %565 = vmatprep.subr.mxu0 0.0
    %566 = vmatpush1.xpose.msra.mxu0 0.0
    %567 = vmatprep.subr.mxu0 0.0
    %568 = vmatpush1.xpose.msra.mxu0 0.0
    %569 = vmatprep.subr.mxu0 0.0
    %570 = vmatpush1.xpose.msra.mxu0 0.0
    %571 = vmatprep.subr.mxu0 0.0
    %572 = vmatpush1.xpose.msra.mxu0 0.0
    %573 = vmatprep.subr.mxu0 0.0
    %574 = vmatpush1.xpose.msra.mxu0 0.0
    %575 = vmatprep.subr.mxu0 0.0
    %576 = vmatpush1.xpose.msra.mxu0 0.0
    %577 = vmatprep.subr.mxu0 0.0
    %578 = vmatpush1.xpose.msra.mxu0 0.0
    %579 = vmatprep.subr.mxu0 0.0
    %580 = vmatpush1.xpose.msra.mxu0 0.0
    %581 = vmatprep.mubr.f32.mxu0 0.0
    %582 = vmatmul.mubr.f32.gmra.mrb[0].mxu0 %v513
    %v583 = vpop.f32.mrb[0].mxu0
    %v584 = vadd.f32 0.0, %v583
    %v585 = vpop.f32.mrb[0].mxu0
    %586 = vdwg.mxu0
    %588 = vrot.lane.b32.xlu0 %v185, 64
    %v589 = vpop.permute.xlu0 %588
    %v590 = vsel %vm204, %v185, 0
    %v592 = vsel %vm204, %v589, 0
    %594 = vmatprep.subr.mxu0 0.0
    %595 = vmatpush1.xpose.msra.mxu0 %v592
    %596 = vmatprep.subr.mxu0 0.0
    %597 = vmatpush1.xpose.msra.mxu0 0.0
    %598 = vmatprep.subr.mxu0 0.0
    %599 = vmatpush1.xpose.msra.mxu0 0.0
    %600 = vmatprep.subr.mxu0 0.0
    %601 = vmatpush1.xpose.msra.mxu0 0.0
    %602 = vmatprep.subr.mxu0 0.0
    %603 = vmatpush1.xpose.msra.mxu0 0.0
    %604 = vmatprep.subr.mxu0 0.0
    %605 = vmatpush1.xpose.msra.mxu0 0.0
    %606 = vmatprep.subr.mxu0 0.0
    %607 = vmatpush1.xpose.msra.mxu0 0.0
    %608 = vmatprep.subr.mxu0 0.0
    %609 = vmatpush1.xpose.msra.mxu0 0.0
    %610 = vmatprep.subr.mxu0 0.0
    %611 = vmatpush1.xpose.msra.mxu0 0.0
    %612 = vmatprep.subr.mxu0 0.0
    %613 = vmatpush1.xpose.msra.mxu0 0.0
    %614 = vmatprep.subr.mxu0 0.0
    %615 = vmatpush1.xpose.msra.mxu0 0.0
    %616 = vmatprep.subr.mxu0 0.0
    %617 = vmatpush1.xpose.msra.mxu0 0.0
    %618 = vmatprep.subr.mxu0 0.0
    %619 = vmatpush1.xpose.msra.mxu0 0.0
    %620 = vmatprep.subr.mxu0 0.0
    %621 = vmatpush1.xpose.msra.mxu0 0.0
    %622 = vmatprep.subr.mxu0 0.0
    %623 = vmatpush1.xpose.msra.mxu0 0.0
    %624 = vmatprep.subr.mxu0 0.0
    %625 = vmatpush1.xpose.msra.mxu0 0.0
    %626 = vmatprep.subr.mxu0 0.0
    %627 = vmatpush1.xpose.msra.mxu0 0.0
    %628 = vmatprep.subr.mxu0 0.0
    %629 = vmatpush1.xpose.msra.mxu0 0.0
    %630 = vmatprep.subr.mxu0 0.0
    %631 = vmatpush1.xpose.msra.mxu0 0.0
    %632 = vmatprep.subr.mxu0 0.0
    %633 = vmatpush1.xpose.msra.mxu0 0.0
    %634 = vmatprep.subr.mxu0 0.0
    %635 = vmatpush1.xpose.msra.mxu0 0.0
    %636 = vmatprep.subr.mxu0 0.0
    %637 = vmatpush1.xpose.msra.mxu0 0.0
    %638 = vmatprep.subr.mxu0 0.0
    %639 = vmatpush1.xpose.msra.mxu0 0.0
    %640 = vmatprep.subr.mxu0 0.0
    %641 = vmatpush1.xpose.msra.mxu0 0.0
    %642 = vmatprep.subr.mxu0 0.0
    %643 = vmatpush1.xpose.msra.mxu0 0.0
    %644 = vmatprep.subr.mxu0 0.0
    %645 = vmatpush1.xpose.msra.mxu0 0.0
    %646 = vmatprep.subr.mxu0 0.0
    %647 = vmatpush1.xpose.msra.mxu0 0.0
    %648 = vmatprep.subr.mxu0 0.0
    %649 = vmatpush1.xpose.msra.mxu0 0.0
    %650 = vmatprep.subr.mxu0 0.0
    %651 = vmatpush1.xpose.msra.mxu0 0.0
    %652 = vmatprep.subr.mxu0 0.0
    %653 = vmatpush1.xpose.msra.mxu0 0.0
    %654 = vmatprep.subr.mxu0 0.0
    %655 = vmatpush1.xpose.msra.mxu0 0.0
    %656 = vmatprep.subr.mxu0 0.0
    %657 = vmatpush1.xpose.msra.mxu0 0.0
    %658 = vmatprep.mubr.f32.mxu0 0.0
    %659 = vmatmul.mubr.f32.gmra.mrb[0].mxu0 %v590
    %v660 = vpop.f32.mrb[0].mxu0
    %v661 = vadd.f32 0.0, %v660
    %v662 = vpop.f32.mrb[0].mxu0
    %663 = vdwg.mxu0
    %665 = vrot.lane.b32.xlu0 %v191, 64
    %v666 = vpop.permute.xlu0 %665
    %v667 = vsel %vm204, %v191, 0
    %v669 = vsel %vm204, %v666, 0
    %671 = vmatprep.subr.mxu0 0.0
    %672 = vmatpush1.xpose.msra.mxu0 %v669
    %673 = vmatprep.subr.mxu0 0.0
    %674 = vmatpush1.xpose.msra.mxu0 0.0
    %675 = vmatprep.subr.mxu0 0.0
    %676 = vmatpush1.xpose.msra.mxu0 0.0
    %677 = vmatprep.subr.mxu0 0.0
    %678 = vmatpush1.xpose.msra.mxu0 0.0
    %679 = vmatprep.subr.mxu0 0.0
    %680 = vmatpush1.xpose.msra.mxu0 0.0
    %681 = vmatprep.subr.mxu0 0.0
    %682 = vmatpush1.xpose.msra.mxu0 0.0
    %683 = vmatprep.subr.mxu0 0.0
    %684 = vmatpush1.xpose.msra.mxu0 0.0
    %685 = vmatprep.subr.mxu0 0.0
    %686 = vmatpush1.xpose.msra.mxu0 0.0
    %687 = vmatprep.subr.mxu0 0.0
    %688 = vmatpush1.xpose.msra.mxu0 0.0
    %689 = vmatprep.subr.mxu0 0.0
    %690 = vmatpush1.xpose.msra.mxu0 0.0
    %691 = vmatprep.subr.mxu0 0.0
    %692 = vmatpush1.xpose.msra.mxu0 0.0
    %693 = vmatprep.subr.mxu0 0.0
    %694 = vmatpush1.xpose.msra.mxu0 0.0
    %695 = vmatprep.subr.mxu0 0.0
    %696 = vmatpush1.xpose.msra.mxu0 0.0
    %697 = vmatprep.subr.mxu0 0.0
    %698 = vmatpush1.xpose.msra.mxu0 0.0
    %699 = vmatprep.subr.mxu0 0.0
    %700 = vmatpush1.xpose.msra.mxu0 0.0
    %701 = vmatprep.subr.mxu0 0.0
    %702 = vmatpush1.xpose.msra.mxu0 0.0
    %703 = vmatprep.subr.mxu0 0.0
    %704 = vmatpush1.xpose.msra.mxu0 0.0
    %705 = vmatprep.subr.mxu0 0.0
    %706 = vmatpush1.xpose.msra.mxu0 0.0
    %707 = vmatprep.subr.mxu0 0.0
    %708 = vmatpush1.xpose.msra.mxu0 0.0
    %709 = vmatprep.subr.mxu0 0.0
    %710 = vmatpush1.xpose.msra.mxu0 0.0
    %711 = vmatprep.subr.mxu0 0.0
    %712 = vmatpush1.xpose.msra.mxu0 0.0
    %713 = vmatprep.subr.mxu0 0.0
    %714 = vmatpush1.xpose.msra.mxu0 0.0
    %715 = vmatprep.subr.mxu0 0.0
    %716 = vmatpush1.xpose.msra.mxu0 0.0
    %717 = vmatprep.subr.mxu0 0.0
    %718 = vmatpush1.xpose.msra.mxu0 0.0
    %719 = vmatprep.subr.mxu0 0.0
    %720 = vmatpush1.xpose.msra.mxu0 0.0
    %721 = vmatprep.subr.mxu0 0.0
    %722 = vmatpush1.xpose.msra.mxu0 0.0
    %723 = vmatprep.subr.mxu0 0.0
    %724 = vmatpush1.xpose.msra.mxu0 0.0
    %725 = vmatprep.subr.mxu0 0.0
    %726 = vmatpush1.xpose.msra.mxu0 0.0
    %727 = vmatprep.subr.mxu0 0.0
    %728 = vmatpush1.xpose.msra.mxu0 0.0
    %729 = vmatprep.subr.mxu0 0.0
    %730 = vmatpush1.xpose.msra.mxu0 0.0
    %731 = vmatprep.subr.mxu0 0.0
    %732 = vmatpush1.xpose.msra.mxu0 0.0
    %733 = vmatprep.subr.mxu0 0.0
    %734 = vmatpush1.xpose.msra.mxu0 0.0
    %735 = vmatprep.mubr.f32.mxu0 0.0
    %736 = vmatmul.mubr.f32.gmra.mrb[0].mxu0 %v667
    %v737 = vpop.f32.mrb[0].mxu0
    %v738 = vadd.f32 0.0, %v737
    %v739 = vpop.f32.mrb[0].mxu0
    %740 = vdwg.mxu0
    %742 = vrot.lane.b32.xlu0 %v197, 64
    %v743 = vpop.permute.xlu0 %742
    %v744 = vsel %vm204, %v197, 0
    %v746 = vsel %vm204, %v743, 0
    %748 = vmatprep.subr.mxu0 0.0
    %749 = vmatpush1.xpose.msra.mxu0 %v746
    %750 = vmatprep.subr.mxu0 0.0
    %751 = vmatpush1.xpose.msra.mxu0 0.0
    %752 = vmatprep.subr.mxu0 0.0
    %753 = vmatpush1.xpose.msra.mxu0 0.0
    %754 = vmatprep.subr.mxu0 0.0
    %755 = vmatpush1.xpose.msra.mxu0 0.0
    %756 = vmatprep.subr.mxu0 0.0
    %757 = vmatpush1.xpose.msra.mxu0 0.0
    %758 = vmatprep.subr.mxu0 0.0
    %759 = vmatpush1.xpose.msra.mxu0 0.0
    %760 = vmatprep.subr.mxu0 0.0
    %761 = vmatpush1.xpose.msra.mxu0 0.0
    %762 = vmatprep.subr.mxu0 0.0
    %763 = vmatpush1.xpose.msra.mxu0 0.0
    %764 = vmatprep.subr.mxu0 0.0
    %765 = vmatpush1.xpose.msra.mxu0 0.0
    %766 = vmatprep.subr.mxu0 0.0
    %767 = vmatpush1.xpose.msra.mxu0 0.0
    %768 = vmatprep.subr.mxu0 0.0
    %769 = vmatpush1.xpose.msra.mxu0 0.0
    %770 = vmatprep.subr.mxu0 0.0
    %771 = vmatpush1.xpose.msra.mxu0 0.0
    %772 = vmatprep.subr.mxu0 0.0
    %773 = vmatpush1.xpose.msra.mxu0 0.0
    %774 = vmatprep.subr.mxu0 0.0
    %775 = vmatpush1.xpose.msra.mxu0 0.0
    %776 = vmatprep.subr.mxu0 0.0
    %777 = vmatpush1.xpose.msra.mxu0 0.0
    %778 = vmatprep.subr.mxu0 0.0
    %779 = vmatpush1.xpose.msra.mxu0 0.0
    %780 = vmatprep.subr.mxu0 0.0
    %781 = vmatpush1.xpose.msra.mxu0 0.0
    %782 = vmatprep.subr.mxu0 0.0
    %783 = vmatpush1.xpose.msra.mxu0 0.0
    %784 = vmatprep.subr.mxu0 0.0
    %785 = vmatpush1.xpose.msra.mxu0 0.0
    %786 = vmatprep.subr.mxu0 0.0
    %787 = vmatpush1.xpose.msra.mxu0 0.0
    %788 = vmatprep.subr.mxu0 0.0
    %789 = vmatpush1.xpose.msra.mxu0 0.0
    %790 = vmatprep.subr.mxu0 0.0
    %791 = vmatpush1.xpose.msra.mxu0 0.0
    %792 = vmatprep.subr.mxu0 0.0
    %793 = vmatpush1.xpose.msra.mxu0 0.0
    %794 = vmatprep.subr.mxu0 0.0
    %795 = vmatpush1.xpose.msra.mxu0 0.0
    %796 = vmatprep.subr.mxu0 0.0
    %797 = vmatpush1.xpose.msra.mxu0 0.0
    %798 = vmatprep.subr.mxu0 0.0
    %799 = vmatpush1.xpose.msra.mxu0 0.0
    %800 = vmatprep.subr.mxu0 0.0
    %801 = vmatpush1.xpose.msra.mxu0 0.0
    %802 = vmatprep.subr.mxu0 0.0
    %803 = vmatpush1.xpose.msra.mxu0 0.0
    %804 = vmatprep.subr.mxu0 0.0
    %805 = vmatpush1.xpose.msra.mxu0 0.0
    %806 = vmatprep.subr.mxu0 0.0
    %807 = vmatpush1.xpose.msra.mxu0 0.0
    %808 = vmatprep.subr.mxu0 0.0
    %809 = vmatpush1.xpose.msra.mxu0 0.0
    %810 = vmatprep.subr.mxu0 0.0
    %811 = vmatpush1.xpose.msra.mxu0 0.0
    %812 = vmatprep.mubr.f32.mxu0 0.0
    %813 = vmatmul.mubr.f32.gmra.mrb[0].mxu0 %v744
    %v814 = vpop.f32.mrb[0].mxu0
    %v815 = vadd.f32 0.0, %v814
    %v816 = vpop.f32.mrb[0].mxu0
    %817 = vdwg.mxu0
    %vm818 = vcmask 64512
    %v819 = vsel %vm818, %v276, -inf
    %820 = vmax.xlane.f32.xlu0 %v819
    %v821 = vpop.xlane.xlu0 %820
    %v822 = vsel %vm818, %v353, -inf
    %823 = vmax.xlane.f32.xlu0 %v822
    %v824 = vpop.xlane.xlu0 %823
    %v825 = vsel %vm818, %v430, -inf
    %826 = vmax.xlane.f32.xlu0 %v825
    %v827 = vpop.xlane.xlu0 %826
    %v828 = vsel %vm818, %v507, -inf
    %829 = vmax.xlane.f32.xlu0 %v828
    %v830 = vpop.xlane.xlu0 %829
    %v831 = vsel %vm818, %v584, -inf
    %832 = vmax.xlane.f32.xlu0 %v831
    %v833 = vpop.xlane.xlu0 %832
    %v834 = vsel %vm818, %v661, -inf
    %835 = vmax.xlane.f32.xlu0 %v834
    %v836 = vpop.xlane.xlu0 %835
    %v837 = vsel %vm818, %v738, -inf
    %838 = vmax.xlane.f32.xlu0 %v837
    %v839 = vpop.xlane.xlu0 %838
    %v840 = vsel %vm818, %v815, -inf
    %841 = vmax.xlane.f32.xlu0 %v840
    %v842 = vpop.xlane.xlu0 %841
    %v843 = vsub.f32 %v276, %v821
    %v844 = vsub.f32 %v353, %v824
    %v845 = vsub.f32 %v430, %v827
    %v846 = vsub.f32 %v507, %v830
    %v847 = vsub.f32 %v584, %v833
    %v848 = vsub.f32 %v661, %v836
    %v849 = vsub.f32 %v738, %v839
    %v850 = vsub.f32 %v815, %v842
    %v851 = vmul.f32 %v843, 1.442695
    %v852 = vpow.pop %v851
    %v853 = vmul.f32 %v844, 1.442695
    %v854 = vpow.pop %v853
    %v855 = vmul.f32 %v845, 1.442695
    %v856 = vpow.pop %v855
    %v857 = vmul.f32 %v846, 1.442695
    %v858 = vpow.pop %v857
    %v859 = vmul.f32 %v847, 1.442695
    %v860 = vpow.pop %v859
    %v861 = vmul.f32 %v848, 1.442695
    %v862 = vpow.pop %v861
    %v863 = vmul.f32 %v849, 1.442695
    %v864 = vpow.pop %v863
    %v865 = vmul.f32 %v850, 1.442695
    %v866 = vpow.pop %v865
    %v867 = vsel %vm818, %v852, 0.0
    %868 = vadd.xlane.f32.xlu0 %v867
    %v869 = vpop.xlane.xlu0 %868
    %v870 = vsel %vm818, %v854, 0.0
    %871 = vadd.xlane.f32.xlu0 %v870
    %v872 = vpop.xlane.xlu0 %871
    %v873 = vsel %vm818, %v856, 0.0
    %874 = vadd.xlane.f32.xlu0 %v873
    %v875 = vpop.xlane.xlu0 %874
    %v876 = vsel %vm818, %v858, 0.0
    %877 = vadd.xlane.f32.xlu0 %v876
    %v878 = vpop.xlane.xlu0 %877
    %v879 = vsel %vm818, %v860, 0.0
    %880 = vadd.xlane.f32.xlu0 %v879
    %v881 = vpop.xlane.xlu0 %880
    %v882 = vsel %vm818, %v862, 0.0
    %883 = vadd.xlane.f32.xlu0 %v882
    %v884 = vpop.xlane.xlu0 %883
    %v885 = vsel %vm818, %v864, 0.0
    %886 = vadd.xlane.f32.xlu0 %v885
    %v887 = vpop.xlane.xlu0 %886
    %v888 = vsel %vm818, %v866, 0.0
    %889 = vadd.xlane.f32.xlu0 %v888
    %v890 = vpop.xlane.xlu0 %889
    %v891 = vrcp.pop %v869
    %v892 = vrcp.pop %v872
    %v893 = vrcp.pop %v875
    %v894 = vrcp.pop %v878
    %v895 = vrcp.pop %v881
    %v896 = vrcp.pop %v884
    %v897 = vrcp.pop %v887
    %v898 = vrcp.pop %v890
    %v899 = vmul.f32 %v852, %v891
    %v900 = vmul.f32 %v854, %v892
    %v901 = vmul.f32 %v856, %v893
    %v902 = vmul.f32 %v858, %v894
    %v903 = vmul.f32 %v860, %v895
    %v904 = vmul.f32 %v862, %v896
    %v905 = vmul.f32 %v864, %v897
    %v906 = vmul.f32 %v866, %v898
    %v908 = vsel %vm818, %v899, 0
    %910 = vmatprep.subr.mxu0 0.0
    %911 = vmatpush1.msra.mxu0 %v157
    %912 = vmatprep.subr.mxu0 0.0
    %913 = vmatpush1.msra.mxu0 0.0
    %914 = vmatprep.subr.mxu0 0.0
    %915 = vmatpush1.msra.mxu0 0.0
    %916 = vmatprep.subr.mxu0 0.0
    %917 = vmatpush1.msra.mxu0 0.0
    %918 = vmatprep.subr.mxu0 0.0
    %919 = vmatpush1.msra.mxu0 0.0
    %920 = vmatprep.subr.mxu0 0.0
    %921 = vmatpush1.msra.mxu0 0.0
    %922 = vmatprep.subr.mxu0 0.0
    %923 = vmatpush1.msra.mxu0 0.0
    %924 = vmatprep.subr.mxu0 0.0
    %925 = vmatpush1.msra.mxu0 0.0
    %926 = vmatprep.subr.mxu0 0.0
    %927 = vmatpush1.msra.mxu0 0.0
    %928 = vmatprep.subr.mxu0 0.0
    %929 = vmatpush1.msra.mxu0 0.0
    %930 = vmatprep.subr.mxu0 0.0
    %931 = vmatpush1.msra.mxu0 0.0
    %932 = vmatprep.subr.mxu0 0.0
    %933 = vmatpush1.msra.mxu0 0.0
    %934 = vmatprep.subr.mxu0 0.0
    %935 = vmatpush1.msra.mxu0 0.0
    %936 = vmatprep.subr.mxu0 0.0
    %937 = vmatpush1.msra.mxu0 0.0
    %938 = vmatprep.subr.mxu0 0.0
    %939 = vmatpush1.msra.mxu0 0.0
    %940 = vmatprep.subr.mxu0 0.0
    %941 = vmatpush1.msra.mxu0 0.0
    %942 = vmatprep.subr.mxu0 0.0
    %943 = vmatpush1.msra.mxu0 0.0
    %944 = vmatprep.subr.mxu0 0.0
    %945 = vmatpush1.msra.mxu0 0.0
    %946 = vmatprep.subr.mxu0 0.0
    %947 = vmatpush1.msra.mxu0 0.0
    %948 = vmatprep.subr.mxu0 0.0
    %949 = vmatpush1.msra.mxu0 0.0
    %950 = vmatprep.subr.mxu0 0.0
    %951 = vmatpush1.msra.mxu0 0.0
    %952 = vmatprep.subr.mxu0 0.0
    %953 = vmatpush1.msra.mxu0 0.0
    %954 = vmatprep.subr.mxu0 0.0
    %955 = vmatpush1.msra.mxu0 0.0
    %956 = vmatprep.subr.mxu0 0.0
    %957 = vmatpush1.msra.mxu0 0.0
    %958 = vmatprep.subr.mxu0 0.0
    %959 = vmatpush1.msra.mxu0 0.0
    %960 = vmatprep.subr.mxu0 0.0
    %961 = vmatpush1.msra.mxu0 0.0
    %962 = vmatprep.subr.mxu0 0.0
    %963 = vmatpush1.msra.mxu0 0.0
    %964 = vmatprep.subr.mxu0 0.0
    %965 = vmatpush1.msra.mxu0 0.0
    %966 = vmatprep.subr.mxu0 0.0
    %967 = vmatpush1.msra.mxu0 0.0
    %968 = vmatprep.subr.mxu0 0.0
    %969 = vmatpush1.msra.mxu0 0.0
    %970 = vmatprep.subr.mxu0 0.0
    %971 = vmatpush1.msra.mxu0 0.0
    %972 = vmatprep.subr.mxu0 0.0
    %973 = vmatpush1.msra.mxu0 0.0
    %974 = vmatprep.mubr.f32.mxu0 0.0
    %975 = vmatmul.mubr.f32.gmra.mrb[0].mxu0 %v908
    %v976 = vpop.f32.mrb[0].mxu0
    %v977 = vadd.f32 0.0, %v976
    %v978 = vpop.f32.mrb[0].mxu0
    %979 = vdwg.mxu0
    %v981 = vsel %vm818, %v900, 0
    %983 = vmatprep.subr.mxu0 0.0
    %984 = vmatpush1.msra.mxu0 %v163
    %985 = vmatprep.subr.mxu0 0.0
    %986 = vmatpush1.msra.mxu0 0.0
    %987 = vmatprep.subr.mxu0 0.0
    %988 = vmatpush1.msra.mxu0 0.0
    %989 = vmatprep.subr.mxu0 0.0
    %990 = vmatpush1.msra.mxu0 0.0
    %991 = vmatprep.subr.mxu0 0.0
    %992 = vmatpush1.msra.mxu0 0.0
    %993 = vmatprep.subr.mxu0 0.0
    %994 = vmatpush1.msra.mxu0 0.0
    %995 = vmatprep.subr.mxu0 0.0
    %996 = vmatpush1.msra.mxu0 0.0
    %997 = vmatprep.subr.mxu0 0.0
    %998 = vmatpush1.msra.mxu0 0.0
    %999 = vmatprep.subr.mxu0 0.0
    %1000 = vmatpush1.msra.mxu0 0.0
    %1001 = vmatprep.subr.mxu0 0.0
    %1002 = vmatpush1.msra.mxu0 0.0
    %1003 = vmatprep.subr.mxu0 0.0
    %1004 = vmatpush1.msra.mxu0 0.0
    %1005 = vmatprep.subr.mxu0 0.0
    %1006 = vmatpush1.msra.mxu0 0.0
    %1007 = vmatprep.subr.mxu0 0.0
    %1008 = vmatpush1.msra.mxu0 0.0
    %1009 = vmatprep.subr.mxu0 0.0
    %1010 = vmatpush1.msra.mxu0 0.0
    %1011 = vmatprep.subr.mxu0 0.0
    %1012 = vmatpush1.msra.mxu0 0.0
    %1013 = vmatprep.subr.mxu0 0.0
    %1014 = vmatpush1.msra.mxu0 0.0
    %1015 = vmatprep.subr.mxu0 0.0
    %1016 = vmatpush1.msra.mxu0 0.0
    %1017 = vmatprep.subr.mxu0 0.0
    %1018 = vmatpush1.msra.mxu0 0.0
    %1019 = vmatprep.subr.mxu0 0.0
    %1020 = vmatpush1.msra.mxu0 0.0
    %1021 = vmatprep.subr.mxu0 0.0
    %1022 = vmatpush1.msra.mxu0 0.0
    %1023 = vmatprep.subr.mxu0 0.0
    %1024 = vmatpush1.msra.mxu0 0.0
    %1025 = vmatprep.subr.mxu0 0.0
    %1026 = vmatpush1.msra.mxu0 0.0
    %1027 = vmatprep.subr.mxu0 0.0
    %1028 = vmatpush1.msra.mxu0 0.0
    %1029 = vmatprep.subr.mxu0 0.0
    %1030 = vmatpush1.msra.mxu0 0.0
    %1031 = vmatprep.subr.mxu0 0.0
    %1032 = vmatpush1.msra.mxu0 0.0
    %1033 = vmatprep.subr.mxu0 0.0
    %1034 = vmatpush1.msra.mxu0 0.0
    %1035 = vmatprep.subr.mxu0 0.0
    %1036 = vmatpush1.msra.mxu0 0.0
    %1037 = vmatprep.subr.mxu0 0.0
    %1038 = vmatpush1.msra.mxu0 0.0
    %1039 = vmatprep.subr.mxu0 0.0
    %1040 = vmatpush1.msra.mxu0 0.0
    %1041 = vmatprep.subr.mxu0 0.0
    %1042 = vmatpush1.msra.mxu0 0.0
    %1043 = vmatprep.subr.mxu0 0.0
    %1044 = vmatpush1.msra.mxu0 0.0
    %1045 = vmatprep.subr.mxu0 0.0
    %1046 = vmatpush1.msra.mxu0 0.0
    %1047 = vmatprep.mubr.f32.mxu0 0.0
    %1048 = vmatmul.mubr.f32.gmra.mrb[0].mxu0 %v981
    %v1049 = vpop.f32.mrb[0].mxu0
    %v1050 = vadd.f32 0.0, %v1049
    %v1051 = vpop.f32.mrb[0].mxu0
    %1052 = vdwg.mxu0
    %v1054 = vsel %vm818, %v901, 0
    %1056 = vmatprep.subr.mxu0 0.0
    %1057 = vmatpush1.msra.mxu0 %v169
    %1058 = vmatprep.subr.mxu0 0.0
    %1059 = vmatpush1.msra.mxu0 0.0
    %1060 = vmatprep.subr.mxu0 0.0
    %1061 = vmatpush1.msra.mxu0 0.0
    %1062 = vmatprep.subr.mxu0 0.0
    %1063 = vmatpush1.msra.mxu0 0.0
    %1064 = vmatprep.subr.mxu0 0.0
    %1065 = vmatpush1.msra.mxu0 0.0
    %1066 = vmatprep.subr.mxu0 0.0
    %1067 = vmatpush1.msra.mxu0 0.0
    %1068 = vmatprep.subr.mxu0 0.0
    %1069 = vmatpush1.msra.mxu0 0.0
    %1070 = vmatprep.subr.mxu0 0.0
    %1071 = vmatpush1.msra.mxu0 0.0
    %1072 = vmatprep.subr.mxu0 0.0
    %1073 = vmatpush1.msra.mxu0 0.0
    %1074 = vmatprep.subr.mxu0 0.0
    %1075 = vmatpush1.msra.mxu0 0.0
    %1076 = vmatprep.subr.mxu0 0.0
    %1077 = vmatpush1.msra.mxu0 0.0
    %1078 = vmatprep.subr.mxu0 0.0
    %1079 = vmatpush1.msra.mxu0 0.0
    %1080 = vmatprep.subr.mxu0 0.0
    %1081 = vmatpush1.msra.mxu0 0.0
    %1082 = vmatprep.subr.mxu0 0.0
    %1083 = vmatpush1.msra.mxu0 0.0
    %1084 = vmatprep.subr.mxu0 0.0
    %1085 = vmatpush1.msra.mxu0 0.0
    %1086 = vmatprep.subr.mxu0 0.0
    %1087 = vmatpush1.msra.mxu0 0.0
    %1088 = vmatprep.subr.mxu0 0.0
    %1089 = vmatpush1.msra.mxu0 0.0
    %1090 = vmatprep.subr.mxu0 0.0
    %1091 = vmatpush1.msra.mxu0 0.0
    %1092 = vmatprep.subr.mxu0 0.0
    %1093 = vmatpush1.msra.mxu0 0.0
    %1094 = vmatprep.subr.mxu0 0.0
    %1095 = vmatpush1.msra.mxu0 0.0
    %1096 = vmatprep.subr.mxu0 0.0
    %1097 = vmatpush1.msra.mxu0 0.0
    %1098 = vmatprep.subr.mxu0 0.0
    %1099 = vmatpush1.msra.mxu0 0.0
    %1100 = vmatprep.subr.mxu0 0.0
    %1101 = vmatpush1.msra.mxu0 0.0
    %1102 = vmatprep.subr.mxu0 0.0
    %1103 = vmatpush1.msra.mxu0 0.0
    %1104 = vmatprep.subr.mxu0 0.0
    %1105 = vmatpush1.msra.mxu0 0.0
    %1106 = vmatprep.subr.mxu0 0.0
    %1107 = vmatpush1.msra.mxu0 0.0
    %1108 = vmatprep.subr.mxu0 0.0
    %1109 = vmatpush1.msra.mxu0 0.0
    %1110 = vmatprep.subr.mxu0 0.0
    %1111 = vmatpush1.msra.mxu0 0.0
    %1112 = vmatprep.subr.mxu0 0.0
    %1113 = vmatpush1.msra.mxu0 0.0
    %1114 = vmatprep.subr.mxu0 0.0
    %1115 = vmatpush1.msra.mxu0 0.0
    %1116 = vmatprep.subr.mxu0 0.0
    %1117 = vmatpush1.msra.mxu0 0.0
    %1118 = vmatprep.subr.mxu0 0.0
    %1119 = vmatpush1.msra.mxu0 0.0
    %1120 = vmatprep.mubr.f32.mxu0 0.0
    %1121 = vmatmul.mubr.f32.gmra.mrb[0].mxu0 %v1054
    %v1122 = vpop.f32.mrb[0].mxu0
    %v1123 = vadd.f32 0.0, %v1122
    %v1124 = vpop.f32.mrb[0].mxu0
    %1125 = vdwg.mxu0
    %v1127 = vsel %vm818, %v902, 0
    %1129 = vmatprep.subr.mxu0 0.0
    %1130 = vmatpush1.msra.mxu0 %v175
    %1131 = vmatprep.subr.mxu0 0.0
    %1132 = vmatpush1.msra.mxu0 0.0
    %1133 = vmatprep.subr.mxu0 0.0
    %1134 = vmatpush1.msra.mxu0 0.0
    %1135 = vmatprep.subr.mxu0 0.0
    %1136 = vmatpush1.msra.mxu0 0.0
    %1137 = vmatprep.subr.mxu0 0.0
    %1138 = vmatpush1.msra.mxu0 0.0
    %1139 = vmatprep.subr.mxu0 0.0
    %1140 = vmatpush1.msra.mxu0 0.0
    %1141 = vmatprep.subr.mxu0 0.0
    %1142 = vmatpush1.msra.mxu0 0.0
    %1143 = vmatprep.subr.mxu0 0.0
    %1144 = vmatpush1.msra.mxu0 0.0
    %1145 = vmatprep.subr.mxu0 0.0
    %1146 = vmatpush1.msra.mxu0 0.0
    %1147 = vmatprep.subr.mxu0 0.0
    %1148 = vmatpush1.msra.mxu0 0.0
    %1149 = vmatprep.subr.mxu0 0.0
    %1150 = vmatpush1.msra.mxu0 0.0
    %1151 = vmatprep.subr.mxu0 0.0
    %1152 = vmatpush1.msra.mxu0 0.0
    %1153 = vmatprep.subr.mxu0 0.0
    %1154 = vmatpush1.msra.mxu0 0.0
    %1155 = vmatprep.subr.mxu0 0.0
    %1156 = vmatpush1.msra.mxu0 0.0
    %1157 = vmatprep.subr.mxu0 0.0
    %1158 = vmatpush1.msra.mxu0 0.0
    %1159 = vmatprep.subr.mxu0 0.0
    %1160 = vmatpush1.msra.mxu0 0.0
    %1161 = vmatprep.subr.mxu0 0.0
    %1162 = vmatpush1.msra.mxu0 0.0
    %1163 = vmatprep.subr.mxu0 0.0
    %1164 = vmatpush1.msra.mxu0 0.0
    %1165 = vmatprep.subr.mxu0 0.0
    %1166 = vmatpush1.msra.mxu0 0.0
    %1167 = vmatprep.subr.mxu0 0.0
    %1168 = vmatpush1.msra.mxu0 0.0
    %1169 = vmatprep.subr.mxu0 0.0
    %1170 = vmatpush1.msra.mxu0 0.0
    %1171 = vmatprep.subr.mxu0 0.0
    %1172 = vmatpush1.msra.mxu0 0.0
    %1173 = vmatprep.subr.mxu0 0.0
    %1174 = vmatpush1.msra.mxu0 0.0
    %1175 = vmatprep.subr.mxu0 0.0
    %1176 = vmatpush1.msra.mxu0 0.0
    %1177 = vmatprep.subr.mxu0 0.0
    %1178 = vmatpush1.msra.mxu0 0.0
    %1179 = vmatprep.subr.mxu0 0.0
    %1180 = vmatpush1.msra.mxu0 0.0
    %1181 = vmatprep.subr.mxu0 0.0
    %1182 = vmatpush1.msra.mxu0 0.0
    %1183 = vmatprep.subr.mxu0 0.0
    %1184 = vmatpush1.msra.mxu0 0.0
    %1185 = vmatprep.subr.mxu0 0.0
    %1186 = vmatpush1.msra.mxu0 0.0
    %1187 = vmatprep.subr.mxu0 0.0
    %1188 = vmatpush1.msra.mxu0 0.0
    %1189 = vmatprep.subr.mxu0 0.0
    %1190 = vmatpush1.msra.mxu0 0.0
    %1191 = vmatprep.subr.mxu0 0.0
    %1192 = vmatpush1.msra.mxu0 0.0
    %1193 = vmatprep.mubr.f32.mxu0 0.0
    %1194 = vmatmul.mubr.f32.gmra.mrb[0].mxu0 %v1127
    %v1195 = vpop.f32.mrb[0].mxu0
    %v1196 = vadd.f32 0.0, %v1195
    %v1197 = vpop.f32.mrb[0].mxu0
    %1198 = vdwg.mxu0
    %v1200 = vsel %vm818, %v903, 0
    %1202 = vmatprep.subr.mxu0 0.0
    %1203 = vmatpush1.msra.mxu0 %v181
    %1204 = vmatprep.subr.mxu0 0.0
    %1205 = vmatpush1.msra.mxu0 0.0
    %1206 = vmatprep.subr.mxu0 0.0
    %1207 = vmatpush1.msra.mxu0 0.0
    %1208 = vmatprep.subr.mxu0 0.0
    %1209 = vmatpush1.msra.mxu0 0.0
    %1210 = vmatprep.subr.mxu0 0.0
    %1211 = vmatpush1.msra.mxu0 0.0
    %1212 = vmatprep.subr.mxu0 0.0
    %1213 = vmatpush1.msra.mxu0 0.0
    %1214 = vmatprep.subr.mxu0 0.0
    %1215 = vmatpush1.msra.mxu0 0.0
    %1216 = vmatprep.subr.mxu0 0.0
    %1217 = vmatpush1.msra.mxu0 0.0
    %1218 = vmatprep.subr.mxu0 0.0
    %1219 = vmatpush1.msra.mxu0 0.0
    %1220 = vmatprep.subr.mxu0 0.0
    %1221 = vmatpush1.msra.mxu0 0.0
    %1222 = vmatprep.subr.mxu0 0.0
    %1223 = vmatpush1.msra.mxu0 0.0
    %1224 = vmatprep.subr.mxu0 0.0
    %1225 = vmatpush1.msra.mxu0 0.0
    %1226 = vmatprep.subr.mxu0 0.0
    %1227 = vmatpush1.msra.mxu0 0.0
    %1228 = vmatprep.subr.mxu0 0.0
    %1229 = vmatpush1.msra.mxu0 0.0
    %1230 = vmatprep.subr.mxu0 0.0
    %1231 = vmatpush1.msra.mxu0 0.0
    %1232 = vmatprep.subr.mxu0 0.0
    %1233 = vmatpush1.msra.mxu0 0.0
    %1234 = vmatprep.subr.mxu0 0.0
    %1235 = vmatpush1.msra.mxu0 0.0
    %1236 = vmatprep.subr.mxu0 0.0
    %1237 = vmatpush1.msra.mxu0 0.0
    %1238 = vmatprep.subr.mxu0 0.0
    %1239 = vmatpush1.msra.mxu0 0.0
    %1240 = vmatprep.subr.mxu0 0.0
    %1241 = vmatpush1.msra.mxu0 0.0
    %1242 = vmatprep.subr.mxu0 0.0
    %1243 = vmatpush1.msra.mxu0 0.0
    %1244 = vmatprep.subr.mxu0 0.0
    %1245 = vmatpush1.msra.mxu0 0.0
    %1246 = vmatprep.subr.mxu0 0.0
    %1247 = vmatpush1.msra.mxu0 0.0
    %1248 = vmatprep.subr.mxu0 0.0
    %1249 = vmatpush1.msra.mxu0 0.0
    %1250 = vmatprep.subr.mxu0 0.0
    %1251 = vmatpush1.msra.mxu0 0.0
    %1252 = vmatprep.subr.mxu0 0.0
    %1253 = vmatpush1.msra.mxu0 0.0
    %1254 = vmatprep.subr.mxu0 0.0
    %1255 = vmatpush1.msra.mxu0 0.0
    %1256 = vmatprep.subr.mxu0 0.0
    %1257 = vmatpush1.msra.mxu0 0.0
    %1258 = vmatprep.subr.mxu0 0.0
    %1259 = vmatpush1.msra.mxu0 0.0
    %1260 = vmatprep.subr.mxu0 0.0
    %1261 = vmatpush1.msra.mxu0 0.0
    %1262 = vmatprep.subr.mxu0 0.0
    %1263 = vmatpush1.msra.mxu0 0.0
    %1264 = vmatprep.subr.mxu0 0.0
    %1265 = vmatpush1.msra.mxu0 0.0
    %1266 = vmatprep.mubr.f32.mxu0 0.0
    %1267 = vmatmul.mubr.f32.gmra.mrb[0].mxu0 %v1200
    %v1268 = vpop.f32.mrb[0].mxu0
    %v1269 = vadd.f32 0.0, %v1268
    %v1270 = vpop.f32.mrb[0].mxu0
    %1271 = vdwg.mxu0
    %v1273 = vsel %vm818, %v904, 0
    %1275 = vmatprep.subr.mxu0 0.0
    %1276 = vmatpush1.msra.mxu0 %v187
    %1277 = vmatprep.subr.mxu0 0.0
    %1278 = vmatpush1.msra.mxu0 0.0
    %1279 = vmatprep.subr.mxu0 0.0
    %1280 = vmatpush1.msra.mxu0 0.0
    %1281 = vmatprep.subr.mxu0 0.0
    %1282 = vmatpush1.msra.mxu0 0.0
    %1283 = vmatprep.subr.mxu0 0.0
    %1284 = vmatpush1.msra.mxu0 0.0
    %1285 = vmatprep.subr.mxu0 0.0
    %1286 = vmatpush1.msra.mxu0 0.0
    %1287 = vmatprep.subr.mxu0 0.0
    %1288 = vmatpush1.msra.mxu0 0.0
    %1289 = vmatprep.subr.mxu0 0.0
    %1290 = vmatpush1.msra.mxu0 0.0
    %1291 = vmatprep.subr.mxu0 0.0
    %1292 = vmatpush1.msra.mxu0 0.0
    %1293 = vmatprep.subr.mxu0 0.0
    %1294 = vmatpush1.msra.mxu0 0.0
    %1295 = vmatprep.subr.mxu0 0.0
    %1296 = vmatpush1.msra.mxu0 0.0
    %1297 = vmatprep.subr.mxu0 0.0
    %1298 = vmatpush1.msra.mxu0 0.0
    %1299 = vmatprep.subr.mxu0 0.0
    %1300 = vmatpush1.msra.mxu0 0.0
    %1301 = vmatprep.subr.mxu0 0.0
    %1302 = vmatpush1.msra.mxu0 0.0
    %1303 = vmatprep.subr.mxu0 0.0
    %1304 = vmatpush1.msra.mxu0 0.0
    %1305 = vmatprep.subr.mxu0 0.0
    %1306 = vmatpush1.msra.mxu0 0.0
    %1307 = vmatprep.subr.mxu0 0.0
    %1308 = vmatpush1.msra.mxu0 0.0
    %1309 = vmatprep.subr.mxu0 0.0
    %1310 = vmatpush1.msra.mxu0 0.0
    %1311 = vmatprep.subr.mxu0 0.0
    %1312 = vmatpush1.msra.mxu0 0.0
    %1313 = vmatprep.subr.mxu0 0.0
    %1314 = vmatpush1.msra.mxu0 0.0
    %1315 = vmatprep.subr.mxu0 0.0
    %1316 = vmatpush1.msra.mxu0 0.0
    %1317 = vmatprep.subr.mxu0 0.0
    %1318 = vmatpush1.msra.mxu0 0.0
    %1319 = vmatprep.subr.mxu0 0.0
    %1320 = vmatpush1.msra.mxu0 0.0
    %1321 = vmatprep.subr.mxu0 0.0
    %1322 = vmatpush1.msra.mxu0 0.0
    %1323 = vmatprep.subr.mxu0 0.0
    %1324 = vmatpush1.msra.mxu0 0.0
    %1325 = vmatprep.subr.mxu0 0.0
    %1326 = vmatpush1.msra.mxu0 0.0
    %1327 = vmatprep.subr.mxu0 0.0
    %1328 = vmatpush1.msra.mxu0 0.0
    %1329 = vmatprep.subr.mxu0 0.0
    %1330 = vmatpush1.msra.mxu0 0.0
    %1331 = vmatprep.subr.mxu0 0.0
    %1332 = vmatpush1.msra.mxu0 0.0
    %1333 = vmatprep.subr.mxu0 0.0
    %1334 = vmatpush1.msra.mxu0 0.0
    %1335 = vmatprep.subr.mxu0 0.0
    %1336 = vmatpush1.msra.mxu0 0.0
    %1337 = vmatprep.subr.mxu0 0.0
    %1338 = vmatpush1.msra.mxu0 0.0
    %1339 = vmatprep.mubr.f32.mxu0 0.0
    %1340 = vmatmul.mubr.f32.gmra.mrb[0].mxu0 %v1273
    %v1341 = vpop.f32.mrb[0].mxu0
    %v1342 = vadd.f32 0.0, %v1341
    %v1343 = vpop.f32.mrb[0].mxu0
    %1344 = vdwg.mxu0
    %v1346 = vsel %vm818, %v905, 0
    %1348 = vmatprep.subr.mxu0 0.0
    %1349 = vmatpush1.msra.mxu0 %v193
    %1350 = vmatprep.subr.mxu0 0.0
    %1351 = vmatpush1.msra.mxu0 0.0
    %1352 = vmatprep.subr.mxu0 0.0
    %1353 = vmatpush1.msra.mxu0 0.0
    %1354 = vmatprep.subr.mxu0 0.0
    %1355 = vmatpush1.msra.mxu0 0.0
    %1356 = vmatprep.subr.mxu0 0.0
    %1357 = vmatpush1.msra.mxu0 0.0
    %1358 = vmatprep.subr.mxu0 0.0
    %1359 = vmatpush1.msra.mxu0 0.0
    %1360 = vmatprep.subr.mxu0 0.0
    %1361 = vmatpush1.msra.mxu0 0.0
    %1362 = vmatprep.subr.mxu0 0.0
    %1363 = vmatpush1.msra.mxu0 0.0
    %1364 = vmatprep.subr.mxu0 0.0
    %1365 = vmatpush1.msra.mxu0 0.0
    %1366 = vmatprep.subr.mxu0 0.0
    %1367 = vmatpush1.msra.mxu0 0.0
    %1368 = vmatprep.subr.mxu0 0.0
    %1369 = vmatpush1.msra.mxu0 0.0
    %1370 = vmatprep.subr.mxu0 0.0
    %1371 = vmatpush1.msra.mxu0 0.0
    %1372 = vmatprep.subr.mxu0 0.0
    %1373 = vmatpush1.msra.mxu0 0.0
    %1374 = vmatprep.subr.mxu0 0.0
    %1375 = vmatpush1.msra.mxu0 0.0
    %1376 = vmatprep.subr.mxu0 0.0
    %1377 = vmatpush1.msra.mxu0 0.0
    %1378 = vmatprep.subr.mxu0 0.0
    %1379 = vmatpush1.msra.mxu0 0.0
    %1380 = vmatprep.subr.mxu0 0.0
    %1381 = vmatpush1.msra.mxu0 0.0
    %1382 = vmatprep.subr.mxu0 0.0
    %1383 = vmatpush1.msra.mxu0 0.0
    %1384 = vmatprep.subr.mxu0 0.0
    %1385 = vmatpush1.msra.mxu0 0.0
    %1386 = vmatprep.subr.mxu0 0.0
    %1387 = vmatpush1.msra.mxu0 0.0
    %1388 = vmatprep.subr.mxu0 0.0
    %1389 = vmatpush1.msra.mxu0 0.0
    %1390 = vmatprep.subr.mxu0 0.0
    %1391 = vmatpush1.msra.mxu0 0.0
    %1392 = vmatprep.subr.mxu0 0.0
    %1393 = vmatpush1.msra.mxu0 0.0
    %1394 = vmatprep.subr.mxu0 0.0
    %1395 = vmatpush1.msra.mxu0 0.0
    %1396 = vmatprep.subr.mxu0 0.0
    %1397 = vmatpush1.msra.mxu0 0.0
    %1398 = vmatprep.subr.mxu0 0.0
    %1399 = vmatpush1.msra.mxu0 0.0
    %1400 = vmatprep.subr.mxu0 0.0
    %1401 = vmatpush1.msra.mxu0 0.0
    %1402 = vmatprep.subr.mxu0 0.0
    %1403 = vmatpush1.msra.mxu0 0.0
    %1404 = vmatprep.subr.mxu0 0.0
    %1405 = vmatpush1.msra.mxu0 0.0
    %1406 = vmatprep.subr.mxu0 0.0
    %1407 = vmatpush1.msra.mxu0 0.0
    %1408 = vmatprep.subr.mxu0 0.0
    %1409 = vmatpush1.msra.mxu0 0.0
    %1410 = vmatprep.subr.mxu0 0.0
    %1411 = vmatpush1.msra.mxu0 0.0
    %1412 = vmatprep.mubr.f32.mxu0 0.0
    %1413 = vmatmul.mubr.f32.gmra.mrb[0].mxu0 %v1346
    %v1414 = vpop.f32.mrb[0].mxu0
    %v1415 = vadd.f32 0.0, %v1414
    %v1416 = vpop.f32.mrb[0].mxu0
    %1417 = vdwg.mxu0
    %v1419 = vsel %vm818, %v906, 0
    %1421 = vmatprep.subr.mxu0 0.0
    %1422 = vmatpush1.msra.mxu0 %v199
    %1423 = vmatprep.subr.mxu0 0.0
    %1424 = vmatpush1.msra.mxu0 0.0
    %1425 = vmatprep.subr.mxu0 0.0
    %1426 = vmatpush1.msra.mxu0 0.0
    %1427 = vmatprep.subr.mxu0 0.0
    %1428 = vmatpush1.msra.mxu0 0.0
    %1429 = vmatprep.subr.mxu0 0.0
    %1430 = vmatpush1.msra.mxu0 0.0
    %1431 = vmatprep.subr.mxu0 0.0
    %1432 = vmatpush1.msra.mxu0 0.0
    %1433 = vmatprep.subr.mxu0 0.0
    %1434 = vmatpush1.msra.mxu0 0.0
    %1435 = vmatprep.subr.mxu0 0.0
    %1436 = vmatpush1.msra.mxu0 0.0
    %1437 = vmatprep.subr.mxu0 0.0
    %1438 = vmatpush1.msra.mxu0 0.0
    %1439 = vmatprep.subr.mxu0 0.0
    %1440 = vmatpush1.msra.mxu0 0.0
    %1441 = vmatprep.subr.mxu0 0.0
    %1442 = vmatpush1.msra.mxu0 0.0
    %1443 = vmatprep.subr.mxu0 0.0
    %1444 = vmatpush1.msra.mxu0 0.0
    %1445 = vmatprep.subr.mxu0 0.0
    %1446 = vmatpush1.msra.mxu0 0.0
    %1447 = vmatprep.subr.mxu0 0.0
    %1448 = vmatpush1.msra.mxu0 0.0
    %1449 = vmatprep.subr.mxu0 0.0
    %1450 = vmatpush1.msra.mxu0 0.0
    %1451 = vmatprep.subr.mxu0 0.0
    %1452 = vmatpush1.msra.mxu0 0.0
    %1453 = vmatprep.subr.mxu0 0.0
    %1454 = vmatpush1.msra.mxu0 0.0
    %1455 = vmatprep.subr.mxu0 0.0
    %1456 = vmatpush1.msra.mxu0 0.0
    %1457 = vmatprep.subr.mxu0 0.0
    %1458 = vmatpush1.msra.mxu0 0.0
    %1459 = vmatprep.subr.mxu0 0.0
    %1460 = vmatpush1.msra.mxu0 0.0
    %1461 = vmatprep.subr.mxu0 0.0
    %1462 = vmatpush1.msra.mxu0 0.0
    %1463 = vmatprep.subr.mxu0 0.0
    %1464 = vmatpush1.msra.mxu0 0.0
    %1465 = vmatprep.subr.mxu0 0.0
    %1466 = vmatpush1.msra.mxu0 0.0
    %1467 = vmatprep.subr.mxu0 0.0
    %1468 = vmatpush1.msra.mxu0 0.0
    %1469 = vmatprep.subr.mxu0 0.0
    %1470 = vmatpush1.msra.mxu0 0.0
    %1471 = vmatprep.subr.mxu0 0.0
    %1472 = vmatpush1.msra.mxu0 0.0
    %1473 = vmatprep.subr.mxu0 0.0
    %1474 = vmatpush1.msra.mxu0 0.0
    %1475 = vmatprep.subr.mxu0 0.0
    %1476 = vmatpush1.msra.mxu0 0.0
    %1477 = vmatprep.subr.mxu0 0.0
    %1478 = vmatpush1.msra.mxu0 0.0
    %1479 = vmatprep.subr.mxu0 0.0
    %1480 = vmatpush1.msra.mxu0 0.0
    %1481 = vmatprep.subr.mxu0 0.0
    %1482 = vmatpush1.msra.mxu0 0.0
    %1483 = vmatprep.subr.mxu0 0.0
    %1484 = vmatpush1.msra.mxu0 0.0
    %1485 = vmatprep.mubr.f32.mxu0 0.0
    %1486 = vmatmul.mubr.f32.gmra.mrb[0].mxu0 %v1419
    %v1487 = vpop.f32.mrb[0].mxu0
    %v1488 = vadd.f32 0.0, %v1487
    %v1489 = vpop.f32.mrb[0].mxu0
    %1490 = vdwg.mxu0
    %v1491 = vsel %vm204, %v977, 0.0
    %v1492 = vrot.slane %v1491, 4
    %v1493 = vadd.f32 %v1491, %v1492
    %v1494 = vrot.slane %v1493, 2
    %v1495 = vadd.f32 %v1493, %v1494
    %v1496 = vrot.slane %v1495, 1
    %v1497 = vadd.f32 %v1495, %v1496
    %v1498 = vsel %vm204, %v1050, 0.0
    %v1499 = vrot.slane %v1498, 4
    %v1500 = vadd.f32 %v1498, %v1499
    %v1501 = vrot.slane %v1500, 2
    %v1502 = vadd.f32 %v1500, %v1501
    %v1503 = vrot.slane %v1502, 1
    %v1504 = vadd.f32 %v1502, %v1503
    %v1505 = vsel %vm204, %v1123, 0.0
    %v1506 = vrot.slane %v1505, 4
    %v1507 = vadd.f32 %v1505, %v1506
    %v1508 = vrot.slane %v1507, 2
    %v1509 = vadd.f32 %v1507, %v1508
    %v1510 = vrot.slane %v1509, 1
    %v1511 = vadd.f32 %v1509, %v1510
    %v1512 = vsel %vm204, %v1196, 0.0
    %v1513 = vrot.slane %v1512, 4
    %v1514 = vadd.f32 %v1512, %v1513
    %v1515 = vrot.slane %v1514, 2
    %v1516 = vadd.f32 %v1514, %v1515
    %v1517 = vrot.slane %v1516, 1
    %v1518 = vadd.f32 %v1516, %v1517
    %v1519 = vsel %vm204, %v1269, 0.0
    %v1520 = vrot.slane %v1519, 4
    %v1521 = vadd.f32 %v1519, %v1520
    %v1522 = vrot.slane %v1521, 2
    %v1523 = vadd.f32 %v1521, %v1522
    %v1524 = vrot.slane %v1523, 1
    %v1525 = vadd.f32 %v1523, %v1524
    %v1526 = vsel %vm204, %v1342, 0.0
    %v1527 = vrot.slane %v1526, 4
    %v1528 = vadd.f32 %v1526, %v1527
    %v1529 = vrot.slane %v1528, 2
    %v1530 = vadd.f32 %v1528, %v1529
    %v1531 = vrot.slane %v1530, 1
    %v1532 = vadd.f32 %v1530, %v1531
    %v1533 = vsel %vm204, %v1415, 0.0
    %v1534 = vrot.slane %v1533, 4
    %v1535 = vadd.f32 %v1533, %v1534
    %v1536 = vrot.slane %v1535, 2
    %v1537 = vadd.f32 %v1535, %v1536
    %v1538 = vrot.slane %v1537, 1
    %v1539 = vadd.f32 %v1537, %v1538
    %v1540 = vsel %vm204, %v1488, 0.0
    %v1541 = vrot.slane %v1540, 4
    %v1542 = vadd.f32 %v1540, %v1541
    %v1543 = vrot.slane %v1542, 2
    %v1544 = vadd.f32 %v1542, %v1543
    %v1545 = vrot.slane %v1544, 1
    %v1546 = vadd.f32 %v1544, %v1545
    %v1547 = vrcp.pop 8.0
    %v1548 = vmul.f32 %v1497, %v1547
    %v1549 = vmul.f32 %v1504, %v1547
    %v1550 = vmul.f32 %v1511, %v1547
    %v1551 = vmul.f32 %v1518, %v1547
    %v1552 = vmul.f32 %v1525, %v1547
    %v1553 = vmul.f32 %v1532, %v1547
    %v1554 = vmul.f32 %v1539, %v1547
    %v1555 = vmul.f32 %v1546, %v1547
    %1556 = vrot.lane.b32.xlu0 %v155, 112
    %v1557 = vpop.permute.xlu0 %1556
    %1558 = vrot.lane.b32.xlu0 %v155, 48
    %v1559 = vpop.permute.xlu0 %1558
    %v1560 = vsel %vm204, %v1557, 0
    %v1562 = vsel %vm204, %v1559, 0
    %1564 = vmatprep.subr.mxu0 0.0
    %1565 = vmatpush1.xpose.msra.mxu0 %v1562
    %1566 = vmatprep.subr.mxu0 0.0
    %1567 = vmatpush1.xpose.msra.mxu0 0.0
    %1568 = vmatprep.subr.mxu0 0.0
    %1569 = vmatpush1.xpose.msra.mxu0 0.0
    %1570 = vmatprep.subr.mxu0 0.0
    %1571 = vmatpush1.xpose.msra.mxu0 0.0
    %1572 = vmatprep.subr.mxu0 0.0
    %1573 = vmatpush1.xpose.msra.mxu0 0.0
    %1574 = vmatprep.subr.mxu0 0.0
    %1575 = vmatpush1.xpose.msra.mxu0 0.0
    %1576 = vmatprep.subr.mxu0 0.0
    %1577 = vmatpush1.xpose.msra.mxu0 0.0
    %1578 = vmatprep.subr.mxu0 0.0
    %1579 = vmatpush1.xpose.msra.mxu0 0.0
    %1580 = vmatprep.subr.mxu0 0.0
    %1581 = vmatpush1.xpose.msra.mxu0 0.0
    %1582 = vmatprep.subr.mxu0 0.0
    %1583 = vmatpush1.xpose.msra.mxu0 0.0
    %1584 = vmatprep.subr.mxu0 0.0
    %1585 = vmatpush1.xpose.msra.mxu0 0.0
    %1586 = vmatprep.subr.mxu0 0.0
    %1587 = vmatpush1.xpose.msra.mxu0 0.0
    %1588 = vmatprep.subr.mxu0 0.0
    %1589 = vmatpush1.xpose.msra.mxu0 0.0
    %1590 = vmatprep.subr.mxu0 0.0
    %1591 = vmatpush1.xpose.msra.mxu0 0.0
    %1592 = vmatprep.subr.mxu0 0.0
    %1593 = vmatpush1.xpose.msra.mxu0 0.0
    %1594 = vmatprep.subr.mxu0 0.0
    %1595 = vmatpush1.xpose.msra.mxu0 0.0
    %1596 = vmatprep.subr.mxu0 0.0
    %1597 = vmatpush1.xpose.msra.mxu0 0.0
    %1598 = vmatprep.subr.mxu0 0.0
    %1599 = vmatpush1.xpose.msra.mxu0 0.0
    %1600 = vmatprep.subr.mxu0 0.0
    %1601 = vmatpush1.xpose.msra.mxu0 0.0
    %1602 = vmatprep.subr.mxu0 0.0
    %1603 = vmatpush1.xpose.msra.mxu0 0.0
    %1604 = vmatprep.subr.mxu0 0.0
    %1605 = vmatpush1.xpose.msra.mxu0 0.0
    %1606 = vmatprep.subr.mxu0 0.0
    %1607 = vmatpush1.xpose.msra.mxu0 0.0
    %1608 = vmatprep.subr.mxu0 0.0
    %1609 = vmatpush1.xpose.msra.mxu0 0.0
    %1610 = vmatprep.subr.mxu0 0.0
    %1611 = vmatpush1.xpose.msra.mxu0 0.0
    %1612 = vmatprep.subr.mxu0 0.0
    %1613 = vmatpush1.xpose.msra.mxu0 0.0
    %1614 = vmatprep.subr.mxu0 0.0
    %1615 = vmatpush1.xpose.msra.mxu0 0.0
    %1616 = vmatprep.subr.mxu0 0.0
    %1617 = vmatpush1.xpose.msra.mxu0 0.0
    %1618 = vmatprep.subr.mxu0 0.0
    %1619 = vmatpush1.xpose.msra.mxu0 0.0
    %1620 = vmatprep.subr.mxu0 0.0
    %1621 = vmatpush1.xpose.msra.mxu0 0.0
    %1622 = vmatprep.subr.mxu0 0.0
    %1623 = vmatpush1.xpose.msra.mxu0 0.0
    %1624 = vmatprep.subr.mxu0 0.0
    %1625 = vmatpush1.xpose.msra.mxu0 0.0
    %1626 = vmatprep.subr.mxu0 0.0
    %1627 = vmatpush1.xpose.msra.mxu0 0.0
    %1628 = vmatprep.mubr.f32.mxu0 0.0
    %1629 = vmatmul.mubr.f32.gmra.mrb[0].mxu0 %v1560
    %v1630 = vpop.f32.mrb[0].mxu0
    %v1631 = vadd.f32 0.0, %v1630
    %v1632 = vpop.f32.mrb[0].mxu0
    %1633 = vdwg.mxu0
    %1634 = vrot.lane.b32.xlu0 %v161, 112
    %v1635 = vpop.permute.xlu0 %1634
    %1636 = vrot.lane.b32.xlu0 %v161, 48
    %v1637 = vpop.permute.xlu0 %1636
    %v1638 = vsel %vm204, %v1635, 0
    %v1640 = vsel %vm204, %v1637, 0
    %1642 = vmatprep.subr.mxu0 0.0
    %1643 = vmatpush1.xpose.msra.mxu0 %v1640
    %1644 = vmatprep.subr.mxu0 0.0
    %1645 = vmatpush1.xpose.msra.mxu0 0.0
    %1646 = vmatprep.subr.mxu0 0.0
    %1647 = vmatpush1.xpose.msra.mxu0 0.0
    %1648 = vmatprep.subr.mxu0 0.0
    %1649 = vmatpush1.xpose.msra.mxu0 0.0
    %1650 = vmatprep.subr.mxu0 0.0
    %1651 = vmatpush1.xpose.msra.mxu0 0.0
    %1652 = vmatprep.subr.mxu0 0.0
    %1653 = vmatpush1.xpose.msra.mxu0 0.0
    %1654 = vmatprep.subr.mxu0 0.0
    %1655 = vmatpush1.xpose.msra.mxu0 0.0
    %1656 = vmatprep.subr.mxu0 0.0
    %1657 = vmatpush1.xpose.msra.mxu0 0.0
    %1658 = vmatprep.subr.mxu0 0.0
    %1659 = vmatpush1.xpose.msra.mxu0 0.0
    %1660 = vmatprep.subr.mxu0 0.0
    %1661 = vmatpush1.xpose.msra.mxu0 0.0
    %1662 = vmatprep.subr.mxu0 0.0
    %1663 = vmatpush1.xpose.msra.mxu0 0.0
    %1664 = vmatprep.subr.mxu0 0.0
    %1665 = vmatpush1.xpose.msra.mxu0 0.0
    %1666 = vmatprep.subr.mxu0 0.0
    %1667 = vmatpush1.xpose.msra.mxu0 0.0
    %1668 = vmatprep.subr.mxu0 0.0
    %1669 = vmatpush1.xpose.msra.mxu0 0.0
    %1670 = vmatprep.subr.mxu0 0.0
    %1671 = vmatpush1.xpose.msra.mxu0 0.0
    %1672 = vmatprep.subr.mxu0 0.0
    %1673 = vmatpush1.xpose.msra.mxu0 0.0
    %1674 = vmatprep.subr.mxu0 0.0
    %1675 = vmatpush1.xpose.msra.mxu0 0.0
    %1676 = vmatprep.subr.mxu0 0.0
    %1677 = vmatpush1.xpose.msra.mxu0 0.0
    %1678 = vmatprep.subr.mxu0 0.0
    %1679 = vmatpush1.xpose.msra.mxu0 0.0
    %1680 = vmatprep.subr.mxu0 0.0
    %1681 = vmatpush1.xpose.msra.mxu0 0.0
    %1682 = vmatprep.subr.mxu0 0.0
    %1683 = vmatpush1.xpose.msra.mxu0 0.0
    %1684 = vmatprep.subr.mxu0 0.0
    %1685 = vmatpush1.xpose.msra.mxu0 0.0
    %1686 = vmatprep.subr.mxu0 0.0
    %1687 = vmatpush1.xpose.msra.mxu0 0.0
    %1688 = vmatprep.subr.mxu0 0.0
    %1689 = vmatpush1.xpose.msra.mxu0 0.0
    %1690 = vmatprep.subr.mxu0 0.0
    %1691 = vmatpush1.xpose.msra.mxu0 0.0
    %1692 = vmatprep.subr.mxu0 0.0
    %1693 = vmatpush1.xpose.msra.mxu0 0.0
    %1694 = vmatprep.subr.mxu0 0.0
    %1695 = vmatpush1.xpose.msra.mxu0 0.0
    %1696 = vmatprep.subr.mxu0 0.0
    %1697 = vmatpush1.xpose.msra.mxu0 0.0
    %1698 = vmatprep.subr.mxu0 0.0
    %1699 = vmatpush1.xpose.msra.mxu0 0.0
    %1700 = vmatprep.subr.mxu0 0.0
    %1701 = vmatpush1.xpose.msra.mxu0 0.0
    %1702 = vmatprep.subr.mxu0 0.0
    %1703 = vmatpush1.xpose.msra.mxu0 0.0
    %1704 = vmatprep.subr.mxu0 0.0
    %1705 = vmatpush1.xpose.msra.mxu0 0.0
    %1706 = vmatprep.mubr.f32.mxu0 0.0
    %1707 = vmatmul.mubr.f32.gmra.mrb[0].mxu0 %v1638
    %v1708 = vpop.f32.mrb[0].mxu0
    %v1709 = vadd.f32 0.0, %v1708
    %v1710 = vpop.f32.mrb[0].mxu0
    %1711 = vdwg.mxu0
    %1712 = vrot.lane.b32.xlu0 %v167, 112
    %v1713 = vpop.permute.xlu0 %1712
    %1714 = vrot.lane.b32.xlu0 %v167, 48
    %v1715 = vpop.permute.xlu0 %1714
    %v1716 = vsel %vm204, %v1713, 0
    %v1718 = vsel %vm204, %v1715, 0
    %1720 = vmatprep.subr.mxu0 0.0
    %1721 = vmatpush1.xpose.msra.mxu0 %v1718
    %1722 = vmatprep.subr.mxu0 0.0
    %1723 = vmatpush1.xpose.msra.mxu0 0.0
    %1724 = vmatprep.subr.mxu0 0.0
    %1725 = vmatpush1.xpose.msra.mxu0 0.0
    %1726 = vmatprep.subr.mxu0 0.0
    %1727 = vmatpush1.xpose.msra.mxu0 0.0
    %1728 = vmatprep.subr.mxu0 0.0
    %1729 = vmatpush1.xpose.msra.mxu0 0.0
    %1730 = vmatprep.subr.mxu0 0.0
    %1731 = vmatpush1.xpose.msra.mxu0 0.0
    %1732 = vmatprep.subr.mxu0 0.0
    %1733 = vmatpush1.xpose.msra.mxu0 0.0
    %1734 = vmatprep.subr.mxu0 0.0
    %1735 = vmatpush1.xpose.msra.mxu0 0.0
    %1736 = vmatprep.subr.mxu0 0.0
    %1737 = vmatpush1.xpose.msra.mxu0 0.0
    %1738 = vmatprep.subr.mxu0 0.0
    %1739 = vmatpush1.xpose.msra.mxu0 0.0
    %1740 = vmatprep.subr.mxu0 0.0
    %1741 = vmatpush1.xpose.msra.mxu0 0.0
    %1742 = vmatprep.subr.mxu0 0.0
    %1743 = vmatpush1.xpose.msra.mxu0 0.0
    %1744 = vmatprep.subr.mxu0 0.0
    %1745 = vmatpush1.xpose.msra.mxu0 0.0
    %1746 = vmatprep.subr.mxu0 0.0
    %1747 = vmatpush1.xpose.msra.mxu0 0.0
    %1748 = vmatprep.subr.mxu0 0.0
    %1749 = vmatpush1.xpose.msra.mxu0 0.0
    %1750 = vmatprep.subr.mxu0 0.0
    %1751 = vmatpush1.xpose.msra.mxu0 0.0
    %1752 = vmatprep.subr.mxu0 0.0
    %1753 = vmatpush1.xpose.msra.mxu0 0.0
    %1754 = vmatprep.subr.mxu0 0.0
    %1755 = vmatpush1.xpose.msra.mxu0 0.0
    %1756 = vmatprep.subr.mxu0 0.0
    %1757 = vmatpush1.xpose.msra.mxu0 0.0
    %1758 = vmatprep.subr.mxu0 0.0
    %1759 = vmatpush1.xpose.msra.mxu0 0.0
    %1760 = vmatprep.subr.mxu0 0.0
    %1761 = vmatpush1.xpose.msra.mxu0 0.0
    %1762 = vmatprep.subr.mxu0 0.0
    %1763 = vmatpush1.xpose.msra.mxu0 0.0
    %1764 = vmatprep.subr.mxu0 0.0
    %1765 = vmatpush1.xpose.msra.mxu0 0.0
    %1766 = vmatprep.subr.mxu0 0.0
    %1767 = vmatpush1.xpose.msra.mxu0 0.0
    %1768 = vmatprep.subr.mxu0 0.0
    %1769 = vmatpush1.xpose.msra.mxu0 0.0
    %1770 = vmatprep.subr.mxu0 0.0
    %1771 = vmatpush1.xpose.msra.mxu0 0.0
    %1772 = vmatprep.subr.mxu0 0.0
    %1773 = vmatpush1.xpose.msra.mxu0 0.0
    %1774 = vmatprep.subr.mxu0 0.0
    %1775 = vmatpush1.xpose.msra.mxu0 0.0
    %1776 = vmatprep.subr.mxu0 0.0
    %1777 = vmatpush1.xpose.msra.mxu0 0.0
    %1778 = vmatprep.subr.mxu0 0.0
    %1779 = vmatpush1.xpose.msra.mxu0 0.0
    %1780 = vmatprep.subr.mxu0 0.0
    %1781 = vmatpush1.xpose.msra.mxu0 0.0
    %1782 = vmatprep.subr.mxu0 0.0
    %1783 = vmatpush1.xpose.msra.mxu0 0.0
    %1784 = vmatprep.mubr.f32.mxu0 0.0
    %1785 = vmatmul.mubr.f32.gmra.mrb[0].mxu0 %v1716
    %v1786 = vpop.f32.mrb[0].mxu0
    %v1787 = vadd.f32 0.0, %v1786
    %v1788 = vpop.f32.mrb[0].mxu0
    %1789 = vdwg.mxu0
    %1790 = vrot.lane.b32.xlu0 %v173, 112
    %v1791 = vpop.permute.xlu0 %1790
    %1792 = vrot.lane.b32.xlu0 %v173, 48
    %v1793 = vpop.permute.xlu0 %1792
    %v1794 = vsel %vm204, %v1791, 0
    %v1796 = vsel %vm204, %v1793, 0
    %1798 = vmatprep.subr.mxu0 0.0
    %1799 = vmatpush1.xpose.msra.mxu0 %v1796
    %1800 = vmatprep.subr.mxu0 0.0
    %1801 = vmatpush1.xpose.msra.mxu0 0.0
    %1802 = vmatprep.subr.mxu0 0.0
    %1803 = vmatpush1.xpose.msra.mxu0 0.0
    %1804 = vmatprep.subr.mxu0 0.0
    %1805 = vmatpush1.xpose.msra.mxu0 0.0
    %1806 = vmatprep.subr.mxu0 0.0
    %1807 = vmatpush1.xpose.msra.mxu0 0.0
    %1808 = vmatprep.subr.mxu0 0.0
    %1809 = vmatpush1.xpose.msra.mxu0 0.0
    %1810 = vmatprep.subr.mxu0 0.0
    %1811 = vmatpush1.xpose.msra.mxu0 0.0
    %1812 = vmatprep.subr.mxu0 0.0
    %1813 = vmatpush1.xpose.msra.mxu0 0.0
    %1814 = vmatprep.subr.mxu0 0.0
    %1815 = vmatpush1.xpose.msra.mxu0 0.0
    %1816 = vmatprep.subr.mxu0 0.0
    %1817 = vmatpush1.xpose.msra.mxu0 0.0
    %1818 = vmatprep.subr.mxu0 0.0
    %1819 = vmatpush1.xpose.msra.mxu0 0.0
    %1820 = vmatprep.subr.mxu0 0.0
    %1821 = vmatpush1.xpose.msra.mxu0 0.0
    %1822 = vmatprep.subr.mxu0 0.0
    %1823 = vmatpush1.xpose.msra.mxu0 0.0
    %1824 = vmatprep.subr.mxu0 0.0
    %1825 = vmatpush1.xpose.msra.mxu0 0.0
    %1826 = vmatprep.subr.mxu0 0.0
    %1827 = vmatpush1.xpose.msra.mxu0 0.0
    %1828 = vmatprep.subr.mxu0 0.0
    %1829 = vmatpush1.xpose.msra.mxu0 0.0
    %1830 = vmatprep.subr.mxu0 0.0
    %1831 = vmatpush1.xpose.msra.mxu0 0.0
    %1832 = vmatprep.subr.mxu0 0.0
    %1833 = vmatpush1.xpose.msra.mxu0 0.0
    %1834 = vmatprep.subr.mxu0 0.0
    %1835 = vmatpush1.xpose.msra.mxu0 0.0
    %1836 = vmatprep.subr.mxu0 0.0
    %1837 = vmatpush1.xpose.msra.mxu0 0.0
    %1838 = vmatprep.subr.mxu0 0.0
    %1839 = vmatpush1.xpose.msra.mxu0 0.0
    %1840 = vmatprep.subr.mxu0 0.0
    %1841 = vmatpush1.xpose.msra.mxu0 0.0
    %1842 = vmatprep.subr.mxu0 0.0
    %1843 = vmatpush1.xpose.msra.mxu0 0.0
    %1844 = vmatprep.subr.mxu0 0.0
    %1845 = vmatpush1.xpose.msra.mxu0 0.0
    %1846 = vmatprep.subr.mxu0 0.0
    %1847 = vmatpush1.xpose.msra.mxu0 0.0
    %1848 = vmatprep.subr.mxu0 0.0
    %1849 = vmatpush1.xpose.msra.mxu0 0.0
    %1850 = vmatprep.subr.mxu0 0.0
    %1851 = vmatpush1.xpose.msra.mxu0 0.0
    %1852 = vmatprep.subr.mxu0 0.0
    %1853 = vmatpush1.xpose.msra.mxu0 0.0
    %1854 = vmatprep.subr.mxu0 0.0
    %1855 = vmatpush1.xpose.msra.mxu0 0.0
    %1856 = vmatprep.subr.mxu0 0.0
    %1857 = vmatpush1.xpose.msra.mxu0 0.0
    %1858 = vmatprep.subr.mxu0 0.0
    %1859 = vmatpush1.xpose.msra.mxu0 0.0
    %1860 = vmatprep.subr.mxu0 0.0
    %1861 = vmatpush1.xpose.msra.mxu0 0.0
    %1862 = vmatprep.mubr.f32.mxu0 0.0
    %1863 = vmatmul.mubr.f32.gmra.mrb[0].mxu0 %v1794
    %v1864 = vpop.f32.mrb[0].mxu0
    %v1865 = vadd.f32 0.0, %v1864
    %v1866 = vpop.f32.mrb[0].mxu0
    %1867 = vdwg.mxu0
    %1868 = vrot.lane.b32.xlu0 %v179, 112
    %v1869 = vpop.permute.xlu0 %1868
    %1870 = vrot.lane.b32.xlu0 %v179, 48
    %v1871 = vpop.permute.xlu0 %1870
    %v1872 = vsel %vm204, %v1869, 0
    %v1874 = vsel %vm204, %v1871, 0
    %1876 = vmatprep.subr.mxu0 0.0
    %1877 = vmatpush1.xpose.msra.mxu0 %v1874
    %1878 = vmatprep.subr.mxu0 0.0
    %1879 = vmatpush1.xpose.msra.mxu0 0.0
    %1880 = vmatprep.subr.mxu0 0.0
    %1881 = vmatpush1.xpose.msra.mxu0 0.0
    %1882 = vmatprep.subr.mxu0 0.0
    %1883 = vmatpush1.xpose.msra.mxu0 0.0
    %1884 = vmatprep.subr.mxu0 0.0
    %1885 = vmatpush1.xpose.msra.mxu0 0.0
    %1886 = vmatprep.subr.mxu0 0.0
    %1887 = vmatpush1.xpose.msra.mxu0 0.0
    %1888 = vmatprep.subr.mxu0 0.0
    %1889 = vmatpush1.xpose.msra.mxu0 0.0
    %1890 = vmatprep.subr.mxu0 0.0
    %1891 = vmatpush1.xpose.msra.mxu0 0.0
    %1892 = vmatprep.subr.mxu0 0.0
    %1893 = vmatpush1.xpose.msra.mxu0 0.0
    %1894 = vmatprep.subr.mxu0 0.0
    %1895 = vmatpush1.xpose.msra.mxu0 0.0
    %1896 = vmatprep.subr.mxu0 0.0
    %1897 = vmatpush1.xpose.msra.mxu0 0.0
    %1898 = vmatprep.subr.mxu0 0.0
    %1899 = vmatpush1.xpose.msra.mxu0 0.0
    %1900 = vmatprep.subr.mxu0 0.0
    %1901 = vmatpush1.xpose.msra.mxu0 0.0
    %1902 = vmatprep.subr.mxu0 0.0
    %1903 = vmatpush1.xpose.msra.mxu0 0.0
    %1904 = vmatprep.subr.mxu0 0.0
    %1905 = vmatpush1.xpose.msra.mxu0 0.0
    %1906 = vmatprep.subr.mxu0 0.0
    %1907 = vmatpush1.xpose.msra.mxu0 0.0
    %1908 = vmatprep.subr.mxu0 0.0
    %1909 = vmatpush1.xpose.msra.mxu0 0.0
    %1910 = vmatprep.subr.mxu0 0.0
    %1911 = vmatpush1.xpose.msra.mxu0 0.0
    %1912 = vmatprep.subr.mxu0 0.0
    %1913 = vmatpush1.xpose.msra.mxu0 0.0
    %1914 = vmatprep.subr.mxu0 0.0
    %1915 = vmatpush1.xpose.msra.mxu0 0.0
    %1916 = vmatprep.subr.mxu0 0.0
    %1917 = vmatpush1.xpose.msra.mxu0 0.0
    %1918 = vmatprep.subr.mxu0 0.0
    %1919 = vmatpush1.xpose.msra.mxu0 0.0
    %1920 = vmatprep.subr.mxu0 0.0
    %1921 = vmatpush1.xpose.msra.mxu0 0.0
    %1922 = vmatprep.subr.mxu0 0.0
    %1923 = vmatpush1.xpose.msra.mxu0 0.0
    %1924 = vmatprep.subr.mxu0 0.0
    %1925 = vmatpush1.xpose.msra.mxu0 0.0
    %1926 = vmatprep.subr.mxu0 0.0
    %1927 = vmatpush1.xpose.msra.mxu0 0.0
    %1928 = vmatprep.subr.mxu0 0.0
    %1929 = vmatpush1.xpose.msra.mxu0 0.0
    %1930 = vmatprep.subr.mxu0 0.0
    %1931 = vmatpush1.xpose.msra.mxu0 0.0
    %1932 = vmatprep.subr.mxu0 0.0
    %1933 = vmatpush1.xpose.msra.mxu0 0.0
    %1934 = vmatprep.subr.mxu0 0.0
    %1935 = vmatpush1.xpose.msra.mxu0 0.0
    %1936 = vmatprep.subr.mxu0 0.0
    %1937 = vmatpush1.xpose.msra.mxu0 0.0
    %1938 = vmatprep.subr.mxu0 0.0
    %1939 = vmatpush1.xpose.msra.mxu0 0.0
    %1940 = vmatprep.mubr.f32.mxu0 0.0
    %1941 = vmatmul.mubr.f32.gmra.mrb[0].mxu0 %v1872
    %v1942 = vpop.f32.mrb[0].mxu0
    %v1943 = vadd.f32 0.0, %v1942
    %v1944 = vpop.f32.mrb[0].mxu0
    %1945 = vdwg.mxu0
    %1946 = vrot.lane.b32.xlu0 %v185, 112
    %v1947 = vpop.permute.xlu0 %1946
    %1948 = vrot.lane.b32.xlu0 %v185, 48
    %v1949 = vpop.permute.xlu0 %1948
    %v1950 = vsel %vm204, %v1947, 0
    %v1952 = vsel %vm204, %v1949, 0
    %1954 = vmatprep.subr.mxu0 0.0
    %1955 = vmatpush1.xpose.msra.mxu0 %v1952
    %1956 = vmatprep.subr.mxu0 0.0
    %1957 = vmatpush1.xpose.msra.mxu0 0.0
    %1958 = vmatprep.subr.mxu0 0.0
    %1959 = vmatpush1.xpose.msra.mxu0 0.0
    %1960 = vmatprep.subr.mxu0 0.0
    %1961 = vmatpush1.xpose.msra.mxu0 0.0
    %1962 = vmatprep.subr.mxu0 0.0
    %1963 = vmatpush1.xpose.msra.mxu0 0.0
    %1964 = vmatprep.subr.mxu0 0.0
    %1965 = vmatpush1.xpose.msra.mxu0 0.0
    %1966 = vmatprep.subr.mxu0 0.0
    %1967 = vmatpush1.xpose.msra.mxu0 0.0
    %1968 = vmatprep.subr.mxu0 0.0
    %1969 = vmatpush1.xpose.msra.mxu0 0.0
    %1970 = vmatprep.subr.mxu0 0.0
    %1971 = vmatpush1.xpose.msra.mxu0 0.0
    %1972 = vmatprep.subr.mxu0 0.0
    %1973 = vmatpush1.xpose.msra.mxu0 0.0
    %1974 = vmatprep.subr.mxu0 0.0
    %1975 = vmatpush1.xpose.msra.mxu0 0.0
    %1976 = vmatprep.subr.mxu0 0.0
    %1977 = vmatpush1.xpose.msra.mxu0 0.0
    %1978 = vmatprep.subr.mxu0 0.0
    %1979 = vmatpush1.xpose.msra.mxu0 0.0
    %1980 = vmatprep.subr.mxu0 0.0
    %1981 = vmatpush1.xpose.msra.mxu0 0.0
    %1982 = vmatprep.subr.mxu0 0.0
    %1983 = vmatpush1.xpose.msra.mxu0 0.0
    %1984 = vmatprep.subr.mxu0 0.0
    %1985 = vmatpush1.xpose.msra.mxu0 0.0
    %1986 = vmatprep.subr.mxu0 0.0
    %1987 = vmatpush1.xpose.msra.mxu0 0.0
    %1988 = vmatprep.subr.mxu0 0.0
    %1989 = vmatpush1.xpose.msra.mxu0 0.0
    %1990 = vmatprep.subr.mxu0 0.0
    %1991 = vmatpush1.xpose.msra.mxu0 0.0
    %1992 = vmatprep.subr.mxu0 0.0
    %1993 = vmatpush1.xpose.msra.mxu0 0.0
    %1994 = vmatprep.subr.mxu0 0.0
    %1995 = vmatpush1.xpose.msra.mxu0 0.0
    %1996 = vmatprep.subr.mxu0 0.0
    %1997 = vmatpush1.xpose.msra.mxu0 0.0
    %1998 = vmatprep.subr.mxu0 0.0
    %1999 = vmatpush1.xpose.msra.mxu0 0.0
    %2000 = vmatprep.subr.mxu0 0.0
    %2001 = vmatpush1.xpose.msra.mxu0 0.0
    %2002 = vmatprep.subr.mxu0 0.0
    %2003 = vmatpush1.xpose.msra.mxu0 0.0
    %2004 = vmatprep.subr.mxu0 0.0
    %2005 = vmatpush1.xpose.msra.mxu0 0.0
    %2006 = vmatprep.subr.mxu0 0.0
    %2007 = vmatpush1.xpose.msra.mxu0 0.0
    %2008 = vmatprep.subr.mxu0 0.0
    %2009 = vmatpush1.xpose.msra.mxu0 0.0
    %2010 = vmatprep.subr.mxu0 0.0
    %2011 = vmatpush1.xpose.msra.mxu0 0.0
    %2012 = vmatprep.subr.mxu0 0.0
    %2013 = vmatpush1.xpose.msra.mxu0 0.0
    %2014 = vmatprep.subr.mxu0 0.0
    %2015 = vmatpush1.xpose.msra.mxu0 0.0
    %2016 = vmatprep.subr.mxu0 0.0
    %2017 = vmatpush1.xpose.msra.mxu0 0.0
    %2018 = vmatprep.mubr.f32.mxu0 0.0
    %2019 = vmatmul.mubr.f32.gmra.mrb[0].mxu0 %v1950
    %v2020 = vpop.f32.mrb[0].mxu0
    %v2021 = vadd.f32 0.0, %v2020
    %v2022 = vpop.f32.mrb[0].mxu0
    %2023 = vdwg.mxu0
    %2024 = vrot.lane.b32.xlu0 %v191, 112
    %v2025 = vpop.permute.xlu0 %2024
    %2026 = vrot.lane.b32.xlu0 %v191, 48
    %v2027 = vpop.permute.xlu0 %2026
    %v2028 = vsel %vm204, %v2025, 0
    %v2030 = vsel %vm204, %v2027, 0
    %2032 = vmatprep.subr.mxu0 0.0
    %2033 = vmatpush1.xpose.msra.mxu0 %v2030
    %2034 = vmatprep.subr.mxu0 0.0
    %2035 = vmatpush1.xpose.msra.mxu0 0.0
    %2036 = vmatprep.subr.mxu0 0.0
    %2037 = vmatpush1.xpose.msra.mxu0 0.0
    %2038 = vmatprep.subr.mxu0 0.0
    %2039 = vmatpush1.xpose.msra.mxu0 0.0
    %2040 = vmatprep.subr.mxu0 0.0
    %2041 = vmatpush1.xpose.msra.mxu0 0.0
    %2042 = vmatprep.subr.mxu0 0.0
    %2043 = vmatpush1.xpose.msra.mxu0 0.0
    %2044 = vmatprep.subr.mxu0 0.0
    %2045 = vmatpush1.xpose.msra.mxu0 0.0
    %2046 = vmatprep.subr.mxu0 0.0
    %2047 = vmatpush1.xpose.msra.mxu0 0.0
    %2048 = vmatprep.subr.mxu0 0.0
    %2049 = vmatpush1.xpose.msra.mxu0 0.0
    %2050 = vmatprep.subr.mxu0 0.0
    %2051 = vmatpush1.xpose.msra.mxu0 0.0
    %2052 = vmatprep.subr.mxu0 0.0
    %2053 = vmatpush1.xpose.msra.mxu0 0.0
    %2054 = vmatprep.subr.mxu0 0.0
    %2055 = vmatpush1.xpose.msra.mxu0 0.0
    %2056 = vmatprep.subr.mxu0 0.0
    %2057 = vmatpush1.xpose.msra.mxu0 0.0
    %2058 = vmatprep.subr.mxu0 0.0
    %2059 = vmatpush1.xpose.msra.mxu0 0.0
    %2060 = vmatprep.subr.mxu0 0.0
    %2061 = vmatpush1.xpose.msra.mxu0 0.0
    %2062 = vmatprep.subr.mxu0 0.0
    %2063 = vmatpush1.xpose.msra.mxu0 0.0
    %2064 = vmatprep.subr.mxu0 0.0
    %2065 = vmatpush1.xpose.msra.mxu0 0.0
    %2066 = vmatprep.subr.mxu0 0.0
    %2067 = vmatpush1.xpose.msra.mxu0 0.0
    %2068 = vmatprep.subr.mxu0 0.0
    %2069 = vmatpush1.xpose.msra.mxu0 0.0
    %2070 = vmatprep.subr.mxu0 0.0
    %2071 = vmatpush1.xpose.msra.mxu0 0.0
    %2072 = vmatprep.subr.mxu0 0.0
    %2073 = vmatpush1.xpose.msra.mxu0 0.0
    %2074 = vmatprep.subr.mxu0 0.0
    %2075 = vmatpush1.xpose.msra.mxu0 0.0
    %2076 = vmatprep.subr.mxu0 0.0
    %2077 = vmatpush1.xpose.msra.mxu0 0.0
    %2078 = vmatprep.subr.mxu0 0.0
    %2079 = vmatpush1.xpose.msra.mxu0 0.0
    %2080 = vmatprep.subr.mxu0 0.0
    %2081 = vmatpush1.xpose.msra.mxu0 0.0
    %2082 = vmatprep.subr.mxu0 0.0
    %2083 = vmatpush1.xpose.msra.mxu0 0.0
    %2084 = vmatprep.subr.mxu0 0.0
    %2085 = vmatpush1.xpose.msra.mxu0 0.0
    %2086 = vmatprep.subr.mxu0 0.0
    %2087 = vmatpush1.xpose.msra.mxu0 0.0
    %2088 = vmatprep.subr.mxu0 0.0
    %2089 = vmatpush1.xpose.msra.mxu0 0.0
    %2090 = vmatprep.subr.mxu0 0.0
    %2091 = vmatpush1.xpose.msra.mxu0 0.0
    %2092 = vmatprep.subr.mxu0 0.0
    %2093 = vmatpush1.xpose.msra.mxu0 0.0
    %2094 = vmatprep.subr.mxu0 0.0
    %2095 = vmatpush1.xpose.msra.mxu0 0.0
    %2096 = vmatprep.mubr.f32.mxu0 0.0
    %2097 = vmatmul.mubr.f32.gmra.mrb[0].mxu0 %v2028
    %v2098 = vpop.f32.mrb[0].mxu0
    %v2099 = vadd.f32 0.0, %v2098
    %v2100 = vpop.f32.mrb[0].mxu0
    %2101 = vdwg.mxu0
    %2102 = vrot.lane.b32.xlu0 %v197, 112
    %v2103 = vpop.permute.xlu0 %2102
    %2104 = vrot.lane.b32.xlu0 %v197, 48
    %v2105 = vpop.permute.xlu0 %2104
    %v2106 = vsel %vm204, %v2103, 0
    %v2108 = vsel %vm204, %v2105, 0
    %2110 = vmatprep.subr.mxu0 0.0
    %2111 = vmatpush1.xpose.msra.mxu0 %v2108
    %2112 = vmatprep.subr.mxu0 0.0
    %2113 = vmatpush1.xpose.msra.mxu0 0.0
    %2114 = vmatprep.subr.mxu0 0.0
    %2115 = vmatpush1.xpose.msra.mxu0 0.0
    %2116 = vmatprep.subr.mxu0 0.0
    %2117 = vmatpush1.xpose.msra.mxu0 0.0
    %2118 = vmatprep.subr.mxu0 0.0
    %2119 = vmatpush1.xpose.msra.mxu0 0.0
    %2120 = vmatprep.subr.mxu0 0.0
    %2121 = vmatpush1.xpose.msra.mxu0 0.0
    %2122 = vmatprep.subr.mxu0 0.0
    %2123 = vmatpush1.xpose.msra.mxu0 0.0
    %2124 = vmatprep.subr.mxu0 0.0
    %2125 = vmatpush1.xpose.msra.mxu0 0.0
    %2126 = vmatprep.subr.mxu0 0.0
    %2127 = vmatpush1.xpose.msra.mxu0 0.0
    %2128 = vmatprep.subr.mxu0 0.0
    %2129 = vmatpush1.xpose.msra.mxu0 0.0
    %2130 = vmatprep.subr.mxu0 0.0
    %2131 = vmatpush1.xpose.msra.mxu0 0.0
    %2132 = vmatprep.subr.mxu0 0.0
    %2133 = vmatpush1.xpose.msra.mxu0 0.0
    %2134 = vmatprep.subr.mxu0 0.0
    %2135 = vmatpush1.xpose.msra.mxu0 0.0
    %2136 = vmatprep.subr.mxu0 0.0
    %2137 = vmatpush1.xpose.msra.mxu0 0.0
    %2138 = vmatprep.subr.mxu0 0.0
    %2139 = vmatpush1.xpose.msra.mxu0 0.0
    %2140 = vmatprep.subr.mxu0 0.0
    %2141 = vmatpush1.xpose.msra.mxu0 0.0
    %2142 = vmatprep.subr.mxu0 0.0
    %2143 = vmatpush1.xpose.msra.mxu0 0.0
    %2144 = vmatprep.subr.mxu0 0.0
    %2145 = vmatpush1.xpose.msra.mxu0 0.0
    %2146 = vmatprep.subr.mxu0 0.0
    %2147 = vmatpush1.xpose.msra.mxu0 0.0
    %2148 = vmatprep.subr.mxu0 0.0
    %2149 = vmatpush1.xpose.msra.mxu0 0.0
    %2150 = vmatprep.subr.mxu0 0.0
    %2151 = vmatpush1.xpose.msra.mxu0 0.0
    %2152 = vmatprep.subr.mxu0 0.0
    %2153 = vmatpush1.xpose.msra.mxu0 0.0
    %2154 = vmatprep.subr.mxu0 0.0
    %2155 = vmatpush1.xpose.msra.mxu0 0.0
    %2156 = vmatprep.subr.mxu0 0.0
    %2157 = vmatpush1.xpose.msra.mxu0 0.0
    %2158 = vmatprep.subr.mxu0 0.0
    %2159 = vmatpush1.xpose.msra.mxu0 0.0
    %2160 = vmatprep.subr.mxu0 0.0
    %2161 = vmatpush1.xpose.msra.mxu0 0.0
    %2162 = vmatprep.subr.mxu0 0.0
    %2163 = vmatpush1.xpose.msra.mxu0 0.0
    %2164 = vmatprep.subr.mxu0 0.0
    %2165 = vmatpush1.xpose.msra.mxu0 0.0
    %2166 = vmatprep.subr.mxu0 0.0
    %2167 = vmatpush1.xpose.msra.mxu0 0.0
    %2168 = vmatprep.subr.mxu0 0.0
    %2169 = vmatpush1.xpose.msra.mxu0 0.0
    %2170 = vmatprep.subr.mxu0 0.0
    %2171 = vmatpush1.xpose.msra.mxu0 0.0
    %2172 = vmatprep.subr.mxu0 0.0
    %2173 = vmatpush1.xpose.msra.mxu0 0.0
    %2174 = vmatprep.mubr.f32.mxu0 0.0
    %2175 = vmatmul.mubr.f32.gmra.mrb[0].mxu0 %v2106
    %v2176 = vpop.f32.mrb[0].mxu0
    %v2177 = vadd.f32 0.0, %v2176
    %v2178 = vpop.f32.mrb[0].mxu0
    %2179 = vdwg.mxu0
    %v2180 = vsel %vm818, %v1631, -inf
    %2181 = vmax.xlane.f32.xlu0 %v2180
    %v2182 = vpop.xlane.xlu0 %2181
    %v2183 = vsel %vm818, %v1709, -inf
    %2184 = vmax.xlane.f32.xlu0 %v2183
    %v2185 = vpop.xlane.xlu0 %2184
    %v2186 = vsel %vm818, %v1787, -inf
    %2187 = vmax.xlane.f32.xlu0 %v2186
    %v2188 = vpop.xlane.xlu0 %2187
    %v2189 = vsel %vm818, %v1865, -inf
    %2190 = vmax.xlane.f32.xlu0 %v2189
    %v2191 = vpop.xlane.xlu0 %2190
    %v2192 = vsel %vm818, %v1943, -inf
    %2193 = vmax.xlane.f32.xlu0 %v2192
    %v2194 = vpop.xlane.xlu0 %2193
    %v2195 = vsel %vm818, %v2021, -inf
    %2196 = vmax.xlane.f32.xlu0 %v2195
    %v2197 = vpop.xlane.xlu0 %2196
    %v2198 = vsel %vm818, %v2099, -inf
    %2199 = vmax.xlane.f32.xlu0 %v2198
    %v2200 = vpop.xlane.xlu0 %2199
    %v2201 = vsel %vm818, %v2177, -inf
    %2202 = vmax.xlane.f32.xlu0 %v2201
    %v2203 = vpop.xlane.xlu0 %2202
    %v2204 = vsub.f32 %v1631, %v2182
    %v2205 = vsub.f32 %v1709, %v2185
    %v2206 = vsub.f32 %v1787, %v2188
    %v2207 = vsub.f32 %v1865, %v2191
    %v2208 = vsub.f32 %v1943, %v2194
    %v2209 = vsub.f32 %v2021, %v2197
    %v2210 = vsub.f32 %v2099, %v2200
    %v2211 = vsub.f32 %v2177, %v2203
    %v2212 = vmul.f32 %v2204, 1.442695
    %v2213 = vpow.pop %v2212
    %v2214 = vmul.f32 %v2205, 1.442695
    %v2215 = vpow.pop %v2214
    %v2216 = vmul.f32 %v2206, 1.442695
    %v2217 = vpow.pop %v2216
    %v2218 = vmul.f32 %v2207, 1.442695
    %v2219 = vpow.pop %v2218
    %v2220 = vmul.f32 %v2208, 1.442695
    %v2221 = vpow.pop %v2220
    %v2222 = vmul.f32 %v2209, 1.442695
    %v2223 = vpow.pop %v2222
    %v2224 = vmul.f32 %v2210, 1.442695
    %v2225 = vpow.pop %v2224
    %v2226 = vmul.f32 %v2211, 1.442695
    %v2227 = vpow.pop %v2226
    %v2228 = vsel %vm818, %v2213, 0.0
    %2229 = vadd.xlane.f32.xlu0 %v2228
    %v2230 = vpop.xlane.xlu0 %2229
    %v2231 = vsel %vm818, %v2215, 0.0
    %2232 = vadd.xlane.f32.xlu0 %v2231
    %v2233 = vpop.xlane.xlu0 %2232
    %v2234 = vsel %vm818, %v2217, 0.0
    %2235 = vadd.xlane.f32.xlu0 %v2234
    %v2236 = vpop.xlane.xlu0 %2235
    %v2237 = vsel %vm818, %v2219, 0.0
    %2238 = vadd.xlane.f32.xlu0 %v2237
    %v2239 = vpop.xlane.xlu0 %2238
    %v2240 = vsel %vm818, %v2221, 0.0
    %2241 = vadd.xlane.f32.xlu0 %v2240
    %v2242 = vpop.xlane.xlu0 %2241
    %v2243 = vsel %vm818, %v2223, 0.0
    %2244 = vadd.xlane.f32.xlu0 %v2243
    %v2245 = vpop.xlane.xlu0 %2244
    %v2246 = vsel %vm818, %v2225, 0.0
    %2247 = vadd.xlane.f32.xlu0 %v2246
    %v2248 = vpop.xlane.xlu0 %2247
    %v2249 = vsel %vm818, %v2227, 0.0
    %2250 = vadd.xlane.f32.xlu0 %v2249
    %v2251 = vpop.xlane.xlu0 %2250
    %v2252 = vrcp.pop %v2230
    %v2253 = vrcp.pop %v2233
    %v2254 = vrcp.pop %v2236
    %v2255 = vrcp.pop %v2239
    %v2256 = vrcp.pop %v2242
    %v2257 = vrcp.pop %v2245
    %v2258 = vrcp.pop %v2248
    %v2259 = vrcp.pop %v2251
    %v2260 = vmul.f32 %v2213, %v2252
    %v2261 = vmul.f32 %v2215, %v2253
    %v2262 = vmul.f32 %v2217, %v2254
    %v2263 = vmul.f32 %v2219, %v2255
    %v2264 = vmul.f32 %v2221, %v2256
    %v2265 = vmul.f32 %v2223, %v2257
    %v2266 = vmul.f32 %v2225, %v2258
    %v2267 = vmul.f32 %v2227, %v2259
    %2269 = vrot.lane.b32.xlu0 %v157, 112
    %v2270 = vpop.permute.xlu0 %2269
    %v2273 = vsel %vm818, %v2260, 0
    %2275 = vmatprep.subr.mxu0 0.0
    %2276 = vmatpush1.msra.mxu0 %v2270
    %2277 = vmatprep.subr.mxu0 0.0
    %2278 = vmatpush1.msra.mxu0 0.0
    %2279 = vmatprep.subr.mxu0 0.0
    %2280 = vmatpush1.msra.mxu0 0.0
    %2281 = vmatprep.subr.mxu0 0.0
    %2282 = vmatpush1.msra.mxu0 0.0
    %2283 = vmatprep.subr.mxu0 0.0
    %2284 = vmatpush1.msra.mxu0 0.0
    %2285 = vmatprep.subr.mxu0 0.0
    %2286 = vmatpush1.msra.mxu0 0.0
    %2287 = vmatprep.subr.mxu0 0.0
    %2288 = vmatpush1.msra.mxu0 0.0
    %2289 = vmatprep.subr.mxu0 0.0
    %2290 = vmatpush1.msra.mxu0 0.0
    %2291 = vmatprep.subr.mxu0 0.0
    %2292 = vmatpush1.msra.mxu0 0.0
    %2293 = vmatprep.subr.mxu0 0.0
    %2294 = vmatpush1.msra.mxu0 0.0
    %2295 = vmatprep.subr.mxu0 0.0
    %2296 = vmatpush1.msra.mxu0 0.0
    %2297 = vmatprep.subr.mxu0 0.0
    %2298 = vmatpush1.msra.mxu0 0.0
    %2299 = vmatprep.subr.mxu0 0.0
    %2300 = vmatpush1.msra.mxu0 0.0
    %2301 = vmatprep.subr.mxu0 0.0
    %2302 = vmatpush1.msra.mxu0 0.0
    %2303 = vmatprep.subr.mxu0 0.0
    %2304 = vmatpush1.msra.mxu0 0.0
    %2305 = vmatprep.subr.mxu0 0.0
    %2306 = vmatpush1.msra.mxu0 0.0
    %2307 = vmatprep.subr.mxu0 0.0
    %2308 = vmatpush1.msra.mxu0 0.0
    %2309 = vmatprep.subr.mxu0 0.0
    %2310 = vmatpush1.msra.mxu0 0.0
    %2311 = vmatprep.subr.mxu0 0.0
    %2312 = vmatpush1.msra.mxu0 0.0
    %2313 = vmatprep.subr.mxu0 0.0
    %2314 = vmatpush1.msra.mxu0 0.0
    %2315 = vmatprep.subr.mxu0 0.0
    %2316 = vmatpush1.msra.mxu0 0.0
    %2317 = vmatprep.subr.mxu0 0.0
    %2318 = vmatpush1.msra.mxu0 0.0
    %2319 = vmatprep.subr.mxu0 0.0
    %2320 = vmatpush1.msra.mxu0 0.0
    %2321 = vmatprep.subr.mxu0 0.0
    %2322 = vmatpush1.msra.mxu0 0.0
    %2323 = vmatprep.subr.mxu0 0.0
    %2324 = vmatpush1.msra.mxu0 0.0
    %2325 = vmatprep.subr.mxu0 0.0
    %2326 = vmatpush1.msra.mxu0 0.0
    %2327 = vmatprep.subr.mxu0 0.0
    %2328 = vmatpush1.msra.mxu0 0.0
    %2329 = vmatprep.subr.mxu0 0.0
    %2330 = vmatpush1.msra.mxu0 0.0
    %2331 = vmatprep.subr.mxu0 0.0
    %2332 = vmatpush1.msra.mxu0 0.0
    %2333 = vmatprep.subr.mxu0 0.0
    %2334 = vmatpush1.msra.mxu0 0.0
    %2335 = vmatprep.subr.mxu0 0.0
    %2336 = vmatpush1.msra.mxu0 0.0
    %2337 = vmatprep.subr.mxu0 0.0
    %2338 = vmatpush1.msra.mxu0 0.0
    %2339 = vmatprep.mubr.f32.mxu0 0.0
    %2340 = vmatmul.mubr.f32.gmra.mrb[0].mxu0 %v2273
    %v2341 = vpop.f32.mrb[0].mxu0
    %v2342 = vadd.f32 0.0, %v2341
    %v2343 = vpop.f32.mrb[0].mxu0
    %2344 = vdwg.mxu0
    %2346 = vrot.lane.b32.xlu0 %v163, 112
    %v2347 = vpop.permute.xlu0 %2346
    %v2350 = vsel %vm818, %v2261, 0
    %2352 = vmatprep.subr.mxu0 0.0
    %2353 = vmatpush1.msra.mxu0 %v2347
    %2354 = vmatprep.subr.mxu0 0.0
    %2355 = vmatpush1.msra.mxu0 0.0
    %2356 = vmatprep.subr.mxu0 0.0
    %2357 = vmatpush1.msra.mxu0 0.0
    %2358 = vmatprep.subr.mxu0 0.0
    %2359 = vmatpush1.msra.mxu0 0.0
    %2360 = vmatprep.subr.mxu0 0.0
    %2361 = vmatpush1.msra.mxu0 0.0
    %2362 = vmatprep.subr.mxu0 0.0
    %2363 = vmatpush1.msra.mxu0 0.0
    %2364 = vmatprep.subr.mxu0 0.0
    %2365 = vmatpush1.msra.mxu0 0.0
    %2366 = vmatprep.subr.mxu0 0.0
    %2367 = vmatpush1.msra.mxu0 0.0
    %2368 = vmatprep.subr.mxu0 0.0
    %2369 = vmatpush1.msra.mxu0 0.0
    %2370 = vmatprep.subr.mxu0 0.0
    %2371 = vmatpush1.msra.mxu0 0.0
    %2372 = vmatprep.subr.mxu0 0.0
    %2373 = vmatpush1.msra.mxu0 0.0
    %2374 = vmatprep.subr.mxu0 0.0
    %2375 = vmatpush1.msra.mxu0 0.0
    %2376 = vmatprep.subr.mxu0 0.0
    %2377 = vmatpush1.msra.mxu0 0.0
    %2378 = vmatprep.subr.mxu0 0.0
    %2379 = vmatpush1.msra.mxu0 0.0
    %2380 = vmatprep.subr.mxu0 0.0
    %2381 = vmatpush1.msra.mxu0 0.0
    %2382 = vmatprep.subr.mxu0 0.0
    %2383 = vmatpush1.msra.mxu0 0.0
    %2384 = vmatprep.subr.mxu0 0.0
    %2385 = vmatpush1.msra.mxu0 0.0
    %2386 = vmatprep.subr.mxu0 0.0
    %2387 = vmatpush1.msra.mxu0 0.0
    %2388 = vmatprep.subr.mxu0 0.0
    %2389 = vmatpush1.msra.mxu0 0.0
    %2390 = vmatprep.subr.mxu0 0.0
    %2391 = vmatpush1.msra.mxu0 0.0
    %2392 = vmatprep.subr.mxu0 0.0
    %2393 = vmatpush1.msra.mxu0 0.0
    %2394 = vmatprep.subr.mxu0 0.0
    %2395 = vmatpush1.msra.mxu0 0.0
    %2396 = vmatprep.subr.mxu0 0.0
    %2397 = vmatpush1.msra.mxu0 0.0
    %2398 = vmatprep.subr.mxu0 0.0
    %2399 = vmatpush1.msra.mxu0 0.0
    %2400 = vmatprep.subr.mxu0 0.0
    %2401 = vmatpush1.msra.mxu0 0.0
    %2402 = vmatprep.subr.mxu0 0.0
    %2403 = vmatpush1.msra.mxu0 0.0
    %2404 = vmatprep.subr.mxu0 0.0
    %2405 = vmatpush1.msra.mxu0 0.0
    %2406 = vmatprep.subr.mxu0 0.0
    %2407 = vmatpush1.msra.mxu0 0.0
    %2408 = vmatprep.subr.mxu0 0.0
    %2409 = vmatpush1.msra.mxu0 0.0
    %2410 = vmatprep.subr.mxu0 0.0
    %2411 = vmatpush1.msra.mxu0 0.0
    %2412 = vmatprep.subr.mxu0 0.0
    %2413 = vmatpush1.msra.mxu0 0.0
    %2414 = vmatprep.subr.mxu0 0.0
    %2415 = vmatpush1.msra.mxu0 0.0
    %2416 = vmatprep.mubr.f32.mxu0 0.0
    %2417 = vmatmul.mubr.f32.gmra.mrb[0].mxu0 %v2350
    %v2418 = vpop.f32.mrb[0].mxu0
    %v2419 = vadd.f32 0.0, %v2418
    %v2420 = vpop.f32.mrb[0].mxu0
    %2421 = vdwg.mxu0
    %2423 = vrot.lane.b32.xlu0 %v169, 112
    %v2424 = vpop.permute.xlu0 %2423
    %v2427 = vsel %vm818, %v2262, 0
    %2429 = vmatprep.subr.mxu0 0.0
    %2430 = vmatpush1.msra.mxu0 %v2424
    %2431 = vmatprep.subr.mxu0 0.0
    %2432 = vmatpush1.msra.mxu0 0.0
    %2433 = vmatprep.subr.mxu0 0.0
    %2434 = vmatpush1.msra.mxu0 0.0
    %2435 = vmatprep.subr.mxu0 0.0
    %2436 = vmatpush1.msra.mxu0 0.0
    %2437 = vmatprep.subr.mxu0 0.0
    %2438 = vmatpush1.msra.mxu0 0.0
    %2439 = vmatprep.subr.mxu0 0.0
    %2440 = vmatpush1.msra.mxu0 0.0
    %2441 = vmatprep.subr.mxu0 0.0
    %2442 = vmatpush1.msra.mxu0 0.0
    %2443 = vmatprep.subr.mxu0 0.0
    %2444 = vmatpush1.msra.mxu0 0.0
    %2445 = vmatprep.subr.mxu0 0.0
    %2446 = vmatpush1.msra.mxu0 0.0
    %2447 = vmatprep.subr.mxu0 0.0
    %2448 = vmatpush1.msra.mxu0 0.0
    %2449 = vmatprep.subr.mxu0 0.0
    %2450 = vmatpush1.msra.mxu0 0.0
    %2451 = vmatprep.subr.mxu0 0.0
    %2452 = vmatpush1.msra.mxu0 0.0
    %2453 = vmatprep.subr.mxu0 0.0
    %2454 = vmatpush1.msra.mxu0 0.0
    %2455 = vmatprep.subr.mxu0 0.0
    %2456 = vmatpush1.msra.mxu0 0.0
    %2457 = vmatprep.subr.mxu0 0.0
    %2458 = vmatpush1.msra.mxu0 0.0
    %2459 = vmatprep.subr.mxu0 0.0
    %2460 = vmatpush1.msra.mxu0 0.0
    %2461 = vmatprep.subr.mxu0 0.0
    %2462 = vmatpush1.msra.mxu0 0.0
    %2463 = vmatprep.subr.mxu0 0.0
    %2464 = vmatpush1.msra.mxu0 0.0
    %2465 = vmatprep.subr.mxu0 0.0
    %2466 = vmatpush1.msra.mxu0 0.0
    %2467 = vmatprep.subr.mxu0 0.0
    %2468 = vmatpush1.msra.mxu0 0.0
    %2469 = vmatprep.subr.mxu0 0.0
    %2470 = vmatpush1.msra.mxu0 0.0
    %2471 = vmatprep.subr.mxu0 0.0
    %2472 = vmatpush1.msra.mxu0 0.0
    %2473 = vmatprep.subr.mxu0 0.0
    %2474 = vmatpush1.msra.mxu0 0.0
    %2475 = vmatprep.subr.mxu0 0.0
    %2476 = vmatpush1.msra.mxu0 0.0
    %2477 = vmatprep.subr.mxu0 0.0
    %2478 = vmatpush1.msra.mxu0 0.0
    %2479 = vmatprep.subr.mxu0 0.0
    %2480 = vmatpush1.msra.mxu0 0.0
    %2481 = vmatprep.subr.mxu0 0.0
    %2482 = vmatpush1.msra.mxu0 0.0
    %2483 = vmatprep.subr.mxu0 0.0
    %2484 = vmatpush1.msra.mxu0 0.0
    %2485 = vmatprep.subr.mxu0 0.0
    %2486 = vmatpush1.msra.mxu0 0.0
    %2487 = vmatprep.subr.mxu0 0.0
    %2488 = vmatpush1.msra.mxu0 0.0
    %2489 = vmatprep.subr.mxu0 0.0
    %2490 = vmatpush1.msra.mxu0 0.0
    %2491 = vmatprep.subr.mxu0 0.0
    %2492 = vmatpush1.msra.mxu0 0.0
    %2493 = vmatprep.mubr.f32.mxu0 0.0
    %2494 = vmatmul.mubr.f32.gmra.mrb[0].mxu0 %v2427
    %v2495 = vpop.f32.mrb[0].mxu0
    %v2496 = vadd.f32 0.0, %v2495
    %v2497 = vpop.f32.mrb[0].mxu0
    %2498 = vdwg.mxu0
    %2500 = vrot.lane.b32.xlu0 %v175, 112
    %v2501 = vpop.permute.xlu0 %2500
    %v2504 = vsel %vm818, %v2263, 0
    %2506 = vmatprep.subr.mxu0 0.0
    %2507 = vmatpush1.msra.mxu0 %v2501
    %2508 = vmatprep.subr.mxu0 0.0
    %2509 = vmatpush1.msra.mxu0 0.0
    %2510 = vmatprep.subr.mxu0 0.0
    %2511 = vmatpush1.msra.mxu0 0.0
    %2512 = vmatprep.subr.mxu0 0.0
    %2513 = vmatpush1.msra.mxu0 0.0
    %2514 = vmatprep.subr.mxu0 0.0
    %2515 = vmatpush1.msra.mxu0 0.0
    %2516 = vmatprep.subr.mxu0 0.0
    %2517 = vmatpush1.msra.mxu0 0.0
    %2518 = vmatprep.subr.mxu0 0.0
    %2519 = vmatpush1.msra.mxu0 0.0
    %2520 = vmatprep.subr.mxu0 0.0
    %2521 = vmatpush1.msra.mxu0 0.0
    %2522 = vmatprep.subr.mxu0 0.0
    %2523 = vmatpush1.msra.mxu0 0.0
    %2524 = vmatprep.subr.mxu0 0.0
    %2525 = vmatpush1.msra.mxu0 0.0
    %2526 = vmatprep.subr.mxu0 0.0
    %2527 = vmatpush1.msra.mxu0 0.0
    %2528 = vmatprep.subr.mxu0 0.0
    %2529 = vmatpush1.msra.mxu0 0.0
    %2530 = vmatprep.subr.mxu0 0.0
    %2531 = vmatpush1.msra.mxu0 0.0
    %2532 = vmatprep.subr.mxu0 0.0
    %2533 = vmatpush1.msra.mxu0 0.0
    %2534 = vmatprep.subr.mxu0 0.0
    %2535 = vmatpush1.msra.mxu0 0.0
    %2536 = vmatprep.subr.mxu0 0.0
    %2537 = vmatpush1.msra.mxu0 0.0
    %2538 = vmatprep.subr.mxu0 0.0
    %2539 = vmatpush1.msra.mxu0 0.0
    %2540 = vmatprep.subr.mxu0 0.0
    %2541 = vmatpush1.msra.mxu0 0.0
    %2542 = vmatprep.subr.mxu0 0.0
    %2543 = vmatpush1.msra.mxu0 0.0
    %2544 = vmatprep.subr.mxu0 0.0
    %2545 = vmatpush1.msra.mxu0 0.0
    %2546 = vmatprep.subr.mxu0 0.0
    %2547 = vmatpush1.msra.mxu0 0.0
    %2548 = vmatprep.subr.mxu0 0.0
    %2549 = vmatpush1.msra.mxu0 0.0
    %2550 = vmatprep.subr.mxu0 0.0
    %2551 = vmatpush1.msra.mxu0 0.0
    %2552 = vmatprep.subr.mxu0 0.0
    %2553 = vmatpush1.msra.mxu0 0.0
    %2554 = vmatprep.subr.mxu0 0.0
    %2555 = vmatpush1.msra.mxu0 0.0
    %2556 = vmatprep.subr.mxu0 0.0
    %2557 = vmatpush1.msra.mxu0 0.0
    %2558 = vmatprep.subr.mxu0 0.0
    %2559 = vmatpush1.msra.mxu0 0.0
    %2560 = vmatprep.subr.mxu0 0.0
    %2561 = vmatpush1.msra.mxu0 0.0
    %2562 = vmatprep.subr.mxu0 0.0
    %2563 = vmatpush1.msra.mxu0 0.0
    %2564 = vmatprep.subr.mxu0 0.0
    %2565 = vmatpush1.msra.mxu0 0.0
    %2566 = vmatprep.subr.mxu0 0.0
    %2567 = vmatpush1.msra.mxu0 0.0
    %2568 = vmatprep.subr.mxu0 0.0
    %2569 = vmatpush1.msra.mxu0 0.0
    %2570 = vmatprep.mubr.f32.mxu0 0.0
    %2571 = vmatmul.mubr.f32.gmra.mrb[0].mxu0 %v2504
    %v2572 = vpop.f32.mrb[0].mxu0
    %v2573 = vadd.f32 0.0, %v2572
    %v2574 = vpop.f32.mrb[0].mxu0
    %2575 = vdwg.mxu0
    %2577 = vrot.lane.b32.xlu0 %v181, 112
    %v2578 = vpop.permute.xlu0 %2577
    %v2581 = vsel %vm818, %v2264, 0
    %2583 = vmatprep.subr.mxu0 0.0
    %2584 = vmatpush1.msra.mxu0 %v2578
    %2585 = vmatprep.subr.mxu0 0.0
    %2586 = vmatpush1.msra.mxu0 0.0
    %2587 = vmatprep.subr.mxu0 0.0
    %2588 = vmatpush1.msra.mxu0 0.0
    %2589 = vmatprep.subr.mxu0 0.0
    %2590 = vmatpush1.msra.mxu0 0.0
    %2591 = vmatprep.subr.mxu0 0.0
    %2592 = vmatpush1.msra.mxu0 0.0
    %2593 = vmatprep.subr.mxu0 0.0
    %2594 = vmatpush1.msra.mxu0 0.0
    %2595 = vmatprep.subr.mxu0 0.0
    %2596 = vmatpush1.msra.mxu0 0.0
    %2597 = vmatprep.subr.mxu0 0.0
    %2598 = vmatpush1.msra.mxu0 0.0
    %2599 = vmatprep.subr.mxu0 0.0
    %2600 = vmatpush1.msra.mxu0 0.0
    %2601 = vmatprep.subr.mxu0 0.0
    %2602 = vmatpush1.msra.mxu0 0.0
    %2603 = vmatprep.subr.mxu0 0.0
    %2604 = vmatpush1.msra.mxu0 0.0
    %2605 = vmatprep.subr.mxu0 0.0
    %2606 = vmatpush1.msra.mxu0 0.0
    %2607 = vmatprep.subr.mxu0 0.0
    %2608 = vmatpush1.msra.mxu0 0.0
    %2609 = vmatprep.subr.mxu0 0.0
    %2610 = vmatpush1.msra.mxu0 0.0
    %2611 = vmatprep.subr.mxu0 0.0
    %2612 = vmatpush1.msra.mxu0 0.0
    %2613 = vmatprep.subr.mxu0 0.0
    %2614 = vmatpush1.msra.mxu0 0.0
    %2615 = vmatprep.subr.mxu0 0.0
    %2616 = vmatpush1.msra.mxu0 0.0
    %2617 = vmatprep.subr.mxu0 0.0
    %2618 = vmatpush1.msra.mxu0 0.0
    %2619 = vmatprep.subr.mxu0 0.0
    %2620 = vmatpush1.msra.mxu0 0.0
    %2621 = vmatprep.subr.mxu0 0.0
    %2622 = vmatpush1.msra.mxu0 0.0
    %2623 = vmatprep.subr.mxu0 0.0
    %2624 = vmatpush1.msra.mxu0 0.0
    %2625 = vmatprep.subr.mxu0 0.0
    %2626 = vmatpush1.msra.mxu0 0.0
    %2627 = vmatprep.subr.mxu0 0.0
    %2628 = vmatpush1.msra.mxu0 0.0
    %2629 = vmatprep.subr.mxu0 0.0
    %2630 = vmatpush1.msra.mxu0 0.0
    %2631 = vmatprep.subr.mxu0 0.0
    %2632 = vmatpush1.msra.mxu0 0.0
    %2633 = vmatprep.subr.mxu0 0.0
    %2634 = vmatpush1.msra.mxu0 0.0
    %2635 = vmatprep.subr.mxu0 0.0
    %2636 = vmatpush1.msra.mxu0 0.0
    %2637 = vmatprep.subr.mxu0 0.0
    %2638 = vmatpush1.msra.mxu0 0.0
    %2639 = vmatprep.subr.mxu0 0.0
    %2640 = vmatpush1.msra.mxu0 0.0
    %2641 = vmatprep.subr.mxu0 0.0
    %2642 = vmatpush1.msra.mxu0 0.0
    %2643 = vmatprep.subr.mxu0 0.0
    %2644 = vmatpush1.msra.mxu0 0.0
    %2645 = vmatprep.subr.mxu0 0.0
    %2646 = vmatpush1.msra.mxu0 0.0
    %2647 = vmatprep.mubr.f32.mxu0 0.0
    %2648 = vmatmul.mubr.f32.gmra.mrb[0].mxu0 %v2581
    %v2649 = vpop.f32.mrb[0].mxu0
    %v2650 = vadd.f32 0.0, %v2649
    %v2651 = vpop.f32.mrb[0].mxu0
    %2652 = vdwg.mxu0
    %2654 = vrot.lane.b32.xlu0 %v187, 112
    %v2655 = vpop.permute.xlu0 %2654
    %v2658 = vsel %vm818, %v2265, 0
    %2660 = vmatprep.subr.mxu0 0.0
    %2661 = vmatpush1.msra.mxu0 %v2655
    %2662 = vmatprep.subr.mxu0 0.0
    %2663 = vmatpush1.msra.mxu0 0.0
    %2664 = vmatprep.subr.mxu0 0.0
    %2665 = vmatpush1.msra.mxu0 0.0
    %2666 = vmatprep.subr.mxu0 0.0
    %2667 = vmatpush1.msra.mxu0 0.0
    %2668 = vmatprep.subr.mxu0 0.0
    %2669 = vmatpush1.msra.mxu0 0.0
    %2670 = vmatprep.subr.mxu0 0.0
    %2671 = vmatpush1.msra.mxu0 0.0
    %2672 = vmatprep.subr.mxu0 0.0
    %2673 = vmatpush1.msra.mxu0 0.0
    %2674 = vmatprep.subr.mxu0 0.0
    %2675 = vmatpush1.msra.mxu0 0.0
    %2676 = vmatprep.subr.mxu0 0.0
    %2677 = vmatpush1.msra.mxu0 0.0
    %2678 = vmatprep.subr.mxu0 0.0
    %2679 = vmatpush1.msra.mxu0 0.0
    %2680 = vmatprep.subr.mxu0 0.0
    %2681 = vmatpush1.msra.mxu0 0.0
    %2682 = vmatprep.subr.mxu0 0.0
    %2683 = vmatpush1.msra.mxu0 0.0
    %2684 = vmatprep.subr.mxu0 0.0
    %2685 = vmatpush1.msra.mxu0 0.0
    %2686 = vmatprep.subr.mxu0 0.0
    %2687 = vmatpush1.msra.mxu0 0.0
    %2688 = vmatprep.subr.mxu0 0.0
    %2689 = vmatpush1.msra.mxu0 0.0
    %2690 = vmatprep.subr.mxu0 0.0
    %2691 = vmatpush1.msra.mxu0 0.0
    %2692 = vmatprep.subr.mxu0 0.0
    %2693 = vmatpush1.msra.mxu0 0.0
    %2694 = vmatprep.subr.mxu0 0.0
    %2695 = vmatpush1.msra.mxu0 0.0
    %2696 = vmatprep.subr.mxu0 0.0
    %2697 = vmatpush1.msra.mxu0 0.0
    %2698 = vmatprep.subr.mxu0 0.0
    %2699 = vmatpush1.msra.mxu0 0.0
    %2700 = vmatprep.subr.mxu0 0.0
    %2701 = vmatpush1.msra.mxu0 0.0
    %2702 = vmatprep.subr.mxu0 0.0
    %2703 = vmatpush1.msra.mxu0 0.0
    %2704 = vmatprep.subr.mxu0 0.0
    %2705 = vmatpush1.msra.mxu0 0.0
    %2706 = vmatprep.subr.mxu0 0.0
    %2707 = vmatpush1.msra.mxu0 0.0
    %2708 = vmatprep.subr.mxu0 0.0
    %2709 = vmatpush1.msra.mxu0 0.0
    %2710 = vmatprep.subr.mxu0 0.0
    %2711 = vmatpush1.msra.mxu0 0.0
    %2712 = vmatprep.subr.mxu0 0.0
    %2713 = vmatpush1.msra.mxu0 0.0
    %2714 = vmatprep.subr.mxu0 0.0
    %2715 = vmatpush1.msra.mxu0 0.0
    %2716 = vmatprep.subr.mxu0 0.0
    %2717 = vmatpush1.msra.mxu0 0.0
    %2718 = vmatprep.subr.mxu0 0.0
    %2719 = vmatpush1.msra.mxu0 0.0
    %2720 = vmatprep.subr.mxu0 0.0
    %2721 = vmatpush1.msra.mxu0 0.0
    %2722 = vmatprep.subr.mxu0 0.0
    %2723 = vmatpush1.msra.mxu0 0.0
    %2724 = vmatprep.mubr.f32.mxu0 0.0
    %2725 = vmatmul.mubr.f32.gmra.mrb[0].mxu0 %v2658
    %v2726 = vpop.f32.mrb[0].mxu0
    %v2727 = vadd.f32 0.0, %v2726
    %v2728 = vpop.f32.mrb[0].mxu0
    %2729 = vdwg.mxu0
    %2731 = vrot.lane.b32.xlu0 %v193, 112
    %v2732 = vpop.permute.xlu0 %2731
    %v2735 = vsel %vm818, %v2266, 0
    %2737 = vmatprep.subr.mxu0 0.0
    %2738 = vmatpush1.msra.mxu0 %v2732
    %2739 = vmatprep.subr.mxu0 0.0
    %2740 = vmatpush1.msra.mxu0 0.0
    %2741 = vmatprep.subr.mxu0 0.0
    %2742 = vmatpush1.msra.mxu0 0.0
    %2743 = vmatprep.subr.mxu0 0.0
    %2744 = vmatpush1.msra.mxu0 0.0
    %2745 = vmatprep.subr.mxu0 0.0
    %2746 = vmatpush1.msra.mxu0 0.0
    %2747 = vmatprep.subr.mxu0 0.0
    %2748 = vmatpush1.msra.mxu0 0.0
    %2749 = vmatprep.subr.mxu0 0.0
    %2750 = vmatpush1.msra.mxu0 0.0
    %2751 = vmatprep.subr.mxu0 0.0
    %2752 = vmatpush1.msra.mxu0 0.0
    %2753 = vmatprep.subr.mxu0 0.0
    %2754 = vmatpush1.msra.mxu0 0.0
    %2755 = vmatprep.subr.mxu0 0.0
    %2756 = vmatpush1.msra.mxu0 0.0
    %2757 = vmatprep.subr.mxu0 0.0
    %2758 = vmatpush1.msra.mxu0 0.0
    %2759 = vmatprep.subr.mxu0 0.0
    %2760 = vmatpush1.msra.mxu0 0.0
    %2761 = vmatprep.subr.mxu0 0.0
    %2762 = vmatpush1.msra.mxu0 0.0
    %2763 = vmatprep.subr.mxu0 0.0
    %2764 = vmatpush1.msra.mxu0 0.0
    %2765 = vmatprep.subr.mxu0 0.0
    %2766 = vmatpush1.msra.mxu0 0.0
    %2767 = vmatprep.subr.mxu0 0.0
    %2768 = vmatpush1.msra.mxu0 0.0
    %2769 = vmatprep.subr.mxu0 0.0
    %2770 = vmatpush1.msra.mxu0 0.0
    %2771 = vmatprep.subr.mxu0 0.0
    %2772 = vmatpush1.msra.mxu0 0.0
    %2773 = vmatprep.subr.mxu0 0.0
    %2774 = vmatpush1.msra.mxu0 0.0
    %2775 = vmatprep.subr.mxu0 0.0
    %2776 = vmatpush1.msra.mxu0 0.0
    %2777 = vmatprep.subr.mxu0 0.0
    %2778 = vmatpush1.msra.mxu0 0.0
    %2779 = vmatprep.subr.mxu0 0.0
    %2780 = vmatpush1.msra.mxu0 0.0
    %2781 = vmatprep.subr.mxu0 0.0
    %2782 = vmatpush1.msra.mxu0 0.0
    %2783 = vmatprep.subr.mxu0 0.0
    %2784 = vmatpush1.msra.mxu0 0.0
    %2785 = vmatprep.subr.mxu0 0.0
    %2786 = vmatpush1.msra.mxu0 0.0
    %2787 = vmatprep.subr.mxu0 0.0
    %2788 = vmatpush1.msra.mxu0 0.0
    %2789 = vmatprep.subr.mxu0 0.0
    %2790 = vmatpush1.msra.mxu0 0.0
    %2791 = vmatprep.subr.mxu0 0.0
    %2792 = vmatpush1.msra.mxu0 0.0
    %2793 = vmatprep.subr.mxu0 0.0
    %2794 = vmatpush1.msra.mxu0 0.0
    %2795 = vmatprep.subr.mxu0 0.0
    %2796 = vmatpush1.msra.mxu0 0.0
    %2797 = vmatprep.subr.mxu0 0.0
    %2798 = vmatpush1.msra.mxu0 0.0
    %2799 = vmatprep.subr.mxu0 0.0
    %2800 = vmatpush1.msra.mxu0 0.0
    %2801 = vmatprep.mubr.f32.mxu0 0.0
    %2802 = vmatmul.mubr.f32.gmra.mrb[0].mxu0 %v2735
    %v2803 = vpop.f32.mrb[0].mxu0
    %v2804 = vadd.f32 0.0, %v2803
    %v2805 = vpop.f32.mrb[0].mxu0
    %2806 = vdwg.mxu0
    %2808 = vrot.lane.b32.xlu0 %v199, 112
    %v2809 = vpop.permute.xlu0 %2808
    %v2812 = vsel %vm818, %v2267, 0
    %2814 = vmatprep.subr.mxu0 0.0
    %2815 = vmatpush1.msra.mxu0 %v2809
    %2816 = vmatprep.subr.mxu0 0.0
    %2817 = vmatpush1.msra.mxu0 0.0
    %2818 = vmatprep.subr.mxu0 0.0
    %2819 = vmatpush1.msra.mxu0 0.0
    %2820 = vmatprep.subr.mxu0 0.0
    %2821 = vmatpush1.msra.mxu0 0.0
    %2822 = vmatprep.subr.mxu0 0.0
    %2823 = vmatpush1.msra.mxu0 0.0
    %2824 = vmatprep.subr.mxu0 0.0
    %2825 = vmatpush1.msra.mxu0 0.0
    %2826 = vmatprep.subr.mxu0 0.0
    %2827 = vmatpush1.msra.mxu0 0.0
    %2828 = vmatprep.subr.mxu0 0.0
    %2829 = vmatpush1.msra.mxu0 0.0
    %2830 = vmatprep.subr.mxu0 0.0
    %2831 = vmatpush1.msra.mxu0 0.0
    %2832 = vmatprep.subr.mxu0 0.0
    %2833 = vmatpush1.msra.mxu0 0.0
    %2834 = vmatprep.subr.mxu0 0.0
    %2835 = vmatpush1.msra.mxu0 0.0
    %2836 = vmatprep.subr.mxu0 0.0
    %2837 = vmatpush1.msra.mxu0 0.0
    %2838 = vmatprep.subr.mxu0 0.0
    %2839 = vmatpush1.msra.mxu0 0.0
    %2840 = vmatprep.subr.mxu0 0.0
    %2841 = vmatpush1.msra.mxu0 0.0
    %2842 = vmatprep.subr.mxu0 0.0
    %2843 = vmatpush1.msra.mxu0 0.0
    %2844 = vmatprep.subr.mxu0 0.0
    %2845 = vmatpush1.msra.mxu0 0.0
    %2846 = vmatprep.subr.mxu0 0.0
    %2847 = vmatpush1.msra.mxu0 0.0
    %2848 = vmatprep.subr.mxu0 0.0
    %2849 = vmatpush1.msra.mxu0 0.0
    %2850 = vmatprep.subr.mxu0 0.0
    %2851 = vmatpush1.msra.mxu0 0.0
    %2852 = vmatprep.subr.mxu0 0.0
    %2853 = vmatpush1.msra.mxu0 0.0
    %2854 = vmatprep.subr.mxu0 0.0
    %2855 = vmatpush1.msra.mxu0 0.0
    %2856 = vmatprep.subr.mxu0 0.0
    %2857 = vmatpush1.msra.mxu0 0.0
    %2858 = vmatprep.subr.mxu0 0.0
    %2859 = vmatpush1.msra.mxu0 0.0
    %2860 = vmatprep.subr.mxu0 0.0
    %2861 = vmatpush1.msra.mxu0 0.0
    %2862 = vmatprep.subr.mxu0 0.0
    %2863 = vmatpush1.msra.mxu0 0.0
    %2864 = vmatprep.subr.mxu0 0.0
    %2865 = vmatpush1.msra.mxu0 0.0
    %2866 = vmatprep.subr.mxu0 0.0
    %2867 = vmatpush1.msra.mxu0 0.0
    %2868 = vmatprep.subr.mxu0 0.0
    %2869 = vmatpush1.msra.mxu0 0.0
    %2870 = vmatprep.subr.mxu0 0.0
    %2871 = vmatpush1.msra.mxu0 0.0
    %2872 = vmatprep.subr.mxu0 0.0
    %2873 = vmatpush1.msra.mxu0 0.0
    %2874 = vmatprep.subr.mxu0 0.0
    %2875 = vmatpush1.msra.mxu0 0.0
    %2876 = vmatprep.subr.mxu0 0.0
    %2877 = vmatpush1.msra.mxu0 0.0
    %2878 = vmatprep.mubr.f32.mxu0 0.0
    %2879 = vmatmul.mubr.f32.gmra.mrb[0].mxu0 %v2812
    %v2880 = vpop.f32.mrb[0].mxu0
    %v2881 = vadd.f32 0.0, %v2880
    %v2882 = vpop.f32.mrb[0].mxu0
    %2883 = vdwg.mxu0
    %v2884 = vsel %vm204, %v2342, 0.0
    %v2885 = vrot.slane %v2884, 4
    %v2886 = vadd.f32 %v2884, %v2885
    %v2887 = vrot.slane %v2886, 2
    %v2888 = vadd.f32 %v2886, %v2887
    %v2889 = vrot.slane %v2888, 1
    %v2890 = vadd.f32 %v2888, %v2889
    %v2891 = vsel %vm204, %v2419, 0.0
    %v2892 = vrot.slane %v2891, 4
    %v2893 = vadd.f32 %v2891, %v2892
    %v2894 = vrot.slane %v2893, 2
    %v2895 = vadd.f32 %v2893, %v2894
    %v2896 = vrot.slane %v2895, 1
    %v2897 = vadd.f32 %v2895, %v2896
    %v2898 = vsel %vm204, %v2496, 0.0
    %v2899 = vrot.slane %v2898, 4
    %v2900 = vadd.f32 %v2898, %v2899
    %v2901 = vrot.slane %v2900, 2
    %v2902 = vadd.f32 %v2900, %v2901
    %v2903 = vrot.slane %v2902, 1
    %v2904 = vadd.f32 %v2902, %v2903
    %v2905 = vsel %vm204, %v2573, 0.0
    %v2906 = vrot.slane %v2905, 4
    %v2907 = vadd.f32 %v2905, %v2906
    %v2908 = vrot.slane %v2907, 2
    %v2909 = vadd.f32 %v2907, %v2908
    %v2910 = vrot.slane %v2909, 1
    %v2911 = vadd.f32 %v2909, %v2910
    %v2912 = vsel %vm204, %v2650, 0.0
    %v2913 = vrot.slane %v2912, 4
    %v2914 = vadd.f32 %v2912, %v2913
    %v2915 = vrot.slane %v2914, 2
    %v2916 = vadd.f32 %v2914, %v2915
    %v2917 = vrot.slane %v2916, 1
    %v2918 = vadd.f32 %v2916, %v2917
    %v2919 = vsel %vm204, %v2727, 0.0
    %v2920 = vrot.slane %v2919, 4
    %v2921 = vadd.f32 %v2919, %v2920
    %v2922 = vrot.slane %v2921, 2
    %v2923 = vadd.f32 %v2921, %v2922
    %v2924 = vrot.slane %v2923, 1
    %v2925 = vadd.f32 %v2923, %v2924
    %v2926 = vsel %vm204, %v2804, 0.0
    %v2927 = vrot.slane %v2926, 4
    %v2928 = vadd.f32 %v2926, %v2927
    %v2929 = vrot.slane %v2928, 2
    %v2930 = vadd.f32 %v2928, %v2929
    %v2931 = vrot.slane %v2930, 1
    %v2932 = vadd.f32 %v2930, %v2931
    %v2933 = vsel %vm204, %v2881, 0.0
    %v2934 = vrot.slane %v2933, 4
    %v2935 = vadd.f32 %v2933, %v2934
    %v2936 = vrot.slane %v2935, 2
    %v2937 = vadd.f32 %v2935, %v2936
    %v2938 = vrot.slane %v2937, 1
    %v2939 = vadd.f32 %v2937, %v2938
    %v2940 = vmul.f32 %v2890, %v1547
    %v2941 = vmul.f32 %v2897, %v1547
    %v2942 = vmul.f32 %v2904, %v1547
    %v2943 = vmul.f32 %v2911, %v1547
    %v2944 = vmul.f32 %v2918, %v1547
    %v2945 = vmul.f32 %v2925, %v1547
    %v2946 = vmul.f32 %v2932, %v1547
    %v2947 = vmul.f32 %v2939, %v1547
    %2948 = vrot.lane.b32.xlu0 %v155, 96
    %v2949 = vpop.permute.xlu0 %2948
    %2950 = vrot.lane.b32.xlu0 %v155, 32
    %v2951 = vpop.permute.xlu0 %2950
    %v2952 = vsel %vm204, %v2949, 0
    %v2954 = vsel %vm204, %v2951, 0
    %2956 = vmatprep.subr.mxu0 0.0
    %2957 = vmatpush1.xpose.msra.mxu0 %v2954
    %2958 = vmatprep.subr.mxu0 0.0
    %2959 = vmatpush1.xpose.msra.mxu0 0.0
    %2960 = vmatprep.subr.mxu0 0.0
    %2961 = vmatpush1.xpose.msra.mxu0 0.0
    %2962 = vmatprep.subr.mxu0 0.0
    %2963 = vmatpush1.xpose.msra.mxu0 0.0
    %2964 = vmatprep.subr.mxu0 0.0
    %2965 = vmatpush1.xpose.msra.mxu0 0.0
    %2966 = vmatprep.subr.mxu0 0.0
    %2967 = vmatpush1.xpose.msra.mxu0 0.0
    %2968 = vmatprep.subr.mxu0 0.0
    %2969 = vmatpush1.xpose.msra.mxu0 0.0
    %2970 = vmatprep.subr.mxu0 0.0
    %2971 = vmatpush1.xpose.msra.mxu0 0.0
    %2972 = vmatprep.subr.mxu0 0.0
    %2973 = vmatpush1.xpose.msra.mxu0 0.0
    %2974 = vmatprep.subr.mxu0 0.0
    %2975 = vmatpush1.xpose.msra.mxu0 0.0
    %2976 = vmatprep.subr.mxu0 0.0
    %2977 = vmatpush1.xpose.msra.mxu0 0.0
    %2978 = vmatprep.subr.mxu0 0.0
    %2979 = vmatpush1.xpose.msra.mxu0 0.0
    %2980 = vmatprep.subr.mxu0 0.0
    %2981 = vmatpush1.xpose.msra.mxu0 0.0
    %2982 = vmatprep.subr.mxu0 0.0
    %2983 = vmatpush1.xpose.msra.mxu0 0.0
    %2984 = vmatprep.subr.mxu0 0.0
    %2985 = vmatpush1.xpose.msra.mxu0 0.0
    %2986 = vmatprep.subr.mxu0 0.0
    %2987 = vmatpush1.xpose.msra.mxu0 0.0
    %2988 = vmatprep.subr.mxu0 0.0
    %2989 = vmatpush1.xpose.msra.mxu0 0.0
    %2990 = vmatprep.subr.mxu0 0.0
    %2991 = vmatpush1.xpose.msra.mxu0 0.0
    %2992 = vmatprep.subr.mxu0 0.0
    %2993 = vmatpush1.xpose.msra.mxu0 0.0
    %2994 = vmatprep.subr.mxu0 0.0
    %2995 = vmatpush1.xpose.msra.mxu0 0.0
    %2996 = vmatprep.subr.mxu0 0.0
    %2997 = vmatpush1.xpose.msra.mxu0 0.0
    %2998 = vmatprep.subr.mxu0 0.0
    %2999 = vmatpush1.xpose.msra.mxu0 0.0
    %3000 = vmatprep.subr.mxu0 0.0
    %3001 = vmatpush1.xpose.msra.mxu0 0.0
    %3002 = vmatprep.subr.mxu0 0.0
    %3003 = vmatpush1.xpose.msra.mxu0 0.0
    %3004 = vmatprep.subr.mxu0 0.0
    %3005 = vmatpush1.xpose.msra.mxu0 0.0
    %3006 = vmatprep.subr.mxu0 0.0
    %3007 = vmatpush1.xpose.msra.mxu0 0.0
    %3008 = vmatprep.subr.mxu0 0.0
    %3009 = vmatpush1.xpose.msra.mxu0 0.0
    %3010 = vmatprep.subr.mxu0 0.0
    %3011 = vmatpush1.xpose.msra.mxu0 0.0
    %3012 = vmatprep.subr.mxu0 0.0
    %3013 = vmatpush1.xpose.msra.mxu0 0.0
    %3014 = vmatprep.subr.mxu0 0.0
    %3015 = vmatpush1.xpose.msra.mxu0 0.0
    %3016 = vmatprep.subr.mxu0 0.0
    %3017 = vmatpush1.xpose.msra.mxu0 0.0
    %3018 = vmatprep.subr.mxu0 0.0
    %3019 = vmatpush1.xpose.msra.mxu0 0.0
    %3020 = vmatprep.mubr.f32.mxu0 0.0
    %3021 = vmatmul.mubr.f32.gmra.mrb[0].mxu0 %v2952
    %v3022 = vpop.f32.mrb[0].mxu0
    %v3023 = vadd.f32 0.0, %v3022
    %v3024 = vpop.f32.mrb[0].mxu0
    %3025 = vdwg.mxu0
    %3026 = vrot.lane.b32.xlu0 %v161, 96
    %v3027 = vpop.permute.xlu0 %3026
    %3028 = vrot.lane.b32.xlu0 %v161, 32
    %v3029 = vpop.permute.xlu0 %3028
    %v3030 = vsel %vm204, %v3027, 0
    %v3032 = vsel %vm204, %v3029, 0
    %3034 = vmatprep.subr.mxu0 0.0
    %3035 = vmatpush1.xpose.msra.mxu0 %v3032
    %3036 = vmatprep.subr.mxu0 0.0
    %3037 = vmatpush1.xpose.msra.mxu0 0.0
    %3038 = vmatprep.subr.mxu0 0.0
    %3039 = vmatpush1.xpose.msra.mxu0 0.0
    %3040 = vmatprep.subr.mxu0 0.0
    %3041 = vmatpush1.xpose.msra.mxu0 0.0
    %3042 = vmatprep.subr.mxu0 0.0
    %3043 = vmatpush1.xpose.msra.mxu0 0.0
    %3044 = vmatprep.subr.mxu0 0.0
    %3045 = vmatpush1.xpose.msra.mxu0 0.0
    %3046 = vmatprep.subr.mxu0 0.0
    %3047 = vmatpush1.xpose.msra.mxu0 0.0
    %3048 = vmatprep.subr.mxu0 0.0
    %3049 = vmatpush1.xpose.msra.mxu0 0.0
    %3050 = vmatprep.subr.mxu0 0.0
    %3051 = vmatpush1.xpose.msra.mxu0 0.0
    %3052 = vmatprep.subr.mxu0 0.0
    %3053 = vmatpush1.xpose.msra.mxu0 0.0
    %3054 = vmatprep.subr.mxu0 0.0
    %3055 = vmatpush1.xpose.msra.mxu0 0.0
    %3056 = vmatprep.subr.mxu0 0.0
    %3057 = vmatpush1.xpose.msra.mxu0 0.0
    %3058 = vmatprep.subr.mxu0 0.0
    %3059 = vmatpush1.xpose.msra.mxu0 0.0
    %3060 = vmatprep.subr.mxu0 0.0
    %3061 = vmatpush1.xpose.msra.mxu0 0.0
    %3062 = vmatprep.subr.mxu0 0.0
    %3063 = vmatpush1.xpose.msra.mxu0 0.0
    %3064 = vmatprep.subr.mxu0 0.0
    %3065 = vmatpush1.xpose.msra.mxu0 0.0
    %3066 = vmatprep.subr.mxu0 0.0
    %3067 = vmatpush1.xpose.msra.mxu0 0.0
    %3068 = vmatprep.subr.mxu0 0.0
    %3069 = vmatpush1.xpose.msra.mxu0 0.0
    %3070 = vmatprep.subr.mxu0 0.0
    %3071 = vmatpush1.xpose.msra.mxu0 0.0
    %3072 = vmatprep.subr.mxu0 0.0
    %3073 = vmatpush1.xpose.msra.mxu0 0.0
    %3074 = vmatprep.subr.mxu0 0.0
    %3075 = vmatpush1.xpose.msra.mxu0 0.0
    %3076 = vmatprep.subr.mxu0 0.0
    %3077 = vmatpush1.xpose.msra.mxu0 0.0
    %3078 = vmatprep.subr.mxu0 0.0
    %3079 = vmatpush1.xpose.msra.mxu0 0.0
    %3080 = vmatprep.subr.mxu0 0.0
    %3081 = vmatpush1.xpose.msra.mxu0 0.0
    %3082 = vmatprep.subr.mxu0 0.0
    %3083 = vmatpush1.xpose.msra.mxu0 0.0
    %3084 = vmatprep.subr.mxu0 0.0
    %3085 = vmatpush1.xpose.msra.mxu0 0.0
    %3086 = vmatprep.subr.mxu0 0.0
    %3087 = vmatpush1.xpose.msra.mxu0 0.0
    %3088 = vmatprep.subr.mxu0 0.0
    %3089 = vmatpush1.xpose.msra.mxu0 0.0
    %3090 = vmatprep.subr.mxu0 0.0
    %3091 = vmatpush1.xpose.msra.mxu0 0.0
    %3092 = vmatprep.subr.mxu0 0.0
    %3093 = vmatpush1.xpose.msra.mxu0 0.0
    %3094 = vmatprep.subr.mxu0 0.0
    %3095 = vmatpush1.xpose.msra.mxu0 0.0
    %3096 = vmatprep.subr.mxu0 0.0
    %3097 = vmatpush1.xpose.msra.mxu0 0.0
    %3098 = vmatprep.mubr.f32.mxu0 0.0
    %3099 = vmatmul.mubr.f32.gmra.mrb[0].mxu0 %v3030
    %v3100 = vpop.f32.mrb[0].mxu0
    %v3101 = vadd.f32 0.0, %v3100
    %v3102 = vpop.f32.mrb[0].mxu0
    %3103 = vdwg.mxu0
    %3104 = vrot.lane.b32.xlu0 %v167, 96
    %v3105 = vpop.permute.xlu0 %3104
    %3106 = vrot.lane.b32.xlu0 %v167, 32
    %v3107 = vpop.permute.xlu0 %3106
    %v3108 = vsel %vm204, %v3105, 0
    %v3110 = vsel %vm204, %v3107, 0
    %3112 = vmatprep.subr.mxu0 0.0
    %3113 = vmatpush1.xpose.msra.mxu0 %v3110
    %3114 = vmatprep.subr.mxu0 0.0
    %3115 = vmatpush1.xpose.msra.mxu0 0.0
    %3116 = vmatprep.subr.mxu0 0.0
    %3117 = vmatpush1.xpose.msra.mxu0 0.0
    %3118 = vmatprep.subr.mxu0 0.0
    %3119 = vmatpush1.xpose.msra.mxu0 0.0
    %3120 = vmatprep.subr.mxu0 0.0
    %3121 = vmatpush1.xpose.msra.mxu0 0.0
    %3122 = vmatprep.subr.mxu0 0.0
    %3123 = vmatpush1.xpose.msra.mxu0 0.0
    %3124 = vmatprep.subr.mxu0 0.0
    %3125 = vmatpush1.xpose.msra.mxu0 0.0
    %3126 = vmatprep.subr.mxu0 0.0
    %3127 = vmatpush1.xpose.msra.mxu0 0.0
    %3128 = vmatprep.subr.mxu0 0.0
    %3129 = vmatpush1.xpose.msra.mxu0 0.0
    %3130 = vmatprep.subr.mxu0 0.0
    %3131 = vmatpush1.xpose.msra.mxu0 0.0
    %3132 = vmatprep.subr.mxu0 0.0
    %3133 = vmatpush1.xpose.msra.mxu0 0.0
    %3134 = vmatprep.subr.mxu0 0.0
    %3135 = vmatpush1.xpose.msra.mxu0 0.0
    %3136 = vmatprep.subr.mxu0 0.0
    %3137 = vmatpush1.xpose.msra.mxu0 0.0
    %3138 = vmatprep.subr.mxu0 0.0
    %3139 = vmatpush1.xpose.msra.mxu0 0.0
    %3140 = vmatprep.subr.mxu0 0.0
    %3141 = vmatpush1.xpose.msra.mxu0 0.0
    %3142 = vmatprep.subr.mxu0 0.0
    %3143 = vmatpush1.xpose.msra.mxu0 0.0
    %3144 = vmatprep.subr.mxu0 0.0
    %3145 = vmatpush1.xpose.msra.mxu0 0.0
    %3146 = vmatprep.subr.mxu0 0.0
    %3147 = vmatpush1.xpose.msra.mxu0 0.0
    %3148 = vmatprep.subr.mxu0 0.0
    %3149 = vmatpush1.xpose.msra.mxu0 0.0
    %3150 = vmatprep.subr.mxu0 0.0
    %3151 = vmatpush1.xpose.msra.mxu0 0.0
    %3152 = vmatprep.subr.mxu0 0.0
    %3153 = vmatpush1.xpose.msra.mxu0 0.0
    %3154 = vmatprep.subr.mxu0 0.0
    %3155 = vmatpush1.xpose.msra.mxu0 0.0
    %3156 = vmatprep.subr.mxu0 0.0
    %3157 = vmatpush1.xpose.msra.mxu0 0.0
    %3158 = vmatprep.subr.mxu0 0.0
    %3159 = vmatpush1.xpose.msra.mxu0 0.0
    %3160 = vmatprep.subr.mxu0 0.0
    %3161 = vmatpush1.xpose.msra.mxu0 0.0
    %3162 = vmatprep.subr.mxu0 0.0
    %3163 = vmatpush1.xpose.msra.mxu0 0.0
    %3164 = vmatprep.subr.mxu0 0.0
    %3165 = vmatpush1.xpose.msra.mxu0 0.0
    %3166 = vmatprep.subr.mxu0 0.0
    %3167 = vmatpush1.xpose.msra.mxu0 0.0
    %3168 = vmatprep.subr.mxu0 0.0
    %3169 = vmatpush1.xpose.msra.mxu0 0.0
    %3170 = vmatprep.subr.mxu0 0.0
    %3171 = vmatpush1.xpose.msra.mxu0 0.0
    %3172 = vmatprep.subr.mxu0 0.0
    %3173 = vmatpush1.xpose.msra.mxu0 0.0
    %3174 = vmatprep.subr.mxu0 0.0
    %3175 = vmatpush1.xpose.msra.mxu0 0.0
    %3176 = vmatprep.mubr.f32.mxu0 0.0
    %3177 = vmatmul.mubr.f32.gmra.mrb[0].mxu0 %v3108
    %v3178 = vpop.f32.mrb[0].mxu0
    %v3179 = vadd.f32 0.0, %v3178
    %v3180 = vpop.f32.mrb[0].mxu0
    %3181 = vdwg.mxu0
    %3182 = vrot.lane.b32.xlu0 %v173, 96
    %v3183 = vpop.permute.xlu0 %3182
    %3184 = vrot.lane.b32.xlu0 %v173, 32
    %v3185 = vpop.permute.xlu0 %3184
    %v3186 = vsel %vm204, %v3183, 0
    %v3188 = vsel %vm204, %v3185, 0
    %3190 = vmatprep.subr.mxu0 0.0
    %3191 = vmatpush1.xpose.msra.mxu0 %v3188
    %3192 = vmatprep.subr.mxu0 0.0
    %3193 = vmatpush1.xpose.msra.mxu0 0.0
    %3194 = vmatprep.subr.mxu0 0.0
    %3195 = vmatpush1.xpose.msra.mxu0 0.0
    %3196 = vmatprep.subr.mxu0 0.0
    %3197 = vmatpush1.xpose.msra.mxu0 0.0
    %3198 = vmatprep.subr.mxu0 0.0
    %3199 = vmatpush1.xpose.msra.mxu0 0.0
    %3200 = vmatprep.subr.mxu0 0.0
    %3201 = vmatpush1.xpose.msra.mxu0 0.0
    %3202 = vmatprep.subr.mxu0 0.0
    %3203 = vmatpush1.xpose.msra.mxu0 0.0
    %3204 = vmatprep.subr.mxu0 0.0
    %3205 = vmatpush1.xpose.msra.mxu0 0.0
    %3206 = vmatprep.subr.mxu0 0.0
    %3207 = vmatpush1.xpose.msra.mxu0 0.0
    %3208 = vmatprep.subr.mxu0 0.0
    %3209 = vmatpush1.xpose.msra.mxu0 0.0
    %3210 = vmatprep.subr.mxu0 0.0
    %3211 = vmatpush1.xpose.msra.mxu0 0.0
    %3212 = vmatprep.subr.mxu0 0.0
    %3213 = vmatpush1.xpose.msra.mxu0 0.0
    %3214 = vmatprep.subr.mxu0 0.0
    %3215 = vmatpush1.xpose.msra.mxu0 0.0
    %3216 = vmatprep.subr.mxu0 0.0
    %3217 = vmatpush1.xpose.msra.mxu0 0.0
    %3218 = vmatprep.subr.mxu0 0.0
    %3219 = vmatpush1.xpose.msra.mxu0 0.0
    %3220 = vmatprep.subr.mxu0 0.0
    %3221 = vmatpush1.xpose.msra.mxu0 0.0
    %3222 = vmatprep.subr.mxu0 0.0
    %3223 = vmatpush1.xpose.msra.mxu0 0.0
    %3224 = vmatprep.subr.mxu0 0.0
    %3225 = vmatpush1.xpose.msra.mxu0 0.0
    %3226 = vmatprep.subr.mxu0 0.0
    %3227 = vmatpush1.xpose.msra.mxu0 0.0
    %3228 = vmatprep.subr.mxu0 0.0
    %3229 = vmatpush1.xpose.msra.mxu0 0.0
    %3230 = vmatprep.subr.mxu0 0.0
    %3231 = vmatpush1.xpose.msra.mxu0 0.0
    %3232 = vmatprep.subr.mxu0 0.0
    %3233 = vmatpush1.xpose.msra.mxu0 0.0
    %3234 = vmatprep.subr.mxu0 0.0
    %3235 = vmatpush1.xpose.msra.mxu0 0.0
    %3236 = vmatprep.subr.mxu0 0.0
    %3237 = vmatpush1.xpose.msra.mxu0 0.0
    %3238 = vmatprep.subr.mxu0 0.0
    %3239 = vmatpush1.xpose.msra.mxu0 0.0
    %3240 = vmatprep.subr.mxu0 0.0
    %3241 = vmatpush1.xpose.msra.mxu0 0.0
    %3242 = vmatprep.subr.mxu0 0.0
    %3243 = vmatpush1.xpose.msra.mxu0 0.0
    %3244 = vmatprep.subr.mxu0 0.0
    %3245 = vmatpush1.xpose.msra.mxu0 0.0
    %3246 = vmatprep.subr.mxu0 0.0
    %3247 = vmatpush1.xpose.msra.mxu0 0.0
    %3248 = vmatprep.subr.mxu0 0.0
    %3249 = vmatpush1.xpose.msra.mxu0 0.0
    %3250 = vmatprep.subr.mxu0 0.0
    %3251 = vmatpush1.xpose.msra.mxu0 0.0
    %3252 = vmatprep.subr.mxu0 0.0
    %3253 = vmatpush1.xpose.msra.mxu0 0.0
    %3254 = vmatprep.mubr.f32.mxu0 0.0
    %3255 = vmatmul.mubr.f32.gmra.mrb[0].mxu0 %v3186
    %v3256 = vpop.f32.mrb[0].mxu0
    %v3257 = vadd.f32 0.0, %v3256
    %v3258 = vpop.f32.mrb[0].mxu0
    %3259 = vdwg.mxu0
    %3260 = vrot.lane.b32.xlu0 %v179, 96
    %v3261 = vpop.permute.xlu0 %3260
    %3262 = vrot.lane.b32.xlu0 %v179, 32
    %v3263 = vpop.permute.xlu0 %3262
    %v3264 = vsel %vm204, %v3261, 0
    %v3266 = vsel %vm204, %v3263, 0
    %3268 = vmatprep.subr.mxu0 0.0
    %3269 = vmatpush1.xpose.msra.mxu0 %v3266
    %3270 = vmatprep.subr.mxu0 0.0
    %3271 = vmatpush1.xpose.msra.mxu0 0.0
    %3272 = vmatprep.subr.mxu0 0.0
    %3273 = vmatpush1.xpose.msra.mxu0 0.0
    %3274 = vmatprep.subr.mxu0 0.0
    %3275 = vmatpush1.xpose.msra.mxu0 0.0
    %3276 = vmatprep.subr.mxu0 0.0
    %3277 = vmatpush1.xpose.msra.mxu0 0.0
    %3278 = vmatprep.subr.mxu0 0.0
    %3279 = vmatpush1.xpose.msra.mxu0 0.0
    %3280 = vmatprep.subr.mxu0 0.0
    %3281 = vmatpush1.xpose.msra.mxu0 0.0
    %3282 = vmatprep.subr.mxu0 0.0
    %3283 = vmatpush1.xpose.msra.mxu0 0.0
    %3284 = vmatprep.subr.mxu0 0.0
    %3285 = vmatpush1.xpose.msra.mxu0 0.0
    %3286 = vmatprep.subr.mxu0 0.0
    %3287 = vmatpush1.xpose.msra.mxu0 0.0
    %3288 = vmatprep.subr.mxu0 0.0
    %3289 = vmatpush1.xpose.msra.mxu0 0.0
    %3290 = vmatprep.subr.mxu0 0.0
    %3291 = vmatpush1.xpose.msra.mxu0 0.0
    %3292 = vmatprep.subr.mxu0 0.0
    %3293 = vmatpush1.xpose.msra.mxu0 0.0
    %3294 = vmatprep.subr.mxu0 0.0
    %3295 = vmatpush1.xpose.msra.mxu0 0.0
    %3296 = vmatprep.subr.mxu0 0.0
    %3297 = vmatpush1.xpose.msra.mxu0 0.0
    %3298 = vmatprep.subr.mxu0 0.0
    %3299 = vmatpush1.xpose.msra.mxu0 0.0
    %3300 = vmatprep.subr.mxu0 0.0
    %3301 = vmatpush1.xpose.msra.mxu0 0.0
    %3302 = vmatprep.subr.mxu0 0.0
    %3303 = vmatpush1.xpose.msra.mxu0 0.0
    %3304 = vmatprep.subr.mxu0 0.0
    %3305 = vmatpush1.xpose.msra.mxu0 0.0
    %3306 = vmatprep.subr.mxu0 0.0
    %3307 = vmatpush1.xpose.msra.mxu0 0.0
    %3308 = vmatprep.subr.mxu0 0.0
    %3309 = vmatpush1.xpose.msra.mxu0 0.0
    %3310 = vmatprep.subr.mxu0 0.0
    %3311 = vmatpush1.xpose.msra.mxu0 0.0
    %3312 = vmatprep.subr.mxu0 0.0
    %3313 = vmatpush1.xpose.msra.mxu0 0.0
    %3314 = vmatprep.subr.mxu0 0.0
    %3315 = vmatpush1.xpose.msra.mxu0 0.0
    %3316 = vmatprep.subr.mxu0 0.0
    %3317 = vmatpush1.xpose.msra.mxu0 0.0
    %3318 = vmatprep.subr.mxu0 0.0
    %3319 = vmatpush1.xpose.msra.mxu0 0.0
    %3320 = vmatprep.subr.mxu0 0.0
    %3321 = vmatpush1.xpose.msra.mxu0 0.0
    %3322 = vmatprep.subr.mxu0 0.0
    %3323 = vmatpush1.xpose.msra.mxu0 0.0
    %3324 = vmatprep.subr.mxu0 0.0
    %3325 = vmatpush1.xpose.msra.mxu0 0.0
    %3326 = vmatprep.subr.mxu0 0.0
    %3327 = vmatpush1.xpose.msra.mxu0 0.0
    %3328 = vmatprep.subr.mxu0 0.0
    %3329 = vmatpush1.xpose.msra.mxu0 0.0
    %3330 = vmatprep.subr.mxu0 0.0
    %3331 = vmatpush1.xpose.msra.mxu0 0.0
    %3332 = vmatprep.mubr.f32.mxu0 0.0
    %3333 = vmatmul.mubr.f32.gmra.mrb[0].mxu0 %v3264
    %v3334 = vpop.f32.mrb[0].mxu0
    %v3335 = vadd.f32 0.0, %v3334
    %v3336 = vpop.f32.mrb[0].mxu0
    %3337 = vdwg.mxu0
    %3338 = vrot.lane.b32.xlu0 %v185, 96
    %v3339 = vpop.permute.xlu0 %3338
    %3340 = vrot.lane.b32.xlu0 %v185, 32
    %v3341 = vpop.permute.xlu0 %3340
    %v3342 = vsel %vm204, %v3339, 0
    %v3344 = vsel %vm204, %v3341, 0
    %3346 = vmatprep.subr.mxu0 0.0
    %3347 = vmatpush1.xpose.msra.mxu0 %v3344
    %3348 = vmatprep.subr.mxu0 0.0
    %3349 = vmatpush1.xpose.msra.mxu0 0.0
    %3350 = vmatprep.subr.mxu0 0.0
    %3351 = vmatpush1.xpose.msra.mxu0 0.0
    %3352 = vmatprep.subr.mxu0 0.0
    %3353 = vmatpush1.xpose.msra.mxu0 0.0
    %3354 = vmatprep.subr.mxu0 0.0
    %3355 = vmatpush1.xpose.msra.mxu0 0.0
    %3356 = vmatprep.subr.mxu0 0.0
    %3357 = vmatpush1.xpose.msra.mxu0 0.0
    %3358 = vmatprep.subr.mxu0 0.0
    %3359 = vmatpush1.xpose.msra.mxu0 0.0
    %3360 = vmatprep.subr.mxu0 0.0
    %3361 = vmatpush1.xpose.msra.mxu0 0.0
    %3362 = vmatprep.subr.mxu0 0.0
    %3363 = vmatpush1.xpose.msra.mxu0 0.0
    %3364 = vmatprep.subr.mxu0 0.0
    %3365 = vmatpush1.xpose.msra.mxu0 0.0
    %3366 = vmatprep.subr.mxu0 0.0
    %3367 = vmatpush1.xpose.msra.mxu0 0.0
    %3368 = vmatprep.subr.mxu0 0.0
    %3369 = vmatpush1.xpose.msra.mxu0 0.0
    %3370 = vmatprep.subr.mxu0 0.0
    %3371 = vmatpush1.xpose.msra.mxu0 0.0
    %3372 = vmatprep.subr.mxu0 0.0
    %3373 = vmatpush1.xpose.msra.mxu0 0.0
    %3374 = vmatprep.subr.mxu0 0.0
    %3375 = vmatpush1.xpose.msra.mxu0 0.0
    %3376 = vmatprep.subr.mxu0 0.0
    %3377 = vmatpush1.xpose.msra.mxu0 0.0
    %3378 = vmatprep.subr.mxu0 0.0
    %3379 = vmatpush1.xpose.msra.mxu0 0.0
    %3380 = vmatprep.subr.mxu0 0.0
    %3381 = vmatpush1.xpose.msra.mxu0 0.0
    %3382 = vmatprep.subr.mxu0 0.0
    %3383 = vmatpush1.xpose.msra.mxu0 0.0
    %3384 = vmatprep.subr.mxu0 0.0
    %3385 = vmatpush1.xpose.msra.mxu0 0.0
    %3386 = vmatprep.subr.mxu0 0.0
    %3387 = vmatpush1.xpose.msra.mxu0 0.0
    %3388 = vmatprep.subr.mxu0 0.0
    %3389 = vmatpush1.xpose.msra.mxu0 0.0
    %3390 = vmatprep.subr.mxu0 0.0
    %3391 = vmatpush1.xpose.msra.mxu0 0.0
    %3392 = vmatprep.subr.mxu0 0.0
    %3393 = vmatpush1.xpose.msra.mxu0 0.0
    %3394 = vmatprep.subr.mxu0 0.0
    %3395 = vmatpush1.xpose.msra.mxu0 0.0
    %3396 = vmatprep.subr.mxu0 0.0
    %3397 = vmatpush1.xpose.msra.mxu0 0.0
    %3398 = vmatprep.subr.mxu0 0.0
    %3399 = vmatpush1.xpose.msra.mxu0 0.0
    %3400 = vmatprep.subr.mxu0 0.0
    %3401 = vmatpush1.xpose.msra.mxu0 0.0
    %3402 = vmatprep.subr.mxu0 0.0
    %3403 = vmatpush1.xpose.msra.mxu0 0.0
    %3404 = vmatprep.subr.mxu0 0.0
    %3405 = vmatpush1.xpose.msra.mxu0 0.0
    %3406 = vmatprep.subr.mxu0 0.0
    %3407 = vmatpush1.xpose.msra.mxu0 0.0
    %3408 = vmatprep.subr.mxu0 0.0
    %3409 = vmatpush1.xpose.msra.mxu0 0.0
    %3410 = vmatprep.mubr.f32.mxu0 0.0
    %3411 = vmatmul.mubr.f32.gmra.mrb[0].mxu0 %v3342
    %v3412 = vpop.f32.mrb[0].mxu0
    %v3413 = vadd.f32 0.0, %v3412
    %v3414 = vpop.f32.mrb[0].mxu0
    %3415 = vdwg.mxu0
    %3416 = vrot.lane.b32.xlu0 %v191, 96
    %v3417 = vpop.permute.xlu0 %3416
    %3418 = vrot.lane.b32.xlu0 %v191, 32
    %v3419 = vpop.permute.xlu0 %3418
    %v3420 = vsel %vm204, %v3417, 0
    %v3422 = vsel %vm204, %v3419, 0
    %3424 = vmatprep.subr.mxu0 0.0
    %3425 = vmatpush1.xpose.msra.mxu0 %v3422
    %3426 = vmatprep.subr.mxu0 0.0
    %3427 = vmatpush1.xpose.msra.mxu0 0.0
    %3428 = vmatprep.subr.mxu0 0.0
    %3429 = vmatpush1.xpose.msra.mxu0 0.0
    %3430 = vmatprep.subr.mxu0 0.0
    %3431 = vmatpush1.xpose.msra.mxu0 0.0
    %3432 = vmatprep.subr.mxu0 0.0
    %3433 = vmatpush1.xpose.msra.mxu0 0.0
    %3434 = vmatprep.subr.mxu0 0.0
    %3435 = vmatpush1.xpose.msra.mxu0 0.0
    %3436 = vmatprep.subr.mxu0 0.0
    %3437 = vmatpush1.xpose.msra.mxu0 0.0
    %3438 = vmatprep.subr.mxu0 0.0
    %3439 = vmatpush1.xpose.msra.mxu0 0.0
    %3440 = vmatprep.subr.mxu0 0.0
    %3441 = vmatpush1.xpose.msra.mxu0 0.0
    %3442 = vmatprep.subr.mxu0 0.0
    %3443 = vmatpush1.xpose.msra.mxu0 0.0
    %3444 = vmatprep.subr.mxu0 0.0
    %3445 = vmatpush1.xpose.msra.mxu0 0.0
    %3446 = vmatprep.subr.mxu0 0.0
    %3447 = vmatpush1.xpose.msra.mxu0 0.0
    %3448 = vmatprep.subr.mxu0 0.0
    %3449 = vmatpush1.xpose.msra.mxu0 0.0
    %3450 = vmatprep.subr.mxu0 0.0
    %3451 = vmatpush1.xpose.msra.mxu0 0.0
    %3452 = vmatprep.subr.mxu0 0.0
    %3453 = vmatpush1.xpose.msra.mxu0 0.0
    %3454 = vmatprep.subr.mxu0 0.0
    %3455 = vmatpush1.xpose.msra.mxu0 0.0
    %3456 = vmatprep.subr.mxu0 0.0
    %3457 = vmatpush1.xpose.msra.mxu0 0.0
    %3458 = vmatprep.subr.mxu0 0.0
    %3459 = vmatpush1.xpose.msra.mxu0 0.0
    %3460 = vmatprep.subr.mxu0 0.0
    %3461 = vmatpush1.xpose.msra.mxu0 0.0
    %3462 = vmatprep.subr.mxu0 0.0
    %3463 = vmatpush1.xpose.msra.mxu0 0.0
    %3464 = vmatprep.subr.mxu0 0.0
    %3465 = vmatpush1.xpose.msra.mxu0 0.0
    %3466 = vmatprep.subr.mxu0 0.0
    %3467 = vmatpush1.xpose.msra.mxu0 0.0
    %3468 = vmatprep.subr.mxu0 0.0
    %3469 = vmatpush1.xpose.msra.mxu0 0.0
    %3470 = vmatprep.subr.mxu0 0.0
    %3471 = vmatpush1.xpose.msra.mxu0 0.0
    %3472 = vmatprep.subr.mxu0 0.0
    %3473 = vmatpush1.xpose.msra.mxu0 0.0
    %3474 = vmatprep.subr.mxu0 0.0
    %3475 = vmatpush1.xpose.msra.mxu0 0.0
    %3476 = vmatprep.subr.mxu0 0.0
    %3477 = vmatpush1.xpose.msra.mxu0 0.0
    %3478 = vmatprep.subr.mxu0 0.0
    %3479 = vmatpush1.xpose.msra.mxu0 0.0
    %3480 = vmatprep.subr.mxu0 0.0
    %3481 = vmatpush1.xpose.msra.mxu0 0.0
    %3482 = vmatprep.subr.mxu0 0.0
    %3483 = vmatpush1.xpose.msra.mxu0 0.0
    %3484 = vmatprep.subr.mxu0 0.0
    %3485 = vmatpush1.xpose.msra.mxu0 0.0
    %3486 = vmatprep.subr.mxu0 0.0
    %3487 = vmatpush1.xpose.msra.mxu0 0.0
    %3488 = vmatprep.mubr.f32.mxu0 0.0
    %3489 = vmatmul.mubr.f32.gmra.mrb[0].mxu0 %v3420
    %v3490 = vpop.f32.mrb[0].mxu0
    %v3491 = vadd.f32 0.0, %v3490
    %v3492 = vpop.f32.mrb[0].mxu0
    %3493 = vdwg.mxu0
    %3494 = vrot.lane.b32.xlu0 %v197, 96
    %v3495 = vpop.permute.xlu0 %3494
    %3496 = vrot.lane.b32.xlu0 %v197, 32
    %v3497 = vpop.permute.xlu0 %3496
    %v3498 = vsel %vm204, %v3495, 0
    %v3500 = vsel %vm204, %v3497, 0
    %3502 = vmatprep.subr.mxu0 0.0
    %3503 = vmatpush1.xpose.msra.mxu0 %v3500
    %3504 = vmatprep.subr.mxu0 0.0
    %3505 = vmatpush1.xpose.msra.mxu0 0.0
    %3506 = vmatprep.subr.mxu0 0.0
    %3507 = vmatpush1.xpose.msra.mxu0 0.0
    %3508 = vmatprep.subr.mxu0 0.0
    %3509 = vmatpush1.xpose.msra.mxu0 0.0
    %3510 = vmatprep.subr.mxu0 0.0
    %3511 = vmatpush1.xpose.msra.mxu0 0.0
    %3512 = vmatprep.subr.mxu0 0.0
    %3513 = vmatpush1.xpose.msra.mxu0 0.0
    %3514 = vmatprep.subr.mxu0 0.0
    %3515 = vmatpush1.xpose.msra.mxu0 0.0
    %3516 = vmatprep.subr.mxu0 0.0
    %3517 = vmatpush1.xpose.msra.mxu0 0.0
    %3518 = vmatprep.subr.mxu0 0.0
    %3519 = vmatpush1.xpose.msra.mxu0 0.0
    %3520 = vmatprep.subr.mxu0 0.0
    %3521 = vmatpush1.xpose.msra.mxu0 0.0
    %3522 = vmatprep.subr.mxu0 0.0
    %3523 = vmatpush1.xpose.msra.mxu0 0.0
    %3524 = vmatprep.subr.mxu0 0.0
    %3525 = vmatpush1.xpose.msra.mxu0 0.0
    %3526 = vmatprep.subr.mxu0 0.0
    %3527 = vmatpush1.xpose.msra.mxu0 0.0
    %3528 = vmatprep.subr.mxu0 0.0
    %3529 = vmatpush1.xpose.msra.mxu0 0.0
    %3530 = vmatprep.subr.mxu0 0.0
    %3531 = vmatpush1.xpose.msra.mxu0 0.0
    %3532 = vmatprep.subr.mxu0 0.0
    %3533 = vmatpush1.xpose.msra.mxu0 0.0
    %3534 = vmatprep.subr.mxu0 0.0
    %3535 = vmatpush1.xpose.msra.mxu0 0.0
    %3536 = vmatprep.subr.mxu0 0.0
    %3537 = vmatpush1.xpose.msra.mxu0 0.0
    %3538 = vmatprep.subr.mxu0 0.0
    %3539 = vmatpush1.xpose.msra.mxu0 0.0
    %3540 = vmatprep.subr.mxu0 0.0
    %3541 = vmatpush1.xpose.msra.mxu0 0.0
    %3542 = vmatprep.subr.mxu0 0.0
    %3543 = vmatpush1.xpose.msra.mxu0 0.0
    %3544 = vmatprep.subr.mxu0 0.0
    %3545 = vmatpush1.xpose.msra.mxu0 0.0
    %3546 = vmatprep.subr.mxu0 0.0
    %3547 = vmatpush1.xpose.msra.mxu0 0.0
    %3548 = vmatprep.subr.mxu0 0.0
    %3549 = vmatpush1.xpose.msra.mxu0 0.0
    %3550 = vmatprep.subr.mxu0 0.0
    %3551 = vmatpush1.xpose.msra.mxu0 0.0
    %3552 = vmatprep.subr.mxu0 0.0
    %3553 = vmatpush1.xpose.msra.mxu0 0.0
    %3554 = vmatprep.subr.mxu0 0.0
    %3555 = vmatpush1.xpose.msra.mxu0 0.0
    %3556 = vmatprep.subr.mxu0 0.0
    %3557 = vmatpush1.xpose.msra.mxu0 0.0
    %3558 = vmatprep.subr.mxu0 0.0
    %3559 = vmatpush1.xpose.msra.mxu0 0.0
    %3560 = vmatprep.subr.mxu0 0.0
    %3561 = vmatpush1.xpose.msra.mxu0 0.0
    %3562 = vmatprep.subr.mxu0 0.0
    %3563 = vmatpush1.xpose.msra.mxu0 0.0
    %3564 = vmatprep.subr.mxu0 0.0
    %3565 = vmatpush1.xpose.msra.mxu0 0.0
    %3566 = vmatprep.mubr.f32.mxu0 0.0
    %3567 = vmatmul.mubr.f32.gmra.mrb[0].mxu0 %v3498
    %v3568 = vpop.f32.mrb[0].mxu0
    %v3569 = vadd.f32 0.0, %v3568
    %v3570 = vpop.f32.mrb[0].mxu0
    %3571 = vdwg.mxu0
    %v3572 = vsel %vm818, %v3023, -inf
    %3573 = vmax.xlane.f32.xlu0 %v3572
    %v3574 = vpop.xlane.xlu0 %3573
    %v3575 = vsel %vm818, %v3101, -inf
    %3576 = vmax.xlane.f32.xlu0 %v3575
    %v3577 = vpop.xlane.xlu0 %3576
    %v3578 = vsel %vm818, %v3179, -inf
    %3579 = vmax.xlane.f32.xlu0 %v3578
    %v3580 = vpop.xlane.xlu0 %3579
    %v3581 = vsel %vm818, %v3257, -inf
    %3582 = vmax.xlane.f32.xlu0 %v3581
    %v3583 = vpop.xlane.xlu0 %3582
    %v3584 = vsel %vm818, %v3335, -inf
    %3585 = vmax.xlane.f32.xlu0 %v3584
    %v3586 = vpop.xlane.xlu0 %3585
    %v3587 = vsel %vm818, %v3413, -inf
    %3588 = vmax.xlane.f32.xlu0 %v3587
    %v3589 = vpop.xlane.xlu0 %3588
    %v3590 = vsel %vm818, %v3491, -inf
    %3591 = vmax.xlane.f32.xlu0 %v3590
    %v3592 = vpop.xlane.xlu0 %3591
    %v3593 = vsel %vm818, %v3569, -inf
    %3594 = vmax.xlane.f32.xlu0 %v3593
    %v3595 = vpop.xlane.xlu0 %3594
    %v3596 = vsub.f32 %v3023, %v3574
    %v3597 = vsub.f32 %v3101, %v3577
    %v3598 = vsub.f32 %v3179, %v3580
    %v3599 = vsub.f32 %v3257, %v3583
    %v3600 = vsub.f32 %v3335, %v3586
    %v3601 = vsub.f32 %v3413, %v3589
    %v3602 = vsub.f32 %v3491, %v3592
    %v3603 = vsub.f32 %v3569, %v3595
    %v3604 = vmul.f32 %v3596, 1.442695
    %v3605 = vpow.pop %v3604
    %v3606 = vmul.f32 %v3597, 1.442695
    %v3607 = vpow.pop %v3606
    %v3608 = vmul.f32 %v3598, 1.442695
    %v3609 = vpow.pop %v3608
    %v3610 = vmul.f32 %v3599, 1.442695
    %v3611 = vpow.pop %v3610
    %v3612 = vmul.f32 %v3600, 1.442695
    %v3613 = vpow.pop %v3612
    %v3614 = vmul.f32 %v3601, 1.442695
    %v3615 = vpow.pop %v3614
    %v3616 = vmul.f32 %v3602, 1.442695
    %v3617 = vpow.pop %v3616
    %v3618 = vmul.f32 %v3603, 1.442695
    %v3619 = vpow.pop %v3618
    %v3620 = vsel %vm818, %v3605, 0.0
    %3621 = vadd.xlane.f32.xlu0 %v3620
    %v3622 = vpop.xlane.xlu0 %3621
    %v3623 = vsel %vm818, %v3607, 0.0
    %3624 = vadd.xlane.f32.xlu0 %v3623
    %v3625 = vpop.xlane.xlu0 %3624
    %v3626 = vsel %vm818, %v3609, 0.0
    %3627 = vadd.xlane.f32.xlu0 %v3626
    %v3628 = vpop.xlane.xlu0 %3627
    %v3629 = vsel %vm818, %v3611, 0.0
    %3630 = vadd.xlane.f32.xlu0 %v3629
    %v3631 = vpop.xlane.xlu0 %3630
    %v3632 = vsel %vm818, %v3613, 0.0
    %3633 = vadd.xlane.f32.xlu0 %v3632
    %v3634 = vpop.xlane.xlu0 %3633
    %v3635 = vsel %vm818, %v3615, 0.0
    %3636 = vadd.xlane.f32.xlu0 %v3635
    %v3637 = vpop.xlane.xlu0 %3636
    %v3638 = vsel %vm818, %v3617, 0.0
    %3639 = vadd.xlane.f32.xlu0 %v3638
    %v3640 = vpop.xlane.xlu0 %3639
    %v3641 = vsel %vm818, %v3619, 0.0
    %3642 = vadd.xlane.f32.xlu0 %v3641
    %v3643 = vpop.xlane.xlu0 %3642
    %v3644 = vrcp.pop %v3622
    %v3645 = vrcp.pop %v3625
    %v3646 = vrcp.pop %v3628
    %v3647 = vrcp.pop %v3631
    %v3648 = vrcp.pop %v3634
    %v3649 = vrcp.pop %v3637
    %v3650 = vrcp.pop %v3640
    %v3651 = vrcp.pop %v3643
    %v3652 = vmul.f32 %v3605, %v3644
    %v3653 = vmul.f32 %v3607, %v3645
    %v3654 = vmul.f32 %v3609, %v3646
    %v3655 = vmul.f32 %v3611, %v3647
    %v3656 = vmul.f32 %v3613, %v3648
    %v3657 = vmul.f32 %v3615, %v3649
    %v3658 = vmul.f32 %v3617, %v3650
    %v3659 = vmul.f32 %v3619, %v3651
    %3660 = vrot.lane.b32.xlu0 %v157, 96
    %v3661 = vpop.permute.xlu0 %3660
    %v3664 = vsel %vm818, %v3652, 0
    %3666 = vmatprep.subr.mxu0 0.0
    %3667 = vmatpush1.msra.mxu0 %v3661
    %3668 = vmatprep.subr.mxu0 0.0
    %3669 = vmatpush1.msra.mxu0 0.0
    %3670 = vmatprep.subr.mxu0 0.0
    %3671 = vmatpush1.msra.mxu0 0.0
    %3672 = vmatprep.subr.mxu0 0.0
    %3673 = vmatpush1.msra.mxu0 0.0
    %3674 = vmatprep.subr.mxu0 0.0
    %3675 = vmatpush1.msra.mxu0 0.0
    %3676 = vmatprep.subr.mxu0 0.0
    %3677 = vmatpush1.msra.mxu0 0.0
    %3678 = vmatprep.subr.mxu0 0.0
    %3679 = vmatpush1.msra.mxu0 0.0
    %3680 = vmatprep.subr.mxu0 0.0
    %3681 = vmatpush1.msra.mxu0 0.0
    %3682 = vmatprep.subr.mxu0 0.0
    %3683 = vmatpush1.msra.mxu0 0.0
    %3684 = vmatprep.subr.mxu0 0.0
    %3685 = vmatpush1.msra.mxu0 0.0
    %3686 = vmatprep.subr.mxu0 0.0
    %3687 = vmatpush1.msra.mxu0 0.0
    %3688 = vmatprep.subr.mxu0 0.0
    %3689 = vmatpush1.msra.mxu0 0.0
    %3690 = vmatprep.subr.mxu0 0.0
    %3691 = vmatpush1.msra.mxu0 0.0
    %3692 = vmatprep.subr.mxu0 0.0
    %3693 = vmatpush1.msra.mxu0 0.0
    %3694 = vmatprep.subr.mxu0 0.0
    %3695 = vmatpush1.msra.mxu0 0.0
    %3696 = vmatprep.subr.mxu0 0.0
    %3697 = vmatpush1.msra.mxu0 0.0
    %3698 = vmatprep.subr.mxu0 0.0
    %3699 = vmatpush1.msra.mxu0 0.0
    %3700 = vmatprep.subr.mxu0 0.0
    %3701 = vmatpush1.msra.mxu0 0.0
    %3702 = vmatprep.subr.mxu0 0.0
    %3703 = vmatpush1.msra.mxu0 0.0
    %3704 = vmatprep.subr.mxu0 0.0
    %3705 = vmatpush1.msra.mxu0 0.0
    %3706 = vmatprep.subr.mxu0 0.0
    %3707 = vmatpush1.msra.mxu0 0.0
    %3708 = vmatprep.subr.mxu0 0.0
    %3709 = vmatpush1.msra.mxu0 0.0
    %3710 = vmatprep.subr.mxu0 0.0
    %3711 = vmatpush1.msra.mxu0 0.0
    %3712 = vmatprep.subr.mxu0 0.0
    %3713 = vmatpush1.msra.mxu0 0.0
    %3714 = vmatprep.subr.mxu0 0.0
    %3715 = vmatpush1.msra.mxu0 0.0
    %3716 = vmatprep.subr.mxu0 0.0
    %3717 = vmatpush1.msra.mxu0 0.0
    %3718 = vmatprep.subr.mxu0 0.0
    %3719 = vmatpush1.msra.mxu0 0.0
    %3720 = vmatprep.subr.mxu0 0.0
    %3721 = vmatpush1.msra.mxu0 0.0
    %3722 = vmatprep.subr.mxu0 0.0
    %3723 = vmatpush1.msra.mxu0 0.0
    %3724 = vmatprep.subr.mxu0 0.0
    %3725 = vmatpush1.msra.mxu0 0.0
    %3726 = vmatprep.subr.mxu0 0.0
    %3727 = vmatpush1.msra.mxu0 0.0
    %3728 = vmatprep.subr.mxu0 0.0
    %3729 = vmatpush1.msra.mxu0 0.0
    %3730 = vmatprep.mubr.f32.mxu0 0.0
    %3731 = vmatmul.mubr.f32.gmra.mrb[0].mxu0 %v3664
    %v3732 = vpop.f32.mrb[0].mxu0
    %v3733 = vadd.f32 0.0, %v3732
    %v3734 = vpop.f32.mrb[0].mxu0
    %3735 = vdwg.mxu0
    %3736 = vrot.lane.b32.xlu0 %v163, 96
    %v3737 = vpop.permute.xlu0 %3736
    %v3740 = vsel %vm818, %v3653, 0
    %3742 = vmatprep.subr.mxu0 0.0
    %3743 = vmatpush1.msra.mxu0 %v3737
    %3744 = vmatprep.subr.mxu0 0.0
    %3745 = vmatpush1.msra.mxu0 0.0
    %3746 = vmatprep.subr.mxu0 0.0
    %3747 = vmatpush1.msra.mxu0 0.0
    %3748 = vmatprep.subr.mxu0 0.0
    %3749 = vmatpush1.msra.mxu0 0.0
    %3750 = vmatprep.subr.mxu0 0.0
    %3751 = vmatpush1.msra.mxu0 0.0
    %3752 = vmatprep.subr.mxu0 0.0
    %3753 = vmatpush1.msra.mxu0 0.0
    %3754 = vmatprep.subr.mxu0 0.0
    %3755 = vmatpush1.msra.mxu0 0.0
    %3756 = vmatprep.subr.mxu0 0.0
    %3757 = vmatpush1.msra.mxu0 0.0
    %3758 = vmatprep.subr.mxu0 0.0
    %3759 = vmatpush1.msra.mxu0 0.0
    %3760 = vmatprep.subr.mxu0 0.0
    %3761 = vmatpush1.msra.mxu0 0.0
    %3762 = vmatprep.subr.mxu0 0.0
    %3763 = vmatpush1.msra.mxu0 0.0
    %3764 = vmatprep.subr.mxu0 0.0
    %3765 = vmatpush1.msra.mxu0 0.0
    %3766 = vmatprep.subr.mxu0 0.0
    %3767 = vmatpush1.msra.mxu0 0.0
    %3768 = vmatprep.subr.mxu0 0.0
    %3769 = vmatpush1.msra.mxu0 0.0
    %3770 = vmatprep.subr.mxu0 0.0
    %3771 = vmatpush1.msra.mxu0 0.0
    %3772 = vmatprep.subr.mxu0 0.0
    %3773 = vmatpush1.msra.mxu0 0.0
    %3774 = vmatprep.subr.mxu0 0.0
    %3775 = vmatpush1.msra.mxu0 0.0
    %3776 = vmatprep.subr.mxu0 0.0
    %3777 = vmatpush1.msra.mxu0 0.0
    %3778 = vmatprep.subr.mxu0 0.0
    %3779 = vmatpush1.msra.mxu0 0.0
    %3780 = vmatprep.subr.mxu0 0.0
    %3781 = vmatpush1.msra.mxu0 0.0
    %3782 = vmatprep.subr.mxu0 0.0
    %3783 = vmatpush1.msra.mxu0 0.0
    %3784 = vmatprep.subr.mxu0 0.0
    %3785 = vmatpush1.msra.mxu0 0.0
    %3786 = vmatprep.subr.mxu0 0.0
    %3787 = vmatpush1.msra.mxu0 0.0
    %3788 = vmatprep.subr.mxu0 0.0
    %3789 = vmatpush1.msra.mxu0 0.0
    %3790 = vmatprep.subr.mxu0 0.0
    %3791 = vmatpush1.msra.mxu0 0.0
    %3792 = vmatprep.subr.mxu0 0.0
    %3793 = vmatpush1.msra.mxu0 0.0
    %3794 = vmatprep.subr.mxu0 0.0
    %3795 = vmatpush1.msra.mxu0 0.0
    %3796 = vmatprep.subr.mxu0 0.0
    %3797 = vmatpush1.msra.mxu0 0.0
    %3798 = vmatprep.subr.mxu0 0.0
    %3799 = vmatpush1.msra.mxu0 0.0
    %3800 = vmatprep.subr.mxu0 0.0
    %3801 = vmatpush1.msra.mxu0 0.0
    %3802 = vmatprep.subr.mxu0 0.0
    %3803 = vmatpush1.msra.mxu0 0.0
    %3804 = vmatprep.subr.mxu0 0.0
    %3805 = vmatpush1.msra.mxu0 0.0
    %3806 = vmatprep.mubr.f32.mxu0 0.0
    %3807 = vmatmul.mubr.f32.gmra.mrb[0].mxu0 %v3740
    %v3808 = vpop.f32.mrb[0].mxu0
    %v3809 = vadd.f32 0.0, %v3808
    %v3810 = vpop.f32.mrb[0].mxu0
    %3811 = vdwg.mxu0
    %3812 = vrot.lane.b32.xlu0 %v169, 96
    %v3813 = vpop.permute.xlu0 %3812
    %v3816 = vsel %vm818, %v3654, 0
    %3818 = vmatprep.subr.mxu0 0.0
    %3819 = vmatpush1.msra.mxu0 %v3813
    %3820 = vmatprep.subr.mxu0 0.0
    %3821 = vmatpush1.msra.mxu0 0.0
    %3822 = vmatprep.subr.mxu0 0.0
    %3823 = vmatpush1.msra.mxu0 0.0
    %3824 = vmatprep.subr.mxu0 0.0
    %3825 = vmatpush1.msra.mxu0 0.0
    %3826 = vmatprep.subr.mxu0 0.0
    %3827 = vmatpush1.msra.mxu0 0.0
    %3828 = vmatprep.subr.mxu0 0.0
    %3829 = vmatpush1.msra.mxu0 0.0
    %3830 = vmatprep.subr.mxu0 0.0
    %3831 = vmatpush1.msra.mxu0 0.0
    %3832 = vmatprep.subr.mxu0 0.0
    %3833 = vmatpush1.msra.mxu0 0.0
    %3834 = vmatprep.subr.mxu0 0.0
    %3835 = vmatpush1.msra.mxu0 0.0
    %3836 = vmatprep.subr.mxu0 0.0
    %3837 = vmatpush1.msra.mxu0 0.0
    %3838 = vmatprep.subr.mxu0 0.0
    %3839 = vmatpush1.msra.mxu0 0.0
    %3840 = vmatprep.subr.mxu0 0.0
    %3841 = vmatpush1.msra.mxu0 0.0
    %3842 = vmatprep.subr.mxu0 0.0
    %3843 = vmatpush1.msra.mxu0 0.0
    %3844 = vmatprep.subr.mxu0 0.0
    %3845 = vmatpush1.msra.mxu0 0.0
    %3846 = vmatprep.subr.mxu0 0.0
    %3847 = vmatpush1.msra.mxu0 0.0
    %3848 = vmatprep.subr.mxu0 0.0
    %3849 = vmatpush1.msra.mxu0 0.0
    %3850 = vmatprep.subr.mxu0 0.0
    %3851 = vmatpush1.msra.mxu0 0.0
    %3852 = vmatprep.subr.mxu0 0.0
    %3853 = vmatpush1.msra.mxu0 0.0
    %3854 = vmatprep.subr.mxu0 0.0
    %3855 = vmatpush1.msra.mxu0 0.0
    %3856 = vmatprep.subr.mxu0 0.0
    %3857 = vmatpush1.msra.mxu0 0.0
    %3858 = vmatprep.subr.mxu0 0.0
    %3859 = vmatpush1.msra.mxu0 0.0
    %3860 = vmatprep.subr.mxu0 0.0
    %3861 = vmatpush1.msra.mxu0 0.0
    %3862 = vmatprep.subr.mxu0 0.0
    %3863 = vmatpush1.msra.mxu0 0.0
    %3864 = vmatprep.subr.mxu0 0.0
    %3865 = vmatpush1.msra.mxu0 0.0
    %3866 = vmatprep.subr.mxu0 0.0
    %3867 = vmatpush1.msra.mxu0 0.0
    %3868 = vmatprep.subr.mxu0 0.0
    %3869 = vmatpush1.msra.mxu0 0.0
    %3870 = vmatprep.subr.mxu0 0.0
    %3871 = vmatpush1.msra.mxu0 0.0
    %3872 = vmatprep.subr.mxu0 0.0
    %3873 = vmatpush1.msra.mxu0 0.0
    %3874 = vmatprep.subr.mxu0 0.0
    %3875 = vmatpush1.msra.mxu0 0.0
    %3876 = vmatprep.subr.mxu0 0.0
    %3877 = vmatpush1.msra.mxu0 0.0
    %3878 = vmatprep.subr.mxu0 0.0
    %3879 = vmatpush1.msra.mxu0 0.0
    %3880 = vmatprep.subr.mxu0 0.0
    %3881 = vmatpush1.msra.mxu0 0.0
    %3882 = vmatprep.mubr.f32.mxu0 0.0
    %3883 = vmatmul.mubr.f32.gmra.mrb[0].mxu0 %v3816
    %v3884 = vpop.f32.mrb[0].mxu0
    %v3885 = vadd.f32 0.0, %v3884
    %v3886 = vpop.f32.mrb[0].mxu0
    %3887 = vdwg.mxu0
    %3888 = vrot.lane.b32.xlu0 %v175, 96
    %v3889 = vpop.permute.xlu0 %3888
    %v3892 = vsel %vm818, %v3655, 0
    %3894 = vmatprep.subr.mxu0 0.0
    %3895 = vmatpush1.msra.mxu0 %v3889
    %3896 = vmatprep.subr.mxu0 0.0
    %3897 = vmatpush1.msra.mxu0 0.0
    %3898 = vmatprep.subr.mxu0 0.0
    %3899 = vmatpush1.msra.mxu0 0.0
    %3900 = vmatprep.subr.mxu0 0.0
    %3901 = vmatpush1.msra.mxu0 0.0
    %3902 = vmatprep.subr.mxu0 0.0
    %3903 = vmatpush1.msra.mxu0 0.0
    %3904 = vmatprep.subr.mxu0 0.0
    %3905 = vmatpush1.msra.mxu0 0.0
    %3906 = vmatprep.subr.mxu0 0.0
    %3907 = vmatpush1.msra.mxu0 0.0
    %3908 = vmatprep.subr.mxu0 0.0
    %3909 = vmatpush1.msra.mxu0 0.0
    %3910 = vmatprep.subr.mxu0 0.0
    %3911 = vmatpush1.msra.mxu0 0.0
    %3912 = vmatprep.subr.mxu0 0.0
    %3913 = vmatpush1.msra.mxu0 0.0
    %3914 = vmatprep.subr.mxu0 0.0
    %3915 = vmatpush1.msra.mxu0 0.0
    %3916 = vmatprep.subr.mxu0 0.0
    %3917 = vmatpush1.msra.mxu0 0.0
    %3918 = vmatprep.subr.mxu0 0.0
    %3919 = vmatpush1.msra.mxu0 0.0
    %3920 = vmatprep.subr.mxu0 0.0
    %3921 = vmatpush1.msra.mxu0 0.0
    %3922 = vmatprep.subr.mxu0 0.0
    %3923 = vmatpush1.msra.mxu0 0.0
    %3924 = vmatprep.subr.mxu0 0.0
    %3925 = vmatpush1.msra.mxu0 0.0
    %3926 = vmatprep.subr.mxu0 0.0
    %3927 = vmatpush1.msra.mxu0 0.0
    %3928 = vmatprep.subr.mxu0 0.0
    %3929 = vmatpush1.msra.mxu0 0.0
    %3930 = vmatprep.subr.mxu0 0.0
    %3931 = vmatpush1.msra.mxu0 0.0
    %3932 = vmatprep.subr.mxu0 0.0
    %3933 = vmatpush1.msra.mxu0 0.0
    %3934 = vmatprep.subr.mxu0 0.0
    %3935 = vmatpush1.msra.mxu0 0.0
    %3936 = vmatprep.subr.mxu0 0.0
    %3937 = vmatpush1.msra.mxu0 0.0
    %3938 = vmatprep.subr.mxu0 0.0
    %3939 = vmatpush1.msra.mxu0 0.0
    %3940 = vmatprep.subr.mxu0 0.0
    %3941 = vmatpush1.msra.mxu0 0.0
    %3942 = vmatprep.subr.mxu0 0.0
    %3943 = vmatpush1.msra.mxu0 0.0
    %3944 = vmatprep.subr.mxu0 0.0
    %3945 = vmatpush1.msra.mxu0 0.0
    %3946 = vmatprep.subr.mxu0 0.0
    %3947 = vmatpush1.msra.mxu0 0.0
    %3948 = vmatprep.subr.mxu0 0.0
    %3949 = vmatpush1.msra.mxu0 0.0
    %3950 = vmatprep.subr.mxu0 0.0
    %3951 = vmatpush1.msra.mxu0 0.0
    %3952 = vmatprep.subr.mxu0 0.0
    %3953 = vmatpush1.msra.mxu0 0.0
    %3954 = vmatprep.subr.mxu0 0.0
    %3955 = vmatpush1.msra.mxu0 0.0
    %3956 = vmatprep.subr.mxu0 0.0
    %3957 = vmatpush1.msra.mxu0 0.0
    %3958 = vmatprep.mubr.f32.mxu0 0.0
    %3959 = vmatmul.mubr.f32.gmra.mrb[0].mxu0 %v3892
    %v3960 = vpop.f32.mrb[0].mxu0
    %v3961 = vadd.f32 0.0, %v3960
    %v3962 = vpop.f32.mrb[0].mxu0
    %3963 = vdwg.mxu0
    %3964 = vrot.lane.b32.xlu0 %v181, 96
    %v3965 = vpop.permute.xlu0 %3964
    %v3968 = vsel %vm818, %v3656, 0
    %3970 = vmatprep.subr.mxu0 0.0
    %3971 = vmatpush1.msra.mxu0 %v3965
    %3972 = vmatprep.subr.mxu0 0.0
    %3973 = vmatpush1.msra.mxu0 0.0
    %3974 = vmatprep.subr.mxu0 0.0
    %3975 = vmatpush1.msra.mxu0 0.0
    %3976 = vmatprep.subr.mxu0 0.0
    %3977 = vmatpush1.msra.mxu0 0.0
    %3978 = vmatprep.subr.mxu0 0.0
    %3979 = vmatpush1.msra.mxu0 0.0
    %3980 = vmatprep.subr.mxu0 0.0
    %3981 = vmatpush1.msra.mxu0 0.0
    %3982 = vmatprep.subr.mxu0 0.0
    %3983 = vmatpush1.msra.mxu0 0.0
    %3984 = vmatprep.subr.mxu0 0.0
    %3985 = vmatpush1.msra.mxu0 0.0
    %3986 = vmatprep.subr.mxu0 0.0
    %3987 = vmatpush1.msra.mxu0 0.0
    %3988 = vmatprep.subr.mxu0 0.0
    %3989 = vmatpush1.msra.mxu0 0.0
    %3990 = vmatprep.subr.mxu0 0.0
    %3991 = vmatpush1.msra.mxu0 0.0
    %3992 = vmatprep.subr.mxu0 0.0
    %3993 = vmatpush1.msra.mxu0 0.0
    %3994 = vmatprep.subr.mxu0 0.0
    %3995 = vmatpush1.msra.mxu0 0.0
    %3996 = vmatprep.subr.mxu0 0.0
    %3997 = vmatpush1.msra.mxu0 0.0
    %3998 = vmatprep.subr.mxu0 0.0
    %3999 = vmatpush1.msra.mxu0 0.0
    %4000 = vmatprep.subr.mxu0 0.0
    %4001 = vmatpush1.msra.mxu0 0.0
    %4002 = vmatprep.subr.mxu0 0.0
    %4003 = vmatpush1.msra.mxu0 0.0
    %4004 = vmatprep.subr.mxu0 0.0
    %4005 = vmatpush1.msra.mxu0 0.0
    %4006 = vmatprep.subr.mxu0 0.0
    %4007 = vmatpush1.msra.mxu0 0.0
    %4008 = vmatprep.subr.mxu0 0.0
    %4009 = vmatpush1.msra.mxu0 0.0
    %4010 = vmatprep.subr.mxu0 0.0
    %4011 = vmatpush1.msra.mxu0 0.0
    %4012 = vmatprep.subr.mxu0 0.0
    %4013 = vmatpush1.msra.mxu0 0.0
    %4014 = vmatprep.subr.mxu0 0.0
    %4015 = vmatpush1.msra.mxu0 0.0
    %4016 = vmatprep.subr.mxu0 0.0
    %4017 = vmatpush1.msra.mxu0 0.0
    %4018 = vmatprep.subr.mxu0 0.0
    %4019 = vmatpush1.msra.mxu0 0.0
    %4020 = vmatprep.subr.mxu0 0.0
    %4021 = vmatpush1.msra.mxu0 0.0
    %4022 = vmatprep.subr.mxu0 0.0
    %4023 = vmatpush1.msra.mxu0 0.0
    %4024 = vmatprep.subr.mxu0 0.0
    %4025 = vmatpush1.msra.mxu0 0.0
    %4026 = vmatprep.subr.mxu0 0.0
    %4027 = vmatpush1.msra.mxu0 0.0
    %4028 = vmatprep.subr.mxu0 0.0
    %4029 = vmatpush1.msra.mxu0 0.0
    %4030 = vmatprep.subr.mxu0 0.0
    %4031 = vmatpush1.msra.mxu0 0.0
    %4032 = vmatprep.subr.mxu0 0.0
    %4033 = vmatpush1.msra.mxu0 0.0
    %4034 = vmatprep.mubr.f32.mxu0 0.0
    %4035 = vmatmul.mubr.f32.gmra.mrb[0].mxu0 %v3968
    %v4036 = vpop.f32.mrb[0].mxu0
    %v4037 = vadd.f32 0.0, %v4036
    %v4038 = vpop.f32.mrb[0].mxu0
    %4039 = vdwg.mxu0
    %4040 = vrot.lane.b32.xlu0 %v187, 96
    %v4041 = vpop.permute.xlu0 %4040
    %v4044 = vsel %vm818, %v3657, 0
    %4046 = vmatprep.subr.mxu0 0.0
    %4047 = vmatpush1.msra.mxu0 %v4041
    %4048 = vmatprep.subr.mxu0 0.0
    %4049 = vmatpush1.msra.mxu0 0.0
    %4050 = vmatprep.subr.mxu0 0.0
    %4051 = vmatpush1.msra.mxu0 0.0
    %4052 = vmatprep.subr.mxu0 0.0
    %4053 = vmatpush1.msra.mxu0 0.0
    %4054 = vmatprep.subr.mxu0 0.0
    %4055 = vmatpush1.msra.mxu0 0.0
    %4056 = vmatprep.subr.mxu0 0.0
    %4057 = vmatpush1.msra.mxu0 0.0
    %4058 = vmatprep.subr.mxu0 0.0
    %4059 = vmatpush1.msra.mxu0 0.0
    %4060 = vmatprep.subr.mxu0 0.0
    %4061 = vmatpush1.msra.mxu0 0.0
    %4062 = vmatprep.subr.mxu0 0.0
    %4063 = vmatpush1.msra.mxu0 0.0
    %4064 = vmatprep.subr.mxu0 0.0
    %4065 = vmatpush1.msra.mxu0 0.0
    %4066 = vmatprep.subr.mxu0 0.0
    %4067 = vmatpush1.msra.mxu0 0.0
    %4068 = vmatprep.subr.mxu0 0.0
    %4069 = vmatpush1.msra.mxu0 0.0
    %4070 = vmatprep.subr.mxu0 0.0
    %4071 = vmatpush1.msra.mxu0 0.0
    %4072 = vmatprep.subr.mxu0 0.0
    %4073 = vmatpush1.msra.mxu0 0.0
    %4074 = vmatprep.subr.mxu0 0.0
    %4075 = vmatpush1.msra.mxu0 0.0
    %4076 = vmatprep.subr.mxu0 0.0
    %4077 = vmatpush1.msra.mxu0 0.0
    %4078 = vmatprep.subr.mxu0 0.0
    %4079 = vmatpush1.msra.mxu0 0.0
    %4080 = vmatprep.subr.mxu0 0.0
    %4081 = vmatpush1.msra.mxu0 0.0
    %4082 = vmatprep.subr.mxu0 0.0
    %4083 = vmatpush1.msra.mxu0 0.0
    %4084 = vmatprep.subr.mxu0 0.0
    %4085 = vmatpush1.msra.mxu0 0.0
    %4086 = vmatprep.subr.mxu0 0.0
    %4087 = vmatpush1.msra.mxu0 0.0
    %4088 = vmatprep.subr.mxu0 0.0
    %4089 = vmatpush1.msra.mxu0 0.0
    %4090 = vmatprep.subr.mxu0 0.0
    %4091 = vmatpush1.msra.mxu0 0.0
    %4092 = vmatprep.subr.mxu0 0.0
    %4093 = vmatpush1.msra.mxu0 0.0
    %4094 = vmatprep.subr.mxu0 0.0
    %4095 = vmatpush1.msra.mxu0 0.0
    %4096 = vmatprep.subr.mxu0 0.0
    %4097 = vmatpush1.msra.mxu0 0.0
    %4098 = vmatprep.subr.mxu0 0.0
    %4099 = vmatpush1.msra.mxu0 0.0
    %4100 = vmatprep.subr.mxu0 0.0
    %4101 = vmatpush1.msra.mxu0 0.0
    %4102 = vmatprep.subr.mxu0 0.0
    %4103 = vmatpush1.msra.mxu0 0.0
    %4104 = vmatprep.subr.mxu0 0.0
    %4105 = vmatpush1.msra.mxu0 0.0
    %4106 = vmatprep.subr.mxu0 0.0
    %4107 = vmatpush1.msra.mxu0 0.0
    %4108 = vmatprep.subr.mxu0 0.0
    %4109 = vmatpush1.msra.mxu0 0.0
    %4110 = vmatprep.mubr.f32.mxu0 0.0
    %4111 = vmatmul.mubr.f32.gmra.mrb[0].mxu0 %v4044
    %v4112 = vpop.f32.mrb[0].mxu0
    %v4113 = vadd.f32 0.0, %v4112
    %v4114 = vpop.f32.mrb[0].mxu0
    %4115 = vdwg.mxu0
    %4116 = vrot.lane.b32.xlu0 %v193, 96
    %v4117 = vpop.permute.xlu0 %4116
    %v4120 = vsel %vm818, %v3658, 0
    %4122 = vmatprep.subr.mxu0 0.0
    %4123 = vmatpush1.msra.mxu0 %v4117
    %4124 = vmatprep.subr.mxu0 0.0
    %4125 = vmatpush1.msra.mxu0 0.0
    %4126 = vmatprep.subr.mxu0 0.0
    %4127 = vmatpush1.msra.mxu0 0.0
    %4128 = vmatprep.subr.mxu0 0.0
    %4129 = vmatpush1.msra.mxu0 0.0
    %4130 = vmatprep.subr.mxu0 0.0
    %4131 = vmatpush1.msra.mxu0 0.0
    %4132 = vmatprep.subr.mxu0 0.0
    %4133 = vmatpush1.msra.mxu0 0.0
    %4134 = vmatprep.subr.mxu0 0.0
    %4135 = vmatpush1.msra.mxu0 0.0
    %4136 = vmatprep.subr.mxu0 0.0
    %4137 = vmatpush1.msra.mxu0 0.0
    %4138 = vmatprep.subr.mxu0 0.0
    %4139 = vmatpush1.msra.mxu0 0.0
    %4140 = vmatprep.subr.mxu0 0.0
    %4141 = vmatpush1.msra.mxu0 0.0
    %4142 = vmatprep.subr.mxu0 0.0
    %4143 = vmatpush1.msra.mxu0 0.0
    %4144 = vmatprep.subr.mxu0 0.0
    %4145 = vmatpush1.msra.mxu0 0.0
    %4146 = vmatprep.subr.mxu0 0.0
    %4147 = vmatpush1.msra.mxu0 0.0
    %4148 = vmatprep.subr.mxu0 0.0
    %4149 = vmatpush1.msra.mxu0 0.0
    %4150 = vmatprep.subr.mxu0 0.0
    %4151 = vmatpush1.msra.mxu0 0.0
    %4152 = vmatprep.subr.mxu0 0.0
    %4153 = vmatpush1.msra.mxu0 0.0
    %4154 = vmatprep.subr.mxu0 0.0
    %4155 = vmatpush1.msra.mxu0 0.0
    %4156 = vmatprep.subr.mxu0 0.0
    %4157 = vmatpush1.msra.mxu0 0.0
    %4158 = vmatprep.subr.mxu0 0.0
    %4159 = vmatpush1.msra.mxu0 0.0
    %4160 = vmatprep.subr.mxu0 0.0
    %4161 = vmatpush1.msra.mxu0 0.0
    %4162 = vmatprep.subr.mxu0 0.0
    %4163 = vmatpush1.msra.mxu0 0.0
    %4164 = vmatprep.subr.mxu0 0.0
    %4165 = vmatpush1.msra.mxu0 0.0
    %4166 = vmatprep.subr.mxu0 0.0
    %4167 = vmatpush1.msra.mxu0 0.0
    %4168 = vmatprep.subr.mxu0 0.0
    %4169 = vmatpush1.msra.mxu0 0.0
    %4170 = vmatprep.subr.mxu0 0.0
    %4171 = vmatpush1.msra.mxu0 0.0
    %4172 = vmatprep.subr.mxu0 0.0
    %4173 = vmatpush1.msra.mxu0 0.0
    %4174 = vmatprep.subr.mxu0 0.0
    %4175 = vmatpush1.msra.mxu0 0.0
    %4176 = vmatprep.subr.mxu0 0.0
    %4177 = vmatpush1.msra.mxu0 0.0
    %4178 = vmatprep.subr.mxu0 0.0
    %4179 = vmatpush1.msra.mxu0 0.0
    %4180 = vmatprep.subr.mxu0 0.0
    %4181 = vmatpush1.msra.mxu0 0.0
    %4182 = vmatprep.subr.mxu0 0.0
    %4183 = vmatpush1.msra.mxu0 0.0
    %4184 = vmatprep.subr.mxu0 0.0
    %4185 = vmatpush1.msra.mxu0 0.0
    %4186 = vmatprep.mubr.f32.mxu0 0.0
    %4187 = vmatmul.mubr.f32.gmra.mrb[0].mxu0 %v4120
    %v4188 = vpop.f32.mrb[0].mxu0
    %v4189 = vadd.f32 0.0, %v4188
    %v4190 = vpop.f32.mrb[0].mxu0
    %4191 = vdwg.mxu0
    %4192 = vrot.lane.b32.xlu0 %v199, 96
    %v4193 = vpop.permute.xlu0 %4192
    %v4196 = vsel %vm818, %v3659, 0
    %4198 = vmatprep.subr.mxu0 0.0
    %4199 = vmatpush1.msra.mxu0 %v4193
    %4200 = vmatprep.subr.mxu0 0.0
    %4201 = vmatpush1.msra.mxu0 0.0
    %4202 = vmatprep.subr.mxu0 0.0
    %4203 = vmatpush1.msra.mxu0 0.0
    %4204 = vmatprep.subr.mxu0 0.0
    %4205 = vmatpush1.msra.mxu0 0.0
    %4206 = vmatprep.subr.mxu0 0.0
    %4207 = vmatpush1.msra.mxu0 0.0
    %4208 = vmatprep.subr.mxu0 0.0
    %4209 = vmatpush1.msra.mxu0 0.0
    %4210 = vmatprep.subr.mxu0 0.0
    %4211 = vmatpush1.msra.mxu0 0.0
    %4212 = vmatprep.subr.mxu0 0.0
    %4213 = vmatpush1.msra.mxu0 0.0
    %4214 = vmatprep.subr.mxu0 0.0
    %4215 = vmatpush1.msra.mxu0 0.0
    %4216 = vmatprep.subr.mxu0 0.0
    %4217 = vmatpush1.msra.mxu0 0.0
    %4218 = vmatprep.subr.mxu0 0.0
    %4219 = vmatpush1.msra.mxu0 0.0
    %4220 = vmatprep.subr.mxu0 0.0
    %4221 = vmatpush1.msra.mxu0 0.0
    %4222 = vmatprep.subr.mxu0 0.0
    %4223 = vmatpush1.msra.mxu0 0.0
    %4224 = vmatprep.subr.mxu0 0.0
    %4225 = vmatpush1.msra.mxu0 0.0
    %4226 = vmatprep.subr.mxu0 0.0
    %4227 = vmatpush1.msra.mxu0 0.0
    %4228 = vmatprep.subr.mxu0 0.0
    %4229 = vmatpush1.msra.mxu0 0.0
    %4230 = vmatprep.subr.mxu0 0.0
    %4231 = vmatpush1.msra.mxu0 0.0
    %4232 = vmatprep.subr.mxu0 0.0
    %4233 = vmatpush1.msra.mxu0 0.0
    %4234 = vmatprep.subr.mxu0 0.0
    %4235 = vmatpush1.msra.mxu0 0.0
    %4236 = vmatprep.subr.mxu0 0.0
    %4237 = vmatpush1.msra.mxu0 0.0
    %4238 = vmatprep.subr.mxu0 0.0
    %4239 = vmatpush1.msra.mxu0 0.0
    %4240 = vmatprep.subr.mxu0 0.0
    %4241 = vmatpush1.msra.mxu0 0.0
    %4242 = vmatprep.subr.mxu0 0.0
    %4243 = vmatpush1.msra.mxu0 0.0
    %4244 = vmatprep.subr.mxu0 0.0
    %4245 = vmatpush1.msra.mxu0 0.0
    %4246 = vmatprep.subr.mxu0 0.0
    %4247 = vmatpush1.msra.mxu0 0.0
    %4248 = vmatprep.subr.mxu0 0.0
    %4249 = vmatpush1.msra.mxu0 0.0
    %4250 = vmatprep.subr.mxu0 0.0
    %4251 = vmatpush1.msra.mxu0 0.0
    %4252 = vmatprep.subr.mxu0 0.0
    %4253 = vmatpush1.msra.mxu0 0.0
    %4254 = vmatprep.subr.mxu0 0.0
    %4255 = vmatpush1.msra.mxu0 0.0
    %4256 = vmatprep.subr.mxu0 0.0
    %4257 = vmatpush1.msra.mxu0 0.0
    %4258 = vmatprep.subr.mxu0 0.0
    %4259 = vmatpush1.msra.mxu0 0.0
    %4260 = vmatprep.subr.mxu0 0.0
    %4261 = vmatpush1.msra.mxu0 0.0
    %4262 = vmatprep.mubr.f32.mxu0 0.0
    %4263 = vmatmul.mubr.f32.gmra.mrb[0].mxu0 %v4196
    %v4264 = vpop.f32.mrb[0].mxu0
    %v4265 = vadd.f32 0.0, %v4264
    %v4266 = vpop.f32.mrb[0].mxu0
    %4267 = vdwg.mxu0
    %v4268 = vsel %vm204, %v3733, 0.0
    %v4269 = vrot.slane %v4268, 4
    %v4270 = vadd.f32 %v4268, %v4269
    %v4271 = vrot.slane %v4270, 2
    %v4272 = vadd.f32 %v4270, %v4271
    %v4273 = vrot.slane %v4272, 1
    %v4274 = vadd.f32 %v4272, %v4273
    %v4275 = vsel %vm204, %v3809, 0.0
    %v4276 = vrot.slane %v4275, 4
    %v4277 = vadd.f32 %v4275, %v4276
    %v4278 = vrot.slane %v4277, 2
    %v4279 = vadd.f32 %v4277, %v4278
    %v4280 = vrot.slane %v4279, 1
    %v4281 = vadd.f32 %v4279, %v4280
    %v4282 = vsel %vm204, %v3885, 0.0
    %v4283 = vrot.slane %v4282, 4
    %v4284 = vadd.f32 %v4282, %v4283
    %v4285 = vrot.slane %v4284, 2
    %v4286 = vadd.f32 %v4284, %v4285
    %v4287 = vrot.slane %v4286, 1
    %v4288 = vadd.f32 %v4286, %v4287
    %v4289 = vsel %vm204, %v3961, 0.0
    %v4290 = vrot.slane %v4289, 4
    %v4291 = vadd.f32 %v4289, %v4290
    %v4292 = vrot.slane %v4291, 2
    %v4293 = vadd.f32 %v4291, %v4292
    %v4294 = vrot.slane %v4293, 1
    %v4295 = vadd.f32 %v4293, %v4294
    %v4296 = vsel %vm204, %v4037, 0.0
    %v4297 = vrot.slane %v4296, 4
    %v4298 = vadd.f32 %v4296, %v4297
    %v4299 = vrot.slane %v4298, 2
    %v4300 = vadd.f32 %v4298, %v4299
    %v4301 = vrot.slane %v4300, 1
    %v4302 = vadd.f32 %v4300, %v4301
    %v4303 = vsel %vm204, %v4113, 0.0
    %v4304 = vrot.slane %v4303, 4
    %v4305 = vadd.f32 %v4303, %v4304
    %v4306 = vrot.slane %v4305, 2
    %v4307 = vadd.f32 %v4305, %v4306
    %v4308 = vrot.slane %v4307, 1
    %v4309 = vadd.f32 %v4307, %v4308
    %v4310 = vsel %vm204, %v4189, 0.0
    %v4311 = vrot.slane %v4310, 4
    %v4312 = vadd.f32 %v4310, %v4311
    %v4313 = vrot.slane %v4312, 2
    %v4314 = vadd.f32 %v4312, %v4313
    %v4315 = vrot.slane %v4314, 1
    %v4316 = vadd.f32 %v4314, %v4315
    %v4317 = vsel %vm204, %v4265, 0.0
    %v4318 = vrot.slane %v4317, 4
    %v4319 = vadd.f32 %v4317, %v4318
    %v4320 = vrot.slane %v4319, 2
    %v4321 = vadd.f32 %v4319, %v4320
    %v4322 = vrot.slane %v4321, 1
    %v4323 = vadd.f32 %v4321, %v4322
    %v4324 = vmul.f32 %v4274, %v1547
    %v4325 = vmul.f32 %v4281, %v1547
    %v4326 = vmul.f32 %v4288, %v1547
    %v4327 = vmul.f32 %v4295, %v1547
    %v4328 = vmul.f32 %v4302, %v1547
    %v4329 = vmul.f32 %v4309, %v1547
    %v4330 = vmul.f32 %v4316, %v1547
    %v4331 = vmul.f32 %v4323, %v1547
    %4332 = vrot.lane.b32.xlu0 %v155, 80
    %v4333 = vpop.permute.xlu0 %4332
    %4334 = vrot.lane.b32.xlu0 %v155, 16
    %v4335 = vpop.permute.xlu0 %4334
    %v4336 = vsel %vm204, %v4333, 0
    %v4338 = vsel %vm204, %v4335, 0
    %4340 = vmatprep.subr.mxu0 0.0
    %4341 = vmatpush1.xpose.msra.mxu0 %v4338
    %4342 = vmatprep.subr.mxu0 0.0
    %4343 = vmatpush1.xpose.msra.mxu0 0.0
    %4344 = vmatprep.subr.mxu0 0.0
    %4345 = vmatpush1.xpose.msra.mxu0 0.0
    %4346 = vmatprep.subr.mxu0 0.0
    %4347 = vmatpush1.xpose.msra.mxu0 0.0
    %4348 = vmatprep.subr.mxu0 0.0
    %4349 = vmatpush1.xpose.msra.mxu0 0.0
    %4350 = vmatprep.subr.mxu0 0.0
    %4351 = vmatpush1.xpose.msra.mxu0 0.0
    %4352 = vmatprep.subr.mxu0 0.0
    %4353 = vmatpush1.xpose.msra.mxu0 0.0
    %4354 = vmatprep.subr.mxu0 0.0
    %4355 = vmatpush1.xpose.msra.mxu0 0.0
    %4356 = vmatprep.subr.mxu0 0.0
    %4357 = vmatpush1.xpose.msra.mxu0 0.0
    %4358 = vmatprep.subr.mxu0 0.0
    %4359 = vmatpush1.xpose.msra.mxu0 0.0
    %4360 = vmatprep.subr.mxu0 0.0
    %4361 = vmatpush1.xpose.msra.mxu0 0.0
    %4362 = vmatprep.subr.mxu0 0.0
    %4363 = vmatpush1.xpose.msra.mxu0 0.0
    %4364 = vmatprep.subr.mxu0 0.0
    %4365 = vmatpush1.xpose.msra.mxu0 0.0
    %4366 = vmatprep.subr.mxu0 0.0
    %4367 = vmatpush1.xpose.msra.mxu0 0.0
    %4368 = vmatprep.subr.mxu0 0.0
    %4369 = vmatpush1.xpose.msra.mxu0 0.0
    %4370 = vmatprep.subr.mxu0 0.0
    %4371 = vmatpush1.xpose.msra.mxu0 0.0
    %4372 = vmatprep.subr.mxu0 0.0
    %4373 = vmatpush1.xpose.msra.mxu0 0.0
    %4374 = vmatprep.subr.mxu0 0.0
    %4375 = vmatpush1.xpose.msra.mxu0 0.0
    %4376 = vmatprep.subr.mxu0 0.0
    %4377 = vmatpush1.xpose.msra.mxu0 0.0
    %4378 = vmatprep.subr.mxu0 0.0
    %4379 = vmatpush1.xpose.msra.mxu0 0.0
    %4380 = vmatprep.subr.mxu0 0.0
    %4381 = vmatpush1.xpose.msra.mxu0 0.0
    %4382 = vmatprep.subr.mxu0 0.0
    %4383 = vmatpush1.xpose.msra.mxu0 0.0
    %4384 = vmatprep.subr.mxu0 0.0
    %4385 = vmatpush1.xpose.msra.mxu0 0.0
    %4386 = vmatprep.subr.mxu0 0.0
    %4387 = vmatpush1.xpose.msra.mxu0 0.0
    %4388 = vmatprep.subr.mxu0 0.0
    %4389 = vmatpush1.xpose.msra.mxu0 0.0
    %4390 = vmatprep.subr.mxu0 0.0
    %4391 = vmatpush1.xpose.msra.mxu0 0.0
    %4392 = vmatprep.subr.mxu0 0.0
    %4393 = vmatpush1.xpose.msra.mxu0 0.0
    %4394 = vmatprep.subr.mxu0 0.0
    %4395 = vmatpush1.xpose.msra.mxu0 0.0
    %4396 = vmatprep.subr.mxu0 0.0
    %4397 = vmatpush1.xpose.msra.mxu0 0.0
    %4398 = vmatprep.subr.mxu0 0.0
    %4399 = vmatpush1.xpose.msra.mxu0 0.0
    %4400 = vmatprep.subr.mxu0 0.0
    %4401 = vmatpush1.xpose.msra.mxu0 0.0
    %4402 = vmatprep.subr.mxu0 0.0
    %4403 = vmatpush1.xpose.msra.mxu0 0.0
    %4404 = vmatprep.mubr.f32.mxu0 0.0
    %4405 = vmatmul.mubr.f32.gmra.mrb[0].mxu0 %v4336
    %v4406 = vpop.f32.mrb[0].mxu0
    %v4407 = vadd.f32 0.0, %v4406
    %v4408 = vpop.f32.mrb[0].mxu0
    %4409 = vdwg.mxu0
    %4410 = vrot.lane.b32.xlu0 %v161, 80
    %v4411 = vpop.permute.xlu0 %4410
    %4412 = vrot.lane.b32.xlu0 %v161, 16
    %v4413 = vpop.permute.xlu0 %4412
    %v4414 = vsel %vm204, %v4411, 0
    %v4416 = vsel %vm204, %v4413, 0
    %4418 = vmatprep.subr.mxu0 0.0
    %4419 = vmatpush1.xpose.msra.mxu0 %v4416
    %4420 = vmatprep.subr.mxu0 0.0
    %4421 = vmatpush1.xpose.msra.mxu0 0.0
    %4422 = vmatprep.subr.mxu0 0.0
    %4423 = vmatpush1.xpose.msra.mxu0 0.0
    %4424 = vmatprep.subr.mxu0 0.0
    %4425 = vmatpush1.xpose.msra.mxu0 0.0
    %4426 = vmatprep.subr.mxu0 0.0
    %4427 = vmatpush1.xpose.msra.mxu0 0.0
    %4428 = vmatprep.subr.mxu0 0.0
    %4429 = vmatpush1.xpose.msra.mxu0 0.0
    %4430 = vmatprep.subr.mxu0 0.0
    %4431 = vmatpush1.xpose.msra.mxu0 0.0
    %4432 = vmatprep.subr.mxu0 0.0
    %4433 = vmatpush1.xpose.msra.mxu0 0.0
    %4434 = vmatprep.subr.mxu0 0.0
    %4435 = vmatpush1.xpose.msra.mxu0 0.0
    %4436 = vmatprep.subr.mxu0 0.0
    %4437 = vmatpush1.xpose.msra.mxu0 0.0
    %4438 = vmatprep.subr.mxu0 0.0
    %4439 = vmatpush1.xpose.msra.mxu0 0.0
    %4440 = vmatprep.subr.mxu0 0.0
    %4441 = vmatpush1.xpose.msra.mxu0 0.0
    %4442 = vmatprep.subr.mxu0 0.0
    %4443 = vmatpush1.xpose.msra.mxu0 0.0
    %4444 = vmatprep.subr.mxu0 0.0
    %4445 = vmatpush1.xpose.msra.mxu0 0.0
    %4446 = vmatprep.subr.mxu0 0.0
    %4447 = vmatpush1.xpose.msra.mxu0 0.0
    %4448 = vmatprep.subr.mxu0 0.0
    %4449 = vmatpush1.xpose.msra.mxu0 0.0
    %4450 = vmatprep.subr.mxu0 0.0
    %4451 = vmatpush1.xpose.msra.mxu0 0.0
    %4452 = vmatprep.subr.mxu0 0.0
    %4453 = vmatpush1.xpose.msra.mxu0 0.0
    %4454 = vmatprep.subr.mxu0 0.0
    %4455 = vmatpush1.xpose.msra.mxu0 0.0
    %4456 = vmatprep.subr.mxu0 0.0
    %4457 = vmatpush1.xpose.msra.mxu0 0.0
    %4458 = vmatprep.subr.mxu0 0.0
    %4459 = vmatpush1.xpose.msra.mxu0 0.0
    %4460 = vmatprep.subr.mxu0 0.0
    %4461 = vmatpush1.xpose.msra.mxu0 0.0
    %4462 = vmatprep.subr.mxu0 0.0
    %4463 = vmatpush1.xpose.msra.mxu0 0.0
    %4464 = vmatprep.subr.mxu0 0.0
    %4465 = vmatpush1.xpose.msra.mxu0 0.0
    %4466 = vmatprep.subr.mxu0 0.0
    %4467 = vmatpush1.xpose.msra.mxu0 0.0
    %4468 = vmatprep.subr.mxu0 0.0
    %4469 = vmatpush1.xpose.msra.mxu0 0.0
    %4470 = vmatprep.subr.mxu0 0.0
    %4471 = vmatpush1.xpose.msra.mxu0 0.0
    %4472 = vmatprep.subr.mxu0 0.0
    %4473 = vmatpush1.xpose.msra.mxu0 0.0
    %4474 = vmatprep.subr.mxu0 0.0
    %4475 = vmatpush1.xpose.msra.mxu0 0.0
    %4476 = vmatprep.subr.mxu0 0.0
    %4477 = vmatpush1.xpose.msra.mxu0 0.0
    %4478 = vmatprep.subr.mxu0 0.0
    %4479 = vmatpush1.xpose.msra.mxu0 0.0
    %4480 = vmatprep.subr.mxu0 0.0
    %4481 = vmatpush1.xpose.msra.mxu0 0.0
    %4482 = vmatprep.mubr.f32.mxu0 0.0
    %4483 = vmatmul.mubr.f32.gmra.mrb[0].mxu0 %v4414
    %v4484 = vpop.f32.mrb[0].mxu0
    %v4485 = vadd.f32 0.0, %v4484
    %v4486 = vpop.f32.mrb[0].mxu0
    %4487 = vdwg.mxu0
    %4488 = vrot.lane.b32.xlu0 %v167, 80
    %v4489 = vpop.permute.xlu0 %4488
    %4490 = vrot.lane.b32.xlu0 %v167, 16
    %v4491 = vpop.permute.xlu0 %4490
    %v4492 = vsel %vm204, %v4489, 0
    %v4494 = vsel %vm204, %v4491, 0
    %4496 = vmatprep.subr.mxu0 0.0
    %4497 = vmatpush1.xpose.msra.mxu0 %v4494
    %4498 = vmatprep.subr.mxu0 0.0
    %4499 = vmatpush1.xpose.msra.mxu0 0.0
    %4500 = vmatprep.subr.mxu0 0.0
    %4501 = vmatpush1.xpose.msra.mxu0 0.0
    %4502 = vmatprep.subr.mxu0 0.0
    %4503 = vmatpush1.xpose.msra.mxu0 0.0
    %4504 = vmatprep.subr.mxu0 0.0
    %4505 = vmatpush1.xpose.msra.mxu0 0.0
    %4506 = vmatprep.subr.mxu0 0.0
    %4507 = vmatpush1.xpose.msra.mxu0 0.0
    %4508 = vmatprep.subr.mxu0 0.0
    %4509 = vmatpush1.xpose.msra.mxu0 0.0
    %4510 = vmatprep.subr.mxu0 0.0
    %4511 = vmatpush1.xpose.msra.mxu0 0.0
    %4512 = vmatprep.subr.mxu0 0.0
    %4513 = vmatpush1.xpose.msra.mxu0 0.0
    %4514 = vmatprep.subr.mxu0 0.0
    %4515 = vmatpush1.xpose.msra.mxu0 0.0
    %4516 = vmatprep.subr.mxu0 0.0
    %4517 = vmatpush1.xpose.msra.mxu0 0.0
    %4518 = vmatprep.subr.mxu0 0.0
    %4519 = vmatpush1.xpose.msra.mxu0 0.0
    %4520 = vmatprep.subr.mxu0 0.0
    %4521 = vmatpush1.xpose.msra.mxu0 0.0
    %4522 = vmatprep.subr.mxu0 0.0
    %4523 = vmatpush1.xpose.msra.mxu0 0.0
    %4524 = vmatprep.subr.mxu0 0.0
    %4525 = vmatpush1.xpose.msra.mxu0 0.0
    %4526 = vmatprep.subr.mxu0 0.0
    %4527 = vmatpush1.xpose.msra.mxu0 0.0
    %4528 = vmatprep.subr.mxu0 0.0
    %4529 = vmatpush1.xpose.msra.mxu0 0.0
    %4530 = vmatprep.subr.mxu0 0.0
    %4531 = vmatpush1.xpose.msra.mxu0 0.0
    %4532 = vmatprep.subr.mxu0 0.0
    %4533 = vmatpush1.xpose.msra.mxu0 0.0
    %4534 = vmatprep.subr.mxu0 0.0
    %4535 = vmatpush1.xpose.msra.mxu0 0.0
    %4536 = vmatprep.subr.mxu0 0.0
    %4537 = vmatpush1.xpose.msra.mxu0 0.0
    %4538 = vmatprep.subr.mxu0 0.0
    %4539 = vmatpush1.xpose.msra.mxu0 0.0
    %4540 = vmatprep.subr.mxu0 0.0
    %4541 = vmatpush1.xpose.msra.mxu0 0.0
    %4542 = vmatprep.subr.mxu0 0.0
    %4543 = vmatpush1.xpose.msra.mxu0 0.0
    %4544 = vmatprep.subr.mxu0 0.0
    %4545 = vmatpush1.xpose.msra.mxu0 0.0
    %4546 = vmatprep.subr.mxu0 0.0
    %4547 = vmatpush1.xpose.msra.mxu0 0.0
    %4548 = vmatprep.subr.mxu0 0.0
    %4549 = vmatpush1.xpose.msra.mxu0 0.0
    %4550 = vmatprep.subr.mxu0 0.0
    %4551 = vmatpush1.xpose.msra.mxu0 0.0
    %4552 = vmatprep.subr.mxu0 0.0
    %4553 = vmatpush1.xpose.msra.mxu0 0.0
    %4554 = vmatprep.subr.mxu0 0.0
    %4555 = vmatpush1.xpose.msra.mxu0 0.0
    %4556 = vmatprep.subr.mxu0 0.0
    %4557 = vmatpush1.xpose.msra.mxu0 0.0
    %4558 = vmatprep.subr.mxu0 0.0
    %4559 = vmatpush1.xpose.msra.mxu0 0.0
    %4560 = vmatprep.mubr.f32.mxu0 0.0
    %4561 = vmatmul.mubr.f32.gmra.mrb[0].mxu0 %v4492
    %v4562 = vpop.f32.mrb[0].mxu0
    %v4563 = vadd.f32 0.0, %v4562
    %v4564 = vpop.f32.mrb[0].mxu0
    %4565 = vdwg.mxu0
    %4566 = vrot.lane.b32.xlu0 %v173, 80
    %v4567 = vpop.permute.xlu0 %4566
    %4568 = vrot.lane.b32.xlu0 %v173, 16
    %v4569 = vpop.permute.xlu0 %4568
    %v4570 = vsel %vm204, %v4567, 0
    %v4572 = vsel %vm204, %v4569, 0
    %4574 = vmatprep.subr.mxu0 0.0
    %4575 = vmatpush1.xpose.msra.mxu0 %v4572
    %4576 = vmatprep.subr.mxu0 0.0
    %4577 = vmatpush1.xpose.msra.mxu0 0.0
    %4578 = vmatprep.subr.mxu0 0.0
    %4579 = vmatpush1.xpose.msra.mxu0 0.0
    %4580 = vmatprep.subr.mxu0 0.0
    %4581 = vmatpush1.xpose.msra.mxu0 0.0
    %4582 = vmatprep.subr.mxu0 0.0
    %4583 = vmatpush1.xpose.msra.mxu0 0.0
    %4584 = vmatprep.subr.mxu0 0.0
    %4585 = vmatpush1.xpose.msra.mxu0 0.0
    %4586 = vmatprep.subr.mxu0 0.0
    %4587 = vmatpush1.xpose.msra.mxu0 0.0
    %4588 = vmatprep.subr.mxu0 0.0
    %4589 = vmatpush1.xpose.msra.mxu0 0.0
    %4590 = vmatprep.subr.mxu0 0.0
    %4591 = vmatpush1.xpose.msra.mxu0 0.0
    %4592 = vmatprep.subr.mxu0 0.0
    %4593 = vmatpush1.xpose.msra.mxu0 0.0
    %4594 = vmatprep.subr.mxu0 0.0
    %4595 = vmatpush1.xpose.msra.mxu0 0.0
    %4596 = vmatprep.subr.mxu0 0.0
    %4597 = vmatpush1.xpose.msra.mxu0 0.0
    %4598 = vmatprep.subr.mxu0 0.0
    %4599 = vmatpush1.xpose.msra.mxu0 0.0
    %4600 = vmatprep.subr.mxu0 0.0
    %4601 = vmatpush1.xpose.msra.mxu0 0.0
    %4602 = vmatprep.subr.mxu0 0.0
    %4603 = vmatpush1.xpose.msra.mxu0 0.0
    %4604 = vmatprep.subr.mxu0 0.0
    %4605 = vmatpush1.xpose.msra.mxu0 0.0
    %4606 = vmatprep.subr.mxu0 0.0
    %4607 = vmatpush1.xpose.msra.mxu0 0.0
    %4608 = vmatprep.subr.mxu0 0.0
    %4609 = vmatpush1.xpose.msra.mxu0 0.0
    %4610 = vmatprep.subr.mxu0 0.0
    %4611 = vmatpush1.xpose.msra.mxu0 0.0
    %4612 = vmatprep.subr.mxu0 0.0
    %4613 = vmatpush1.xpose.msra.mxu0 0.0
    %4614 = vmatprep.subr.mxu0 0.0
    %4615 = vmatpush1.xpose.msra.mxu0 0.0
    %4616 = vmatprep.subr.mxu0 0.0
    %4617 = vmatpush1.xpose.msra.mxu0 0.0
    %4618 = vmatprep.subr.mxu0 0.0
    %4619 = vmatpush1.xpose.msra.mxu0 0.0
    %4620 = vmatprep.subr.mxu0 0.0
    %4621 = vmatpush1.xpose.msra.mxu0 0.0
    %4622 = vmatprep.subr.mxu0 0.0
    %4623 = vmatpush1.xpose.msra.mxu0 0.0
    %4624 = vmatprep.subr.mxu0 0.0
    %4625 = vmatpush1.xpose.msra.mxu0 0.0
    %4626 = vmatprep.subr.mxu0 0.0
    %4627 = vmatpush1.xpose.msra.mxu0 0.0
    %4628 = vmatprep.subr.mxu0 0.0
    %4629 = vmatpush1.xpose.msra.mxu0 0.0
    %4630 = vmatprep.subr.mxu0 0.0
    %4631 = vmatpush1.xpose.msra.mxu0 0.0
    %4632 = vmatprep.subr.mxu0 0.0
    %4633 = vmatpush1.xpose.msra.mxu0 0.0
    %4634 = vmatprep.subr.mxu0 0.0
    %4635 = vmatpush1.xpose.msra.mxu0 0.0
    %4636 = vmatprep.subr.mxu0 0.0
    %4637 = vmatpush1.xpose.msra.mxu0 0.0
    %4638 = vmatprep.mubr.f32.mxu0 0.0
    %4639 = vmatmul.mubr.f32.gmra.mrb[0].mxu0 %v4570
    %v4640 = vpop.f32.mrb[0].mxu0
    %v4641 = vadd.f32 0.0, %v4640
    %v4642 = vpop.f32.mrb[0].mxu0
    %4643 = vdwg.mxu0
    %4644 = vrot.lane.b32.xlu0 %v179, 80
    %v4645 = vpop.permute.xlu0 %4644
    %4646 = vrot.lane.b32.xlu0 %v179, 16
    %v4647 = vpop.permute.xlu0 %4646
    %v4648 = vsel %vm204, %v4645, 0
    %v4650 = vsel %vm204, %v4647, 0
    %4652 = vmatprep.subr.mxu0 0.0
    %4653 = vmatpush1.xpose.msra.mxu0 %v4650
    %4654 = vmatprep.subr.mxu0 0.0
    %4655 = vmatpush1.xpose.msra.mxu0 0.0
    %4656 = vmatprep.subr.mxu0 0.0
    %4657 = vmatpush1.xpose.msra.mxu0 0.0
    %4658 = vmatprep.subr.mxu0 0.0
    %4659 = vmatpush1.xpose.msra.mxu0 0.0
    %4660 = vmatprep.subr.mxu0 0.0
    %4661 = vmatpush1.xpose.msra.mxu0 0.0
    %4662 = vmatprep.subr.mxu0 0.0
    %4663 = vmatpush1.xpose.msra.mxu0 0.0
    %4664 = vmatprep.subr.mxu0 0.0
    %4665 = vmatpush1.xpose.msra.mxu0 0.0
    %4666 = vmatprep.subr.mxu0 0.0
    %4667 = vmatpush1.xpose.msra.mxu0 0.0
    %4668 = vmatprep.subr.mxu0 0.0
    %4669 = vmatpush1.xpose.msra.mxu0 0.0
    %4670 = vmatprep.subr.mxu0 0.0
    %4671 = vmatpush1.xpose.msra.mxu0 0.0
    %4672 = vmatprep.subr.mxu0 0.0
    %4673 = vmatpush1.xpose.msra.mxu0 0.0
    %4674 = vmatprep.subr.mxu0 0.0
    %4675 = vmatpush1.xpose.msra.mxu0 0.0
    %4676 = vmatprep.subr.mxu0 0.0
    %4677 = vmatpush1.xpose.msra.mxu0 0.0
    %4678 = vmatprep.subr.mxu0 0.0
    %4679 = vmatpush1.xpose.msra.mxu0 0.0
    %4680 = vmatprep.subr.mxu0 0.0
    %4681 = vmatpush1.xpose.msra.mxu0 0.0
    %4682 = vmatprep.subr.mxu0 0.0
    %4683 = vmatpush1.xpose.msra.mxu0 0.0
    %4684 = vmatprep.subr.mxu0 0.0
    %4685 = vmatpush1.xpose.msra.mxu0 0.0
    %4686 = vmatprep.subr.mxu0 0.0
    %4687 = vmatpush1.xpose.msra.mxu0 0.0
    %4688 = vmatprep.subr.mxu0 0.0
    %4689 = vmatpush1.xpose.msra.mxu0 0.0
    %4690 = vmatprep.subr.mxu0 0.0
    %4691 = vmatpush1.xpose.msra.mxu0 0.0
    %4692 = vmatprep.subr.mxu0 0.0
    %4693 = vmatpush1.xpose.msra.mxu0 0.0
    %4694 = vmatprep.subr.mxu0 0.0
    %4695 = vmatpush1.xpose.msra.mxu0 0.0
    %4696 = vmatprep.subr.mxu0 0.0
    %4697 = vmatpush1.xpose.msra.mxu0 0.0
    %4698 = vmatprep.subr.mxu0 0.0
    %4699 = vmatpush1.xpose.msra.mxu0 0.0
    %4700 = vmatprep.subr.mxu0 0.0
    %4701 = vmatpush1.xpose.msra.mxu0 0.0
    %4702 = vmatprep.subr.mxu0 0.0
    %4703 = vmatpush1.xpose.msra.mxu0 0.0
    %4704 = vmatprep.subr.mxu0 0.0
    %4705 = vmatpush1.xpose.msra.mxu0 0.0
    %4706 = vmatprep.subr.mxu0 0.0
    %4707 = vmatpush1.xpose.msra.mxu0 0.0
    %4708 = vmatprep.subr.mxu0 0.0
    %4709 = vmatpush1.xpose.msra.mxu0 0.0
    %4710 = vmatprep.subr.mxu0 0.0
    %4711 = vmatpush1.xpose.msra.mxu0 0.0
    %4712 = vmatprep.subr.mxu0 0.0
    %4713 = vmatpush1.xpose.msra.mxu0 0.0
    %4714 = vmatprep.subr.mxu0 0.0
    %4715 = vmatpush1.xpose.msra.mxu0 0.0
    %4716 = vmatprep.mubr.f32.mxu0 0.0
    %4717 = vmatmul.mubr.f32.gmra.mrb[0].mxu0 %v4648
    %v4718 = vpop.f32.mrb[0].mxu0
    %v4719 = vadd.f32 0.0, %v4718
    %v4720 = vpop.f32.mrb[0].mxu0
    %4721 = vdwg.mxu0
    %4722 = vrot.lane.b32.xlu0 %v185, 80
    %v4723 = vpop.permute.xlu0 %4722
    %4724 = vrot.lane.b32.xlu0 %v185, 16
    %v4725 = vpop.permute.xlu0 %4724
    %v4726 = vsel %vm204, %v4723, 0
    %v4728 = vsel %vm204, %v4725, 0
    %4730 = vmatprep.subr.mxu0 0.0
    %4731 = vmatpush1.xpose.msra.mxu0 %v4728
    %4732 = vmatprep.subr.mxu0 0.0
    %4733 = vmatpush1.xpose.msra.mxu0 0.0
    %4734 = vmatprep.subr.mxu0 0.0
    %4735 = vmatpush1.xpose.msra.mxu0 0.0
    %4736 = vmatprep.subr.mxu0 0.0
    %4737 = vmatpush1.xpose.msra.mxu0 0.0
    %4738 = vmatprep.subr.mxu0 0.0
    %4739 = vmatpush1.xpose.msra.mxu0 0.0
    %4740 = vmatprep.subr.mxu0 0.0
    %4741 = vmatpush1.xpose.msra.mxu0 0.0
    %4742 = vmatprep.subr.mxu0 0.0
    %4743 = vmatpush1.xpose.msra.mxu0 0.0
    %4744 = vmatprep.subr.mxu0 0.0
    %4745 = vmatpush1.xpose.msra.mxu0 0.0
    %4746 = vmatprep.subr.mxu0 0.0
    %4747 = vmatpush1.xpose.msra.mxu0 0.0
    %4748 = vmatprep.subr.mxu0 0.0
    %4749 = vmatpush1.xpose.msra.mxu0 0.0
    %4750 = vmatprep.subr.mxu0 0.0
    %4751 = vmatpush1.xpose.msra.mxu0 0.0
    %4752 = vmatprep.subr.mxu0 0.0
    %4753 = vmatpush1.xpose.msra.mxu0 0.0
    %4754 = vmatprep.subr.mxu0 0.0
    %4755 = vmatpush1.xpose.msra.mxu0 0.0
    %4756 = vmatprep.subr.mxu0 0.0
    %4757 = vmatpush1.xpose.msra.mxu0 0.0
    %4758 = vmatprep.subr.mxu0 0.0
    %4759 = vmatpush1.xpose.msra.mxu0 0.0
    %4760 = vmatprep.subr.mxu0 0.0
    %4761 = vmatpush1.xpose.msra.mxu0 0.0
    %4762 = vmatprep.subr.mxu0 0.0
    %4763 = vmatpush1.xpose.msra.mxu0 0.0
    %4764 = vmatprep.subr.mxu0 0.0
    %4765 = vmatpush1.xpose.msra.mxu0 0.0
    %4766 = vmatprep.subr.mxu0 0.0
    %4767 = vmatpush1.xpose.msra.mxu0 0.0
    %4768 = vmatprep.subr.mxu0 0.0
    %4769 = vmatpush1.xpose.msra.mxu0 0.0
    %4770 = vmatprep.subr.mxu0 0.0
    %4771 = vmatpush1.xpose.msra.mxu0 0.0
    %4772 = vmatprep.subr.mxu0 0.0
    %4773 = vmatpush1.xpose.msra.mxu0 0.0
    %4774 = vmatprep.subr.mxu0 0.0
    %4775 = vmatpush1.xpose.msra.mxu0 0.0
    %4776 = vmatprep.subr.mxu0 0.0
    %4777 = vmatpush1.xpose.msra.mxu0 0.0
    %4778 = vmatprep.subr.mxu0 0.0
    %4779 = vmatpush1.xpose.msra.mxu0 0.0
    %4780 = vmatprep.subr.mxu0 0.0
    %4781 = vmatpush1.xpose.msra.mxu0 0.0
    %4782 = vmatprep.subr.mxu0 0.0
    %4783 = vmatpush1.xpose.msra.mxu0 0.0
    %4784 = vmatprep.subr.mxu0 0.0
    %4785 = vmatpush1.xpose.msra.mxu0 0.0
    %4786 = vmatprep.subr.mxu0 0.0
    %4787 = vmatpush1.xpose.msra.mxu0 0.0
    %4788 = vmatprep.subr.mxu0 0.0
    %4789 = vmatpush1.xpose.msra.mxu0 0.0
    %4790 = vmatprep.subr.mxu0 0.0
    %4791 = vmatpush1.xpose.msra.mxu0 0.0
    %4792 = vmatprep.subr.mxu0 0.0
    %4793 = vmatpush1.xpose.msra.mxu0 0.0
    %4794 = vmatprep.mubr.f32.mxu0 0.0
    %4795 = vmatmul.mubr.f32.gmra.mrb[0].mxu0 %v4726
    %v4796 = vpop.f32.mrb[0].mxu0
    %v4797 = vadd.f32 0.0, %v4796
    %v4798 = vpop.f32.mrb[0].mxu0
    %4799 = vdwg.mxu0
    %4800 = vrot.lane.b32.xlu0 %v191, 80
    %v4801 = vpop.permute.xlu0 %4800
    %4802 = vrot.lane.b32.xlu0 %v191, 16
    %v4803 = vpop.permute.xlu0 %4802
    %v4804 = vsel %vm204, %v4801, 0
    %v4806 = vsel %vm204, %v4803, 0
    %4808 = vmatprep.subr.mxu0 0.0
    %4809 = vmatpush1.xpose.msra.mxu0 %v4806
    %4810 = vmatprep.subr.mxu0 0.0
    %4811 = vmatpush1.xpose.msra.mxu0 0.0
    %4812 = vmatprep.subr.mxu0 0.0
    %4813 = vmatpush1.xpose.msra.mxu0 0.0
    %4814 = vmatprep.subr.mxu0 0.0
    %4815 = vmatpush1.xpose.msra.mxu0 0.0
    %4816 = vmatprep.subr.mxu0 0.0
    %4817 = vmatpush1.xpose.msra.mxu0 0.0
    %4818 = vmatprep.subr.mxu0 0.0
    %4819 = vmatpush1.xpose.msra.mxu0 0.0
    %4820 = vmatprep.subr.mxu0 0.0
    %4821 = vmatpush1.xpose.msra.mxu0 0.0
    %4822 = vmatprep.subr.mxu0 0.0
    %4823 = vmatpush1.xpose.msra.mxu0 0.0
    %4824 = vmatprep.subr.mxu0 0.0
    %4825 = vmatpush1.xpose.msra.mxu0 0.0
    %4826 = vmatprep.subr.mxu0 0.0
    %4827 = vmatpush1.xpose.msra.mxu0 0.0
    %4828 = vmatprep.subr.mxu0 0.0
    %4829 = vmatpush1.xpose.msra.mxu0 0.0
    %4830 = vmatprep.subr.mxu0 0.0
    %4831 = vmatpush1.xpose.msra.mxu0 0.0
    %4832 = vmatprep.subr.mxu0 0.0
    %4833 = vmatpush1.xpose.msra.mxu0 0.0
    %4834 = vmatprep.subr.mxu0 0.0
    %4835 = vmatpush1.xpose.msra.mxu0 0.0
    %4836 = vmatprep.subr.mxu0 0.0
    %4837 = vmatpush1.xpose.msra.mxu0 0.0
    %4838 = vmatprep.subr.mxu0 0.0
    %4839 = vmatpush1.xpose.msra.mxu0 0.0
    %4840 = vmatprep.subr.mxu0 0.0
    %4841 = vmatpush1.xpose.msra.mxu0 0.0
    %4842 = vmatprep.subr.mxu0 0.0
    %4843 = vmatpush1.xpose.msra.mxu0 0.0
    %4844 = vmatprep.subr.mxu0 0.0
    %4845 = vmatpush1.xpose.msra.mxu0 0.0
    %4846 = vmatprep.subr.mxu0 0.0
    %4847 = vmatpush1.xpose.msra.mxu0 0.0
    %4848 = vmatprep.subr.mxu0 0.0
    %4849 = vmatpush1.xpose.msra.mxu0 0.0
    %4850 = vmatprep.subr.mxu0 0.0
    %4851 = vmatpush1.xpose.msra.mxu0 0.0
    %4852 = vmatprep.subr.mxu0 0.0
    %4853 = vmatpush1.xpose.msra.mxu0 0.0
    %4854 = vmatprep.subr.mxu0 0.0
    %4855 = vmatpush1.xpose.msra.mxu0 0.0
    %4856 = vmatprep.subr.mxu0 0.0
    %4857 = vmatpush1.xpose.msra.mxu0 0.0
    %4858 = vmatprep.subr.mxu0 0.0
    %4859 = vmatpush1.xpose.msra.mxu0 0.0
    %4860 = vmatprep.subr.mxu0 0.0
    %4861 = vmatpush1.xpose.msra.mxu0 0.0
    %4862 = vmatprep.subr.mxu0 0.0
    %4863 = vmatpush1.xpose.msra.mxu0 0.0
    %4864 = vmatprep.subr.mxu0 0.0
    %4865 = vmatpush1.xpose.msra.mxu0 0.0
    %4866 = vmatprep.subr.mxu0 0.0
    %4867 = vmatpush1.xpose.msra.mxu0 0.0
    %4868 = vmatprep.subr.mxu0 0.0
    %4869 = vmatpush1.xpose.msra.mxu0 0.0
    %4870 = vmatprep.subr.mxu0 0.0
    %4871 = vmatpush1.xpose.msra.mxu0 0.0
    %4872 = vmatprep.mubr.f32.mxu0 0.0
    %4873 = vmatmul.mubr.f32.gmra.mrb[0].mxu0 %v4804
    %v4874 = vpop.f32.mrb[0].mxu0
    %v4875 = vadd.f32 0.0, %v4874
    %v4876 = vpop.f32.mrb[0].mxu0
    %4877 = vdwg.mxu0
    %4878 = vrot.lane.b32.xlu0 %v197, 80
    %v4879 = vpop.permute.xlu0 %4878
    %4880 = vrot.lane.b32.xlu0 %v197, 16
    %v4881 = vpop.permute.xlu0 %4880
    %v4882 = vsel %vm204, %v4879, 0
    %v4884 = vsel %vm204, %v4881, 0
    %4886 = vmatprep.subr.mxu0 0.0
    %4887 = vmatpush1.xpose.msra.mxu0 %v4884
    %4888 = vmatprep.subr.mxu0 0.0
    %4889 = vmatpush1.xpose.msra.mxu0 0.0
    %4890 = vmatprep.subr.mxu0 0.0
    %4891 = vmatpush1.xpose.msra.mxu0 0.0
    %4892 = vmatprep.subr.mxu0 0.0
    %4893 = vmatpush1.xpose.msra.mxu0 0.0
    %4894 = vmatprep.subr.mxu0 0.0
    %4895 = vmatpush1.xpose.msra.mxu0 0.0
    %4896 = vmatprep.subr.mxu0 0.0
    %4897 = vmatpush1.xpose.msra.mxu0 0.0
    %4898 = vmatprep.subr.mxu0 0.0
    %4899 = vmatpush1.xpose.msra.mxu0 0.0
    %4900 = vmatprep.subr.mxu0 0.0
    %4901 = vmatpush1.xpose.msra.mxu0 0.0
    %4902 = vmatprep.subr.mxu0 0.0
    %4903 = vmatpush1.xpose.msra.mxu0 0.0
    %4904 = vmatprep.subr.mxu0 0.0
    %4905 = vmatpush1.xpose.msra.mxu0 0.0
    %4906 = vmatprep.subr.mxu0 0.0
    %4907 = vmatpush1.xpose.msra.mxu0 0.0
    %4908 = vmatprep.subr.mxu0 0.0
    %4909 = vmatpush1.xpose.msra.mxu0 0.0
    %4910 = vmatprep.subr.mxu0 0.0
    %4911 = vmatpush1.xpose.msra.mxu0 0.0
    %4912 = vmatprep.subr.mxu0 0.0
    %4913 = vmatpush1.xpose.msra.mxu0 0.0
    %4914 = vmatprep.subr.mxu0 0.0
    %4915 = vmatpush1.xpose.msra.mxu0 0.0
    %4916 = vmatprep.subr.mxu0 0.0
    %4917 = vmatpush1.xpose.msra.mxu0 0.0
    %4918 = vmatprep.subr.mxu0 0.0
    %4919 = vmatpush1.xpose.msra.mxu0 0.0
    %4920 = vmatprep.subr.mxu0 0.0
    %4921 = vmatpush1.xpose.msra.mxu0 0.0
    %4922 = vmatprep.subr.mxu0 0.0
    %4923 = vmatpush1.xpose.msra.mxu0 0.0
    %4924 = vmatprep.subr.mxu0 0.0
    %4925 = vmatpush1.xpose.msra.mxu0 0.0
    %4926 = vmatprep.subr.mxu0 0.0
    %4927 = vmatpush1.xpose.msra.mxu0 0.0
    %4928 = vmatprep.subr.mxu0 0.0
    %4929 = vmatpush1.xpose.msra.mxu0 0.0
    %4930 = vmatprep.subr.mxu0 0.0
    %4931 = vmatpush1.xpose.msra.mxu0 0.0
    %4932 = vmatprep.subr.mxu0 0.0
    %4933 = vmatpush1.xpose.msra.mxu0 0.0
    %4934 = vmatprep.subr.mxu0 0.0
    %4935 = vmatpush1.xpose.msra.mxu0 0.0
    %4936 = vmatprep.subr.mxu0 0.0
    %4937 = vmatpush1.xpose.msra.mxu0 0.0
    %4938 = vmatprep.subr.mxu0 0.0
    %4939 = vmatpush1.xpose.msra.mxu0 0.0
    %4940 = vmatprep.subr.mxu0 0.0
    %4941 = vmatpush1.xpose.msra.mxu0 0.0
    %4942 = vmatprep.subr.mxu0 0.0
    %4943 = vmatpush1.xpose.msra.mxu0 0.0
    %4944 = vmatprep.subr.mxu0 0.0
    %4945 = vmatpush1.xpose.msra.mxu0 0.0
    %4946 = vmatprep.subr.mxu0 0.0
    %4947 = vmatpush1.xpose.msra.mxu0 0.0
    %4948 = vmatprep.subr.mxu0 0.0
    %4949 = vmatpush1.xpose.msra.mxu0 0.0
    %4950 = vmatprep.mubr.f32.mxu0 0.0
    %4951 = vmatmul.mubr.f32.gmra.mrb[0].mxu0 %v4882
    %v4952 = vpop.f32.mrb[0].mxu0
    %v4953 = vadd.f32 0.0, %v4952
    %v4954 = vpop.f32.mrb[0].mxu0
    %4955 = vdwg.mxu0
    %v4956 = vsel %vm818, %v4407, -inf
    %4957 = vmax.xlane.f32.xlu0 %v4956
    %v4958 = vpop.xlane.xlu0 %4957
    %v4959 = vsel %vm818, %v4485, -inf
    %4960 = vmax.xlane.f32.xlu0 %v4959
    %v4961 = vpop.xlane.xlu0 %4960
    %v4962 = vsel %vm818, %v4563, -inf
    %4963 = vmax.xlane.f32.xlu0 %v4962
    %v4964 = vpop.xlane.xlu0 %4963
    %v4965 = vsel %vm818, %v4641, -inf
    %4966 = vmax.xlane.f32.xlu0 %v4965
    %v4967 = vpop.xlane.xlu0 %4966
    %v4968 = vsel %vm818, %v4719, -inf
    %4969 = vmax.xlane.f32.xlu0 %v4968
    %v4970 = vpop.xlane.xlu0 %4969
    %v4971 = vsel %vm818, %v4797, -inf
    %4972 = vmax.xlane.f32.xlu0 %v4971
    %v4973 = vpop.xlane.xlu0 %4972
    %v4974 = vsel %vm818, %v4875, -inf
    %4975 = vmax.xlane.f32.xlu0 %v4974
    %v4976 = vpop.xlane.xlu0 %4975
    %v4977 = vsel %vm818, %v4953, -inf
    %4978 = vmax.xlane.f32.xlu0 %v4977
    %v4979 = vpop.xlane.xlu0 %4978
    %v4980 = vsub.f32 %v4407, %v4958
    %v4981 = vsub.f32 %v4485, %v4961
    %v4982 = vsub.f32 %v4563, %v4964
    %v4983 = vsub.f32 %v4641, %v4967
    %v4984 = vsub.f32 %v4719, %v4970
    %v4985 = vsub.f32 %v4797, %v4973
    %v4986 = vsub.f32 %v4875, %v4976
    %v4987 = vsub.f32 %v4953, %v4979
    %v4988 = vmul.f32 %v4980, 1.442695
    %v4989 = vpow.pop %v4988
    %v4990 = vmul.f32 %v4981, 1.442695
    %v4991 = vpow.pop %v4990
    %v4992 = vmul.f32 %v4982, 1.442695
    %v4993 = vpow.pop %v4992
    %v4994 = vmul.f32 %v4983, 1.442695
    %v4995 = vpow.pop %v4994
    %v4996 = vmul.f32 %v4984, 1.442695
    %v4997 = vpow.pop %v4996
    %v4998 = vmul.f32 %v4985, 1.442695
    %v4999 = vpow.pop %v4998
    %v5000 = vmul.f32 %v4986, 1.442695
    %v5001 = vpow.pop %v5000
    %v5002 = vmul.f32 %v4987, 1.442695
    %v5003 = vpow.pop %v5002
    %v5004 = vsel %vm818, %v4989, 0.0
    %5005 = vadd.xlane.f32.xlu0 %v5004
    %v5006 = vpop.xlane.xlu0 %5005
    %v5007 = vsel %vm818, %v4991, 0.0
    %5008 = vadd.xlane.f32.xlu0 %v5007
    %v5009 = vpop.xlane.xlu0 %5008
    %v5010 = vsel %vm818, %v4993, 0.0
    %5011 = vadd.xlane.f32.xlu0 %v5010
    %v5012 = vpop.xlane.xlu0 %5011
    %v5013 = vsel %vm818, %v4995, 0.0
    %5014 = vadd.xlane.f32.xlu0 %v5013
    %v5015 = vpop.xlane.xlu0 %5014
    %v5016 = vsel %vm818, %v4997, 0.0
    %5017 = vadd.xlane.f32.xlu0 %v5016
    %v5018 = vpop.xlane.xlu0 %5017
    %v5019 = vsel %vm818, %v4999, 0.0
    %5020 = vadd.xlane.f32.xlu0 %v5019
    %v5021 = vpop.xlane.xlu0 %5020
    %v5022 = vsel %vm818, %v5001, 0.0
    %5023 = vadd.xlane.f32.xlu0 %v5022
    %v5024 = vpop.xlane.xlu0 %5023
    %v5025 = vsel %vm818, %v5003, 0.0
    %5026 = vadd.xlane.f32.xlu0 %v5025
    %v5027 = vpop.xlane.xlu0 %5026
    %v5028 = vrcp.pop %v5006
    %v5029 = vrcp.pop %v5009
    %v5030 = vrcp.pop %v5012
    %v5031 = vrcp.pop %v5015
    %v5032 = vrcp.pop %v5018
    %v5033 = vrcp.pop %v5021
    %v5034 = vrcp.pop %v5024
    %v5035 = vrcp.pop %v5027
    %v5036 = vmul.f32 %v4989, %v5028
    %v5037 = vmul.f32 %v4991, %v5029
    %v5038 = vmul.f32 %v4993, %v5030
    %v5039 = vmul.f32 %v4995, %v5031
    %v5040 = vmul.f32 %v4997, %v5032
    %v5041 = vmul.f32 %v4999, %v5033
    %v5042 = vmul.f32 %v5001, %v5034
    %v5043 = vmul.f32 %v5003, %v5035
    %5044 = vrot.lane.b32.xlu0 %v157, 80
    %v5045 = vpop.permute.xlu0 %5044
    %v5048 = vsel %vm818, %v5036, 0
    %5050 = vmatprep.subr.mxu0 0.0
    %5051 = vmatpush1.msra.mxu0 %v5045
    %5052 = vmatprep.subr.mxu0 0.0
    %5053 = vmatpush1.msra.mxu0 0.0
    %5054 = vmatprep.subr.mxu0 0.0
    %5055 = vmatpush1.msra.mxu0 0.0
    %5056 = vmatprep.subr.mxu0 0.0
    %5057 = vmatpush1.msra.mxu0 0.0
    %5058 = vmatprep.subr.mxu0 0.0
    %5059 = vmatpush1.msra.mxu0 0.0
    %5060 = vmatprep.subr.mxu0 0.0
    %5061 = vmatpush1.msra.mxu0 0.0
    %5062 = vmatprep.subr.mxu0 0.0
    %5063 = vmatpush1.msra.mxu0 0.0
    %5064 = vmatprep.subr.mxu0 0.0
    %5065 = vmatpush1.msra.mxu0 0.0
    %5066 = vmatprep.subr.mxu0 0.0
    %5067 = vmatpush1.msra.mxu0 0.0
    %5068 = vmatprep.subr.mxu0 0.0
    %5069 = vmatpush1.msra.mxu0 0.0
    %5070 = vmatprep.subr.mxu0 0.0
    %5071 = vmatpush1.msra.mxu0 0.0
    %5072 = vmatprep.subr.mxu0 0.0
    %5073 = vmatpush1.msra.mxu0 0.0
    %5074 = vmatprep.subr.mxu0 0.0
    %5075 = vmatpush1.msra.mxu0 0.0
    %5076 = vmatprep.subr.mxu0 0.0
    %5077 = vmatpush1.msra.mxu0 0.0
    %5078 = vmatprep.subr.mxu0 0.0
    %5079 = vmatpush1.msra.mxu0 0.0
    %5080 = vmatprep.subr.mxu0 0.0
    %5081 = vmatpush1.msra.mxu0 0.0
    %5082 = vmatprep.subr.mxu0 0.0
    %5083 = vmatpush1.msra.mxu0 0.0
    %5084 = vmatprep.subr.mxu0 0.0
    %5085 = vmatpush1.msra.mxu0 0.0
    %5086 = vmatprep.subr.mxu0 0.0
    %5087 = vmatpush1.msra.mxu0 0.0
    %5088 = vmatprep.subr.mxu0 0.0
    %5089 = vmatpush1.msra.mxu0 0.0
    %5090 = vmatprep.subr.mxu0 0.0
    %5091 = vmatpush1.msra.mxu0 0.0
    %5092 = vmatprep.subr.mxu0 0.0
    %5093 = vmatpush1.msra.mxu0 0.0
    %5094 = vmatprep.subr.mxu0 0.0
    %5095 = vmatpush1.msra.mxu0 0.0
    %5096 = vmatprep.subr.mxu0 0.0
    %5097 = vmatpush1.msra.mxu0 0.0
    %5098 = vmatprep.subr.mxu0 0.0
    %5099 = vmatpush1.msra.mxu0 0.0
    %5100 = vmatprep.subr.mxu0 0.0
    %5101 = vmatpush1.msra.mxu0 0.0
    %5102 = vmatprep.subr.mxu0 0.0
    %5103 = vmatpush1.msra.mxu0 0.0
    %5104 = vmatprep.subr.mxu0 0.0
    %5105 = vmatpush1.msra.mxu0 0.0
    %5106 = vmatprep.subr.mxu0 0.0
    %5107 = vmatpush1.msra.mxu0 0.0
    %5108 = vmatprep.subr.mxu0 0.0
    %5109 = vmatpush1.msra.mxu0 0.0
    %5110 = vmatprep.subr.mxu0 0.0
    %5111 = vmatpush1.msra.mxu0 0.0
    %5112 = vmatprep.subr.mxu0 0.0
    %5113 = vmatpush1.msra.mxu0 0.0
    %5114 = vmatprep.mubr.f32.mxu0 0.0
    %5115 = vmatmul.mubr.f32.gmra.mrb[0].mxu0 %v5048
    %v5116 = vpop.f32.mrb[0].mxu0
    %v5117 = vadd.f32 0.0, %v5116
    %v5118 = vpop.f32.mrb[0].mxu0
    %5119 = vdwg.mxu0
    %5120 = vrot.lane.b32.xlu0 %v163, 80
    %v5121 = vpop.permute.xlu0 %5120
    %v5124 = vsel %vm818, %v5037, 0
    %5126 = vmatprep.subr.mxu0 0.0
    %5127 = vmatpush1.msra.mxu0 %v5121
    %5128 = vmatprep.subr.mxu0 0.0
    %5129 = vmatpush1.msra.mxu0 0.0
    %5130 = vmatprep.subr.mxu0 0.0
    %5131 = vmatpush1.msra.mxu0 0.0
    %5132 = vmatprep.subr.mxu0 0.0
    %5133 = vmatpush1.msra.mxu0 0.0
    %5134 = vmatprep.subr.mxu0 0.0
    %5135 = vmatpush1.msra.mxu0 0.0
    %5136 = vmatprep.subr.mxu0 0.0
    %5137 = vmatpush1.msra.mxu0 0.0
    %5138 = vmatprep.subr.mxu0 0.0
    %5139 = vmatpush1.msra.mxu0 0.0
    %5140 = vmatprep.subr.mxu0 0.0
    %5141 = vmatpush1.msra.mxu0 0.0
    %5142 = vmatprep.subr.mxu0 0.0
    %5143 = vmatpush1.msra.mxu0 0.0
    %5144 = vmatprep.subr.mxu0 0.0
    %5145 = vmatpush1.msra.mxu0 0.0
    %5146 = vmatprep.subr.mxu0 0.0
    %5147 = vmatpush1.msra.mxu0 0.0
    %5148 = vmatprep.subr.mxu0 0.0
    %5149 = vmatpush1.msra.mxu0 0.0
    %5150 = vmatprep.subr.mxu0 0.0
    %5151 = vmatpush1.msra.mxu0 0.0
    %5152 = vmatprep.subr.mxu0 0.0
    %5153 = vmatpush1.msra.mxu0 0.0
    %5154 = vmatprep.subr.mxu0 0.0
    %5155 = vmatpush1.msra.mxu0 0.0
    %5156 = vmatprep.subr.mxu0 0.0
    %5157 = vmatpush1.msra.mxu0 0.0
    %5158 = vmatprep.subr.mxu0 0.0
    %5159 = vmatpush1.msra.mxu0 0.0
    %5160 = vmatprep.subr.mxu0 0.0
    %5161 = vmatpush1.msra.mxu0 0.0
    %5162 = vmatprep.subr.mxu0 0.0
    %5163 = vmatpush1.msra.mxu0 0.0
    %5164 = vmatprep.subr.mxu0 0.0
    %5165 = vmatpush1.msra.mxu0 0.0
    %5166 = vmatprep.subr.mxu0 0.0
    %5167 = vmatpush1.msra.mxu0 0.0
    %5168 = vmatprep.subr.mxu0 0.0
    %5169 = vmatpush1.msra.mxu0 0.0
    %5170 = vmatprep.subr.mxu0 0.0
    %5171 = vmatpush1.msra.mxu0 0.0
    %5172 = vmatprep.subr.mxu0 0.0
    %5173 = vmatpush1.msra.mxu0 0.0
    %5174 = vmatprep.subr.mxu0 0.0
    %5175 = vmatpush1.msra.mxu0 0.0
    %5176 = vmatprep.subr.mxu0 0.0
    %5177 = vmatpush1.msra.mxu0 0.0
    %5178 = vmatprep.subr.mxu0 0.0
    %5179 = vmatpush1.msra.mxu0 0.0
    %5180 = vmatprep.subr.mxu0 0.0
    %5181 = vmatpush1.msra.mxu0 0.0
    %5182 = vmatprep.subr.mxu0 0.0
    %5183 = vmatpush1.msra.mxu0 0.0
    %5184 = vmatprep.subr.mxu0 0.0
    %5185 = vmatpush1.msra.mxu0 0.0
    %5186 = vmatprep.subr.mxu0 0.0
    %5187 = vmatpush1.msra.mxu0 0.0
    %5188 = vmatprep.subr.mxu0 0.0
    %5189 = vmatpush1.msra.mxu0 0.0
    %5190 = vmatprep.mubr.f32.mxu0 0.0
    %5191 = vmatmul.mubr.f32.gmra.mrb[0].mxu0 %v5124
    %v5192 = vpop.f32.mrb[0].mxu0
    %v5193 = vadd.f32 0.0, %v5192
    %v5194 = vpop.f32.mrb[0].mxu0
    %5195 = vdwg.mxu0
    %5196 = vrot.lane.b32.xlu0 %v169, 80
    %v5197 = vpop.permute.xlu0 %5196
    %v5200 = vsel %vm818, %v5038, 0
    %5202 = vmatprep.subr.mxu0 0.0
    %5203 = vmatpush1.msra.mxu0 %v5197
    %5204 = vmatprep.subr.mxu0 0.0
    %5205 = vmatpush1.msra.mxu0 0.0
    %5206 = vmatprep.subr.mxu0 0.0
    %5207 = vmatpush1.msra.mxu0 0.0
    %5208 = vmatprep.subr.mxu0 0.0
    %5209 = vmatpush1.msra.mxu0 0.0
    %5210 = vmatprep.subr.mxu0 0.0
    %5211 = vmatpush1.msra.mxu0 0.0
    %5212 = vmatprep.subr.mxu0 0.0
    %5213 = vmatpush1.msra.mxu0 0.0
    %5214 = vmatprep.subr.mxu0 0.0
    %5215 = vmatpush1.msra.mxu0 0.0
    %5216 = vmatprep.subr.mxu0 0.0
    %5217 = vmatpush1.msra.mxu0 0.0
    %5218 = vmatprep.subr.mxu0 0.0
    %5219 = vmatpush1.msra.mxu0 0.0
    %5220 = vmatprep.subr.mxu0 0.0
    %5221 = vmatpush1.msra.mxu0 0.0
    %5222 = vmatprep.subr.mxu0 0.0
    %5223 = vmatpush1.msra.mxu0 0.0
    %5224 = vmatprep.subr.mxu0 0.0
    %5225 = vmatpush1.msra.mxu0 0.0
    %5226 = vmatprep.subr.mxu0 0.0
    %5227 = vmatpush1.msra.mxu0 0.0
    %5228 = vmatprep.subr.mxu0 0.0
    %5229 = vmatpush1.msra.mxu0 0.0
    %5230 = vmatprep.subr.mxu0 0.0
    %5231 = vmatpush1.msra.mxu0 0.0
    %5232 = vmatprep.subr.mxu0 0.0
    %5233 = vmatpush1.msra.mxu0 0.0
    %5234 = vmatprep.subr.mxu0 0.0
    %5235 = vmatpush1.msra.mxu0 0.0
    %5236 = vmatprep.subr.mxu0 0.0
    %5237 = vmatpush1.msra.mxu0 0.0
    %5238 = vmatprep.subr.mxu0 0.0
    %5239 = vmatpush1.msra.mxu0 0.0
    %5240 = vmatprep.subr.mxu0 0.0
    %5241 = vmatpush1.msra.mxu0 0.0
    %5242 = vmatprep.subr.mxu0 0.0
    %5243 = vmatpush1.msra.mxu0 0.0
    %5244 = vmatprep.subr.mxu0 0.0
    %5245 = vmatpush1.msra.mxu0 0.0
    %5246 = vmatprep.subr.mxu0 0.0
    %5247 = vmatpush1.msra.mxu0 0.0
    %5248 = vmatprep.subr.mxu0 0.0
    %5249 = vmatpush1.msra.mxu0 0.0
    %5250 = vmatprep.subr.mxu0 0.0
    %5251 = vmatpush1.msra.mxu0 0.0
    %5252 = vmatprep.subr.mxu0 0.0
    %5253 = vmatpush1.msra.mxu0 0.0
    %5254 = vmatprep.subr.mxu0 0.0
    %5255 = vmatpush1.msra.mxu0 0.0
    %5256 = vmatprep.subr.mxu0 0.0
    %5257 = vmatpush1.msra.mxu0 0.0
    %5258 = vmatprep.subr.mxu0 0.0
    %5259 = vmatpush1.msra.mxu0 0.0
    %5260 = vmatprep.subr.mxu0 0.0
    %5261 = vmatpush1.msra.mxu0 0.0
    %5262 = vmatprep.subr.mxu0 0.0
    %5263 = vmatpush1.msra.mxu0 0.0
    %5264 = vmatprep.subr.mxu0 0.0
    %5265 = vmatpush1.msra.mxu0 0.0
    %5266 = vmatprep.mubr.f32.mxu0 0.0
    %5267 = vmatmul.mubr.f32.gmra.mrb[0].mxu0 %v5200
    %v5268 = vpop.f32.mrb[0].mxu0
    %v5269 = vadd.f32 0.0, %v5268
    %v5270 = vpop.f32.mrb[0].mxu0
    %5271 = vdwg.mxu0
    %5272 = vrot.lane.b32.xlu0 %v175, 80
    %v5273 = vpop.permute.xlu0 %5272
    %v5276 = vsel %vm818, %v5039, 0
    %5278 = vmatprep.subr.mxu0 0.0
    %5279 = vmatpush1.msra.mxu0 %v5273
    %5280 = vmatprep.subr.mxu0 0.0
    %5281 = vmatpush1.msra.mxu0 0.0
    %5282 = vmatprep.subr.mxu0 0.0
    %5283 = vmatpush1.msra.mxu0 0.0
    %5284 = vmatprep.subr.mxu0 0.0
    %5285 = vmatpush1.msra.mxu0 0.0
    %5286 = vmatprep.subr.mxu0 0.0
    %5287 = vmatpush1.msra.mxu0 0.0
    %5288 = vmatprep.subr.mxu0 0.0
    %5289 = vmatpush1.msra.mxu0 0.0
    %5290 = vmatprep.subr.mxu0 0.0
    %5291 = vmatpush1.msra.mxu0 0.0
    %5292 = vmatprep.subr.mxu0 0.0
    %5293 = vmatpush1.msra.mxu0 0.0
    %5294 = vmatprep.subr.mxu0 0.0
    %5295 = vmatpush1.msra.mxu0 0.0
    %5296 = vmatprep.subr.mxu0 0.0
    %5297 = vmatpush1.msra.mxu0 0.0
    %5298 = vmatprep.subr.mxu0 0.0
    %5299 = vmatpush1.msra.mxu0 0.0
    %5300 = vmatprep.subr.mxu0 0.0
    %5301 = vmatpush1.msra.mxu0 0.0
    %5302 = vmatprep.subr.mxu0 0.0
    %5303 = vmatpush1.msra.mxu0 0.0
    %5304 = vmatprep.subr.mxu0 0.0
    %5305 = vmatpush1.msra.mxu0 0.0
    %5306 = vmatprep.subr.mxu0 0.0
    %5307 = vmatpush1.msra.mxu0 0.0
    %5308 = vmatprep.subr.mxu0 0.0
    %5309 = vmatpush1.msra.mxu0 0.0
    %5310 = vmatprep.subr.mxu0 0.0
    %5311 = vmatpush1.msra.mxu0 0.0
    %5312 = vmatprep.subr.mxu0 0.0
    %5313 = vmatpush1.msra.mxu0 0.0
    %5314 = vmatprep.subr.mxu0 0.0
    %5315 = vmatpush1.msra.mxu0 0.0
    %5316 = vmatprep.subr.mxu0 0.0
    %5317 = vmatpush1.msra.mxu0 0.0
    %5318 = vmatprep.subr.mxu0 0.0
    %5319 = vmatpush1.msra.mxu0 0.0
    %5320 = vmatprep.subr.mxu0 0.0
    %5321 = vmatpush1.msra.mxu0 0.0
    %5322 = vmatprep.subr.mxu0 0.0
    %5323 = vmatpush1.msra.mxu0 0.0
    %5324 = vmatprep.subr.mxu0 0.0
    %5325 = vmatpush1.msra.mxu0 0.0
    %5326 = vmatprep.subr.mxu0 0.0
    %5327 = vmatpush1.msra.mxu0 0.0
    %5328 = vmatprep.subr.mxu0 0.0
    %5329 = vmatpush1.msra.mxu0 0.0
    %5330 = vmatprep.subr.mxu0 0.0
    %5331 = vmatpush1.msra.mxu0 0.0
    %5332 = vmatprep.subr.mxu0 0.0
    %5333 = vmatpush1.msra.mxu0 0.0
    %5334 = vmatprep.subr.mxu0 0.0
    %5335 = vmatpush1.msra.mxu0 0.0
    %5336 = vmatprep.subr.mxu0 0.0
    %5337 = vmatpush1.msra.mxu0 0.0
    %5338 = vmatprep.subr.mxu0 0.0
    %5339 = vmatpush1.msra.mxu0 0.0
    %5340 = vmatprep.subr.mxu0 0.0
    %5341 = vmatpush1.msra.mxu0 0.0
    %5342 = vmatprep.mubr.f32.mxu0 0.0
    %5343 = vmatmul.mubr.f32.gmra.mrb[0].mxu0 %v5276
    %v5344 = vpop.f32.mrb[0].mxu0
    %v5345 = vadd.f32 0.0, %v5344
    %v5346 = vpop.f32.mrb[0].mxu0
    %5347 = vdwg.mxu0
    %5348 = vrot.lane.b32.xlu0 %v181, 80
    %v5349 = vpop.permute.xlu0 %5348
    %v5352 = vsel %vm818, %v5040, 0
    %5354 = vmatprep.subr.mxu0 0.0
    %5355 = vmatpush1.msra.mxu0 %v5349
    %5356 = vmatprep.subr.mxu0 0.0
    %5357 = vmatpush1.msra.mxu0 0.0
    %5358 = vmatprep.subr.mxu0 0.0
    %5359 = vmatpush1.msra.mxu0 0.0
    %5360 = vmatprep.subr.mxu0 0.0
    %5361 = vmatpush1.msra.mxu0 0.0
    %5362 = vmatprep.subr.mxu0 0.0
    %5363 = vmatpush1.msra.mxu0 0.0
    %5364 = vmatprep.subr.mxu0 0.0
    %5365 = vmatpush1.msra.mxu0 0.0
    %5366 = vmatprep.subr.mxu0 0.0
    %5367 = vmatpush1.msra.mxu0 0.0
    %5368 = vmatprep.subr.mxu0 0.0
    %5369 = vmatpush1.msra.mxu0 0.0
    %5370 = vmatprep.subr.mxu0 0.0
    %5371 = vmatpush1.msra.mxu0 0.0
    %5372 = vmatprep.subr.mxu0 0.0
    %5373 = vmatpush1.msra.mxu0 0.0
    %5374 = vmatprep.subr.mxu0 0.0
    %5375 = vmatpush1.msra.mxu0 0.0
    %5376 = vmatprep.subr.mxu0 0.0
    %5377 = vmatpush1.msra.mxu0 0.0
    %5378 = vmatprep.subr.mxu0 0.0
    %5379 = vmatpush1.msra.mxu0 0.0
    %5380 = vmatprep.subr.mxu0 0.0
    %5381 = vmatpush1.msra.mxu0 0.0
    %5382 = vmatprep.subr.mxu0 0.0
    %5383 = vmatpush1.msra.mxu0 0.0
    %5384 = vmatprep.subr.mxu0 0.0
    %5385 = vmatpush1.msra.mxu0 0.0
    %5386 = vmatprep.subr.mxu0 0.0
    %5387 = vmatpush1.msra.mxu0 0.0
    %5388 = vmatprep.subr.mxu0 0.0
    %5389 = vmatpush1.msra.mxu0 0.0
    %5390 = vmatprep.subr.mxu0 0.0
    %5391 = vmatpush1.msra.mxu0 0.0
    %5392 = vmatprep.subr.mxu0 0.0
    %5393 = vmatpush1.msra.mxu0 0.0
    %5394 = vmatprep.subr.mxu0 0.0
    %5395 = vmatpush1.msra.mxu0 0.0
    %5396 = vmatprep.subr.mxu0 0.0
    %5397 = vmatpush1.msra.mxu0 0.0
    %5398 = vmatprep.subr.mxu0 0.0
    %5399 = vmatpush1.msra.mxu0 0.0
    %5400 = vmatprep.subr.mxu0 0.0
    %5401 = vmatpush1.msra.mxu0 0.0
    %5402 = vmatprep.subr.mxu0 0.0
    %5403 = vmatpush1.msra.mxu0 0.0
    %5404 = vmatprep.subr.mxu0 0.0
    %5405 = vmatpush1.msra.mxu0 0.0
    %5406 = vmatprep.subr.mxu0 0.0
    %5407 = vmatpush1.msra.mxu0 0.0
    %5408 = vmatprep.subr.mxu0 0.0
    %5409 = vmatpush1.msra.mxu0 0.0
    %5410 = vmatprep.subr.mxu0 0.0
    %5411 = vmatpush1.msra.mxu0 0.0
    %5412 = vmatprep.subr.mxu0 0.0
    %5413 = vmatpush1.msra.mxu0 0.0
    %5414 = vmatprep.subr.mxu0 0.0
    %5415 = vmatpush1.msra.mxu0 0.0
    %5416 = vmatprep.subr.mxu0 0.0
    %5417 = vmatpush1.msra.mxu0 0.0
    %5418 = vmatprep.mubr.f32.mxu0 0.0
    %5419 = vmatmul.mubr.f32.gmra.mrb[0].mxu0 %v5352
    %v5420 = vpop.f32.mrb[0].mxu0
    %v5421 = vadd.f32 0.0, %v5420
    %v5422 = vpop.f32.mrb[0].mxu0
    %5423 = vdwg.mxu0
    %5424 = vrot.lane.b32.xlu0 %v187, 80
    %v5425 = vpop.permute.xlu0 %5424
    %v5428 = vsel %vm818, %v5041, 0
    %5430 = vmatprep.subr.mxu0 0.0
    %5431 = vmatpush1.msra.mxu0 %v5425
    %5432 = vmatprep.subr.mxu0 0.0
    %5433 = vmatpush1.msra.mxu0 0.0
    %5434 = vmatprep.subr.mxu0 0.0
    %5435 = vmatpush1.msra.mxu0 0.0
    %5436 = vmatprep.subr.mxu0 0.0
    %5437 = vmatpush1.msra.mxu0 0.0
    %5438 = vmatprep.subr.mxu0 0.0
    %5439 = vmatpush1.msra.mxu0 0.0
    %5440 = vmatprep.subr.mxu0 0.0
    %5441 = vmatpush1.msra.mxu0 0.0
    %5442 = vmatprep.subr.mxu0 0.0
    %5443 = vmatpush1.msra.mxu0 0.0
    %5444 = vmatprep.subr.mxu0 0.0
    %5445 = vmatpush1.msra.mxu0 0.0
    %5446 = vmatprep.subr.mxu0 0.0
    %5447 = vmatpush1.msra.mxu0 0.0
    %5448 = vmatprep.subr.mxu0 0.0
    %5449 = vmatpush1.msra.mxu0 0.0
    %5450 = vmatprep.subr.mxu0 0.0
    %5451 = vmatpush1.msra.mxu0 0.0
    %5452 = vmatprep.subr.mxu0 0.0
    %5453 = vmatpush1.msra.mxu0 0.0
    %5454 = vmatprep.subr.mxu0 0.0
    %5455 = vmatpush1.msra.mxu0 0.0
    %5456 = vmatprep.subr.mxu0 0.0
    %5457 = vmatpush1.msra.mxu0 0.0
    %5458 = vmatprep.subr.mxu0 0.0
    %5459 = vmatpush1.msra.mxu0 0.0
    %5460 = vmatprep.subr.mxu0 0.0
    %5461 = vmatpush1.msra.mxu0 0.0
    %5462 = vmatprep.subr.mxu0 0.0
    %5463 = vmatpush1.msra.mxu0 0.0
    %5464 = vmatprep.subr.mxu0 0.0
    %5465 = vmatpush1.msra.mxu0 0.0
    %5466 = vmatprep.subr.mxu0 0.0
    %5467 = vmatpush1.msra.mxu0 0.0
    %5468 = vmatprep.subr.mxu0 0.0
    %5469 = vmatpush1.msra.mxu0 0.0
    %5470 = vmatprep.subr.mxu0 0.0
    %5471 = vmatpush1.msra.mxu0 0.0
    %5472 = vmatprep.subr.mxu0 0.0
    %5473 = vmatpush1.msra.mxu0 0.0
    %5474 = vmatprep.subr.mxu0 0.0
    %5475 = vmatpush1.msra.mxu0 0.0
    %5476 = vmatprep.subr.mxu0 0.0
    %5477 = vmatpush1.msra.mxu0 0.0
    %5478 = vmatprep.subr.mxu0 0.0
    %5479 = vmatpush1.msra.mxu0 0.0
    %5480 = vmatprep.subr.mxu0 0.0
    %5481 = vmatpush1.msra.mxu0 0.0
    %5482 = vmatprep.subr.mxu0 0.0
    %5483 = vmatpush1.msra.mxu0 0.0
    %5484 = vmatprep.subr.mxu0 0.0
    %5485 = vmatpush1.msra.mxu0 0.0
    %5486 = vmatprep.subr.mxu0 0.0
    %5487 = vmatpush1.msra.mxu0 0.0
    %5488 = vmatprep.subr.mxu0 0.0
    %5489 = vmatpush1.msra.mxu0 0.0
    %5490 = vmatprep.subr.mxu0 0.0
    %5491 = vmatpush1.msra.mxu0 0.0
    %5492 = vmatprep.subr.mxu0 0.0
    %5493 = vmatpush1.msra.mxu0 0.0
    %5494 = vmatprep.mubr.f32.mxu0 0.0
    %5495 = vmatmul.mubr.f32.gmra.mrb[0].mxu0 %v5428
    %v5496 = vpop.f32.mrb[0].mxu0
    %v5497 = vadd.f32 0.0, %v5496
    %v5498 = vpop.f32.mrb[0].mxu0
    %5499 = vdwg.mxu0
    %5500 = vrot.lane.b32.xlu0 %v193, 80
    %v5501 = vpop.permute.xlu0 %5500
    %v5504 = vsel %vm818, %v5042, 0
    %5506 = vmatprep.subr.mxu0 0.0
    %5507 = vmatpush1.msra.mxu0 %v5501
    %5508 = vmatprep.subr.mxu0 0.0
    %5509 = vmatpush1.msra.mxu0 0.0
    %5510 = vmatprep.subr.mxu0 0.0
    %5511 = vmatpush1.msra.mxu0 0.0
    %5512 = vmatprep.subr.mxu0 0.0
    %5513 = vmatpush1.msra.mxu0 0.0
    %5514 = vmatprep.subr.mxu0 0.0
    %5515 = vmatpush1.msra.mxu0 0.0
    %5516 = vmatprep.subr.mxu0 0.0
    %5517 = vmatpush1.msra.mxu0 0.0
    %5518 = vmatprep.subr.mxu0 0.0
    %5519 = vmatpush1.msra.mxu0 0.0
    %5520 = vmatprep.subr.mxu0 0.0
    %5521 = vmatpush1.msra.mxu0 0.0
    %5522 = vmatprep.subr.mxu0 0.0
    %5523 = vmatpush1.msra.mxu0 0.0
    %5524 = vmatprep.subr.mxu0 0.0
    %5525 = vmatpush1.msra.mxu0 0.0
    %5526 = vmatprep.subr.mxu0 0.0
    %5527 = vmatpush1.msra.mxu0 0.0
    %5528 = vmatprep.subr.mxu0 0.0
    %5529 = vmatpush1.msra.mxu0 0.0
    %5530 = vmatprep.subr.mxu0 0.0
    %5531 = vmatpush1.msra.mxu0 0.0
    %5532 = vmatprep.subr.mxu0 0.0
    %5533 = vmatpush1.msra.mxu0 0.0
    %5534 = vmatprep.subr.mxu0 0.0
    %5535 = vmatpush1.msra.mxu0 0.0
    %5536 = vmatprep.subr.mxu0 0.0
    %5537 = vmatpush1.msra.mxu0 0.0
    %5538 = vmatprep.subr.mxu0 0.0
    %5539 = vmatpush1.msra.mxu0 0.0
    %5540 = vmatprep.subr.mxu0 0.0
    %5541 = vmatpush1.msra.mxu0 0.0
    %5542 = vmatprep.subr.mxu0 0.0
    %5543 = vmatpush1.msra.mxu0 0.0
    %5544 = vmatprep.subr.mxu0 0.0
    %5545 = vmatpush1.msra.mxu0 0.0
    %5546 = vmatprep.subr.mxu0 0.0
    %5547 = vmatpush1.msra.mxu0 0.0
    %5548 = vmatprep.subr.mxu0 0.0
    %5549 = vmatpush1.msra.mxu0 0.0
    %5550 = vmatprep.subr.mxu0 0.0
    %5551 = vmatpush1.msra.mxu0 0.0
    %5552 = vmatprep.subr.mxu0 0.0
    %5553 = vmatpush1.msra.mxu0 0.0
    %5554 = vmatprep.subr.mxu0 0.0
    %5555 = vmatpush1.msra.mxu0 0.0
    %5556 = vmatprep.subr.mxu0 0.0
    %5557 = vmatpush1.msra.mxu0 0.0
    %5558 = vmatprep.subr.mxu0 0.0
    %5559 = vmatpush1.msra.mxu0 0.0
    %5560 = vmatprep.subr.mxu0 0.0
    %5561 = vmatpush1.msra.mxu0 0.0
    %5562 = vmatprep.subr.mxu0 0.0
    %5563 = vmatpush1.msra.mxu0 0.0
    %5564 = vmatprep.subr.mxu0 0.0
    %5565 = vmatpush1.msra.mxu0 0.0
    %5566 = vmatprep.subr.mxu0 0.0
    %5567 = vmatpush1.msra.mxu0 0.0
    %5568 = vmatprep.subr.mxu0 0.0
    %5569 = vmatpush1.msra.mxu0 0.0
    %5570 = vmatprep.mubr.f32.mxu0 0.0
    %5571 = vmatmul.mubr.f32.gmra.mrb[0].mxu0 %v5504
    %v5572 = vpop.f32.mrb[0].mxu0
    %v5573 = vadd.f32 0.0, %v5572
    %v5574 = vpop.f32.mrb[0].mxu0
    %5575 = vdwg.mxu0
    %5576 = vrot.lane.b32.xlu0 %v199, 80
    %v5577 = vpop.permute.xlu0 %5576
    %v5580 = vsel %vm818, %v5043, 0
    %5582 = vmatprep.subr.mxu0 0.0
    %5583 = vmatpush1.msra.mxu0 %v5577
    %5584 = vmatprep.subr.mxu0 0.0
    %5585 = vmatpush1.msra.mxu0 0.0
    %5586 = vmatprep.subr.mxu0 0.0
    %5587 = vmatpush1.msra.mxu0 0.0
    %5588 = vmatprep.subr.mxu0 0.0
    %5589 = vmatpush1.msra.mxu0 0.0
    %5590 = vmatprep.subr.mxu0 0.0
    %5591 = vmatpush1.msra.mxu0 0.0
    %5592 = vmatprep.subr.mxu0 0.0
    %5593 = vmatpush1.msra.mxu0 0.0
    %5594 = vmatprep.subr.mxu0 0.0
    %5595 = vmatpush1.msra.mxu0 0.0
    %5596 = vmatprep.subr.mxu0 0.0
    %5597 = vmatpush1.msra.mxu0 0.0
    %5598 = vmatprep.subr.mxu0 0.0
    %5599 = vmatpush1.msra.mxu0 0.0
    %5600 = vmatprep.subr.mxu0 0.0
    %5601 = vmatpush1.msra.mxu0 0.0
    %5602 = vmatprep.subr.mxu0 0.0
    %5603 = vmatpush1.msra.mxu0 0.0
    %5604 = vmatprep.subr.mxu0 0.0
    %5605 = vmatpush1.msra.mxu0 0.0
    %5606 = vmatprep.subr.mxu0 0.0
    %5607 = vmatpush1.msra.mxu0 0.0
    %5608 = vmatprep.subr.mxu0 0.0
    %5609 = vmatpush1.msra.mxu0 0.0
    %5610 = vmatprep.subr.mxu0 0.0
    %5611 = vmatpush1.msra.mxu0 0.0
    %5612 = vmatprep.subr.mxu0 0.0
    %5613 = vmatpush1.msra.mxu0 0.0
    %5614 = vmatprep.subr.mxu0 0.0
    %5615 = vmatpush1.msra.mxu0 0.0
    %5616 = vmatprep.subr.mxu0 0.0
    %5617 = vmatpush1.msra.mxu0 0.0
    %5618 = vmatprep.subr.mxu0 0.0
    %5619 = vmatpush1.msra.mxu0 0.0
    %5620 = vmatprep.subr.mxu0 0.0
    %5621 = vmatpush1.msra.mxu0 0.0
    %5622 = vmatprep.subr.mxu0 0.0
    %5623 = vmatpush1.msra.mxu0 0.0
    %5624 = vmatprep.subr.mxu0 0.0
    %5625 = vmatpush1.msra.mxu0 0.0
    %5626 = vmatprep.subr.mxu0 0.0
    %5627 = vmatpush1.msra.mxu0 0.0
    %5628 = vmatprep.subr.mxu0 0.0
    %5629 = vmatpush1.msra.mxu0 0.0
    %5630 = vmatprep.subr.mxu0 0.0
    %5631 = vmatpush1.msra.mxu0 0.0
    %5632 = vmatprep.subr.mxu0 0.0
    %5633 = vmatpush1.msra.mxu0 0.0
    %5634 = vmatprep.subr.mxu0 0.0
    %5635 = vmatpush1.msra.mxu0 0.0
    %5636 = vmatprep.subr.mxu0 0.0
    %5637 = vmatpush1.msra.mxu0 0.0
    %5638 = vmatprep.subr.mxu0 0.0
    %5639 = vmatpush1.msra.mxu0 0.0
    %5640 = vmatprep.subr.mxu0 0.0
    %5641 = vmatpush1.msra.mxu0 0.0
    %5642 = vmatprep.subr.mxu0 0.0
    %5643 = vmatpush1.msra.mxu0 0.0
    %5644 = vmatprep.subr.mxu0 0.0
    %5645 = vmatpush1.msra.mxu0 0.0
    %5646 = vmatprep.mubr.f32.mxu0 0.0
    %5647 = vmatmul.mubr.f32.gmra.mrb[0].mxu0 %v5580
    %v5648 = vpop.f32.mrb[0].mxu0
    %v5649 = vadd.f32 0.0, %v5648
    %v5650 = vpop.f32.mrb[0].mxu0
    %5651 = vdwg.mxu0
    %v5652 = vsel %vm204, %v5117, 0.0
    %v5653 = vrot.slane %v5652, 4
    %v5654 = vadd.f32 %v5652, %v5653
    %v5655 = vrot.slane %v5654, 2
    %v5656 = vadd.f32 %v5654, %v5655
    %v5657 = vrot.slane %v5656, 1
    %v5658 = vadd.f32 %v5656, %v5657
    %v5659 = vsel %vm204, %v5193, 0.0
    %v5660 = vrot.slane %v5659, 4
    %v5661 = vadd.f32 %v5659, %v5660
    %v5662 = vrot.slane %v5661, 2
    %v5663 = vadd.f32 %v5661, %v5662
    %v5664 = vrot.slane %v5663, 1
    %v5665 = vadd.f32 %v5663, %v5664
    %v5666 = vsel %vm204, %v5269, 0.0
    %v5667 = vrot.slane %v5666, 4
    %v5668 = vadd.f32 %v5666, %v5667
    %v5669 = vrot.slane %v5668, 2
    %v5670 = vadd.f32 %v5668, %v5669
    %v5671 = vrot.slane %v5670, 1
    %v5672 = vadd.f32 %v5670, %v5671
    %v5673 = vsel %vm204, %v5345, 0.0
    %v5674 = vrot.slane %v5673, 4
    %v5675 = vadd.f32 %v5673, %v5674
    %v5676 = vrot.slane %v5675, 2
    %v5677 = vadd.f32 %v5675, %v5676
    %v5678 = vrot.slane %v5677, 1
    %v5679 = vadd.f32 %v5677, %v5678
    %v5680 = vsel %vm204, %v5421, 0.0
    %v5681 = vrot.slane %v5680, 4
    %v5682 = vadd.f32 %v5680, %v5681
    %v5683 = vrot.slane %v5682, 2
    %v5684 = vadd.f32 %v5682, %v5683
    %v5685 = vrot.slane %v5684, 1
    %v5686 = vadd.f32 %v5684, %v5685
    %v5687 = vsel %vm204, %v5497, 0.0
    %v5688 = vrot.slane %v5687, 4
    %v5689 = vadd.f32 %v5687, %v5688
    %v5690 = vrot.slane %v5689, 2
    %v5691 = vadd.f32 %v5689, %v5690
    %v5692 = vrot.slane %v5691, 1
    %v5693 = vadd.f32 %v5691, %v5692
    %v5694 = vsel %vm204, %v5573, 0.0
    %v5695 = vrot.slane %v5694, 4
    %v5696 = vadd.f32 %v5694, %v5695
    %v5697 = vrot.slane %v5696, 2
    %v5698 = vadd.f32 %v5696, %v5697
    %v5699 = vrot.slane %v5698, 1
    %v5700 = vadd.f32 %v5698, %v5699
    %v5701 = vsel %vm204, %v5649, 0.0
    %v5702 = vrot.slane %v5701, 4
    %v5703 = vadd.f32 %v5701, %v5702
    %v5704 = vrot.slane %v5703, 2
    %v5705 = vadd.f32 %v5703, %v5704
    %v5706 = vrot.slane %v5705, 1
    %v5707 = vadd.f32 %v5705, %v5706
    %v5708 = vmul.f32 %v5658, %v1547
    %v5709 = vmul.f32 %v5665, %v1547
    %v5710 = vmul.f32 %v5672, %v1547
    %v5711 = vmul.f32 %v5679, %v1547
    %v5712 = vmul.f32 %v5686, %v1547
    %v5713 = vmul.f32 %v5693, %v1547
    %v5714 = vmul.f32 %v5700, %v1547
    %v5715 = vmul.f32 %v5707, %v1547
    %vm5724 = vcmask 1041409
    %v5725 = vsel %vm5724, %v1549, %v1548
    %vm5726 = vcmask 1042434
    %v5727 = vsel %vm5726, %v1550, %v5725
    %vm5728 = vcmask 1043459
    %v5729 = vsel %vm5728, %v1551, %v5727
    %vm5730 = vcmask 1044484
    %v5731 = vsel %vm5730, %v1552, %v5729
    %vm5732 = vcmask 1045509
    %v5733 = vsel %vm5732, %v1553, %v5731
    %vm5734 = vcmask 1046534
    %v5735 = vsel %vm5734, %v1554, %v5733
    %vm5736 = vcmask 1047559
    %v5737 = vsel %vm5736, %v1555, %v5735
    %v5747 = vsel %vm5724, %v2941, %v2940
    %v5748 = vsel %vm5726, %v2942, %v5747
    %v5749 = vsel %vm5728, %v2943, %v5748
    %v5750 = vsel %vm5730, %v2944, %v5749
    %v5751 = vsel %vm5732, %v2945, %v5750
    %v5752 = vsel %vm5734, %v2946, %v5751
    %v5753 = vsel %vm5736, %v2947, %v5752
    %5754 = vrot.lane.b32.xlu0 %v5753, 16
    %v5755 = vpop.permute.xlu0 %5754
    %v5765 = vsel %vm5724, %v4325, %v4324
    %v5766 = vsel %vm5726, %v4326, %v5765
    %v5767 = vsel %vm5728, %v4327, %v5766
    %v5768 = vsel %vm5730, %v4328, %v5767
    %v5769 = vsel %vm5732, %v4329, %v5768
    %v5770 = vsel %vm5734, %v4330, %v5769
    %v5771 = vsel %vm5736, %v4331, %v5770
    %5772 = vrot.lane.b32.xlu0 %v5771, 32
    %v5773 = vpop.permute.xlu0 %5772
    %v5783 = vsel %vm5724, %v5709, %v5708
    %v5784 = vsel %vm5726, %v5710, %v5783
    %v5785 = vsel %vm5728, %v5711, %v5784
    %v5786 = vsel %vm5730, %v5712, %v5785
    %v5787 = vsel %vm5732, %v5713, %v5786
    %v5788 = vsel %vm5734, %v5714, %v5787
    %v5789 = vsel %vm5736, %v5715, %v5788
    %5790 = vrot.lane.b32.xlu0 %v5789, 48
    %v5791 = vpop.permute.xlu0 %5790
    %v5793 = vsel %vm204, %v5737, %v5755
    %v5794 = vsel %vm63, %v5793, %v5773
    %vm5795 = vcmask 392192
    %v5796 = vsel %vm5795, %v5794, %v5791
    %v5797 = vld [vmem:[%s3] sm:$0xff]
    %v5798 = vld [vmem:[%s3 + $0x8] sm:$0xff]
    %v5799 = vld [vmem:[%s3 + $0x10] sm:$0xff]
    %v5800 = vld [vmem:[%s3 + $0x18] sm:$0xff]
    %v5801 = vld [vmem:[%s3 + $0x20] sm:$0xff]
    %v5802 = vld [vmem:[%s3 + $0x28] sm:$0xff]
    %v5803 = vld [vmem:[%s3 + $0x30] sm:$0xff]
    %v5804 = vld [vmem:[%s3 + $0x38] sm:$0xff]
    %v5805 = vld [vmem:[%s4] sm:$0x1]
    %v5807 = vlaneseq
    %v5808 = vshrl.u32 %v5807, 7
    %v5809 = vsub.s32 0, %v5808
    %v5810 = vrot.slane %v5805, %v5809
    %vm5812 = vcmask 523264
    %v5814 = vsel %vm5812, %v5796, 0
    %5816 = vmatprep.subr.mxu0 0.0
    %5817 = vmatpush1.msra.mxu0 %v5797
    %5818 = vmatprep.subr.mxu0 0.0
    %5819 = vmatpush1.msra.mxu0 %v5798
    %5820 = vmatprep.subr.mxu0 0.0
    %5821 = vmatpush1.msra.mxu0 %v5799
    %5822 = vmatprep.subr.mxu0 0.0
    %5823 = vmatpush1.msra.mxu0 %v5800
    %5824 = vmatprep.subr.mxu0 0.0
    %5825 = vmatpush1.msra.mxu0 %v5801
    %5826 = vmatprep.subr.mxu0 0.0
    %5827 = vmatpush1.msra.mxu0 %v5802
    %5828 = vmatprep.subr.mxu0 0.0
    %5829 = vmatpush1.msra.mxu0 %v5803
    %5830 = vmatprep.subr.mxu0 0.0
    %5831 = vmatpush1.msra.mxu0 %v5804
    %5832 = vmatprep.subr.mxu0 0.0
    %5833 = vmatpush1.msra.mxu0 0.0
    %5834 = vmatprep.subr.mxu0 0.0
    %5835 = vmatpush1.msra.mxu0 0.0
    %5836 = vmatprep.subr.mxu0 0.0
    %5837 = vmatpush1.msra.mxu0 0.0
    %5838 = vmatprep.subr.mxu0 0.0
    %5839 = vmatpush1.msra.mxu0 0.0
    %5840 = vmatprep.subr.mxu0 0.0
    %5841 = vmatpush1.msra.mxu0 0.0
    %5842 = vmatprep.subr.mxu0 0.0
    %5843 = vmatpush1.msra.mxu0 0.0
    %5844 = vmatprep.subr.mxu0 0.0
    %5845 = vmatpush1.msra.mxu0 0.0
    %5846 = vmatprep.subr.mxu0 0.0
    %5847 = vmatpush1.msra.mxu0 0.0
    %5848 = vmatprep.subr.mxu0 0.0
    %5849 = vmatpush1.msra.mxu0 0.0
    %5850 = vmatprep.subr.mxu0 0.0
    %5851 = vmatpush1.msra.mxu0 0.0
    %5852 = vmatprep.subr.mxu0 0.0
    %5853 = vmatpush1.msra.mxu0 0.0
    %5854 = vmatprep.subr.mxu0 0.0
    %5855 = vmatpush1.msra.mxu0 0.0
    %5856 = vmatprep.subr.mxu0 0.0
    %5857 = vmatpush1.msra.mxu0 0.0
    %5858 = vmatprep.subr.mxu0 0.0
    %5859 = vmatpush1.msra.mxu0 0.0
    %5860 = vmatprep.subr.mxu0 0.0
    %5861 = vmatpush1.msra.mxu0 0.0
    %5862 = vmatprep.subr.mxu0 0.0
    %5863 = vmatpush1.msra.mxu0 0.0
    %5864 = vmatprep.subr.mxu0 0.0
    %5865 = vmatpush1.msra.mxu0 0.0
    %5866 = vmatprep.subr.mxu0 0.0
    %5867 = vmatpush1.msra.mxu0 0.0
    %5868 = vmatprep.subr.mxu0 0.0
    %5869 = vmatpush1.msra.mxu0 0.0
    %5870 = vmatprep.subr.mxu0 0.0
    %5871 = vmatpush1.msra.mxu0 0.0
    %5872 = vmatprep.subr.mxu0 0.0
    %5873 = vmatpush1.msra.mxu0 0.0
    %5874 = vmatprep.subr.mxu0 0.0
    %5875 = vmatpush1.msra.mxu0 0.0
    %5876 = vmatprep.subr.mxu0 0.0
    %5877 = vmatpush1.msra.mxu0 0.0
    %5878 = vmatprep.subr.mxu0 0.0
    %5879 = vmatpush1.msra.mxu0 0.0
    %5880 = vmatprep.mubr.f32.mxu0 0.0
    %5881 = vmatmul.mubr.f32.gmra.mrb[0].mxu0 %v5814
    %v5882 = vpop.f32.mrb[0].mxu0
    %v5883 = vadd.f32 %v5810, %v5882
    %v5884 = vpop.f32.mrb[0].mxu0
    %5885 = vdwg.mxu0
    %5886 = vst.msk [vmem:[#allocation5] sm:$0xff] %vm63, %v5883
    // Predicated region
    $region26: #{tpu_custom_call.1} parent=1 // pred_check
      _
    $region27: #{tpu_custom_call.1} parent=1 // pred_check_branch
      %5888 = sbr.rel (0) target = $region29
    $region28: #{tpu_custom_call.1} parent=1 // pred_region
      %s5890 = ssub.s32 128, 128
      %5891 = vsyncadd [#allocation4], %s5890
      %s5893 = sshll.u32 [#allocation5], 4
      %s5894 = int_to_ptr.vmem [resolvable:$true] %s5893
      %5896 = dma.vmem_to_hbm [thread:$0]  %s5894, 128, %s5, [#allocation4]
    $region29: #{tpu_custom_call.1} parent=1 // pred_fallthru
      _
    // Predicated region
    $region30: #{tpu_custom_call.1} parent=1 // pred_check
      _
    $region31: #{tpu_custom_call.1} parent=1 // pred_check_branch
      %5898 = sbr.rel (0) target = $region33
    $region32: #{tpu_custom_call.1} parent=1 // pred_region
      %5899 = dma.done [#allocation4], 128
    $region33: #{tpu_custom_call.1} parent=1 // pred_fallthru
      _
    %5900 = vsyncpa [#allocation3], 1
    %5901 = vsyncpa [#allocation4], 1

</llo_original>
